<compile_context>
chip_gen: v7x
topology: tpu7x:2x2x1
jax: 0.10.0
libtpu: 0.0.40
codegen_flags: <defaults>
</compile_context>

<pallas_src>
import functools
import math

import numpy as np

import jax
import jax.numpy as jnp
from jax.experimental import pallas as pl
from jax.experimental.pallas import tpu as pltpu

# ---------------- small synthetic BERT config ----------------
HIDDEN = 32          # config.hidden_size
NUM_HEADS = 2
HEAD_DIM = HIDDEN // NUM_HEADS
INTERMEDIATE = 64
NUM_LAYERS = 2
VOCAB = 50
MAX_POS = 64
VIDEO_DIM = 512      # hard-coded in UniBert.video_fc = Linear(512, hidden)
PROJ_DIM = 256       # newfc_hidden / proj_head width
LN_EPS = 1e-12
ATTN_SCALE = 1.0 / math.sqrt(HEAD_DIM)
NEG_BIG = -1.0e9     # cross-batch mask (underflows to exactly 0 after softmax)


# ---------------- in-kernel helpers ----------------
def _ln(v, g, b, eps=LN_EPS):
    mu = jnp.mean(v, axis=-1, keepdims=True)
    var = jnp.mean((v - mu) ** 2, axis=-1, keepdims=True)
    return (v - mu) * jax.lax.rsqrt(var + eps) * g + b


def _gelu(v):
    # TODO(synk): HF BERT uses exact erf GELU; tanh approximation used here.
    c = math.sqrt(2.0 / math.pi)
    return 0.5 * v * (1.0 + jnp.tanh(c * (v + 0.044715 * v * v * v)))


def _const_spec(arr):
    """Full-array block with a constant index_map => VMEM-resident across grid."""
    zero = (0,) * arr.ndim
    return pl.BlockSpec(arr.shape, lambda g, _z=zero: _z)


def _grid_steps(batch):
    """grid=(1,) on single-TC chips (v5e/v6e); grid=(2,) on dual-TC v7x."""
    try:
        kind = jax.devices()[0].device_kind.lower()
    except Exception:  # pragma: no cover
        kind = ""
    cores = 2 if ("v7" in kind or "7x" in kind) else 1
    g = max(1, min(batch, cores))
    while batch % g != 0:
        g -= 1
    return g


# ---------------- the single fused kernel ----------------
def _fused_kernel(ids_ref, vfeat_ref, mask_ref,
                  we_ref, tpt_ref, eg_ref, eb_ref,
                  vfcw_ref, vfcb_ref, vpt_ref, vg_ref, vb_ref,
                  wq_ref, wk_ref, wv_ref, bq_ref, bk_ref, bv_ref,
                  wo_ref, bo_ref, ln1g_ref, ln1b_ref,
                  wi_ref, bi_ref, wf_ref, bf_ref, ln2g_ref, ln2b_ref,
                  hsel_ref, fcw_ref, fcb_ref, pw_ref, pb_ref,
                  out_ref, *, bb, t, m):
    l = t + m
    n_rows = bb * l

    # ---- text embeddings: one-hot gather on the MXU + pos/type + LayerNorm ----
    ids = ids_ref[...]                                               # (bb*t, 1) int32
    iota = jax.lax.broadcasted_iota(jnp.int32, (bb * t, VOCAB), 1)
    onehot = (ids == iota).astype(jnp.float32)                       # (bb*t, VOCAB)
    tword = jnp.dot(onehot, we_ref[...], preferred_element_type=jnp.float32)
    te = _ln(tword + tpt_ref[...], eg_ref[...], eb_ref[...])         # (bb*t, H)

    # ---- video embeddings: Linear(512 -> H) + pos/type + LayerNorm ----
    vproj = jnp.dot(vfeat_ref[...], vfcw_ref[...],
                    preferred_element_type=jnp.float32)              # (bb*m, H)
    ve = _ln(vproj + vfcb_ref[...] + vpt_ref[...], vg_ref[...], vb_ref[...])

    # Encoder input, internal row order = [all text rows | all video rows].
    # Attention is permutation-equivariant; the additive mask and the head
    # selection matrix are built in the same order, so outputs are unchanged.
    x = jnp.concatenate([te, ve], axis=0)                            # (bb*l, H)
    madd = mask_ref[...]                                             # (bb*l, bb*l)

    for layer in range(NUM_LAYERS):
        ctx_proj = jnp.zeros((n_rows, HIDDEN), jnp.float32)
        for h in range(NUM_HEADS):
            q = jnp.dot(x, wq_ref[layer, h],
                        preferred_element_type=jnp.float32) + bq_ref[layer, h]
            k = jnp.dot(x, wk_ref[layer, h],
                        preferred_element_type=jnp.float32) + bk_ref[layer, h]
            v = jnp.dot(x, wv_ref[layer, h],
                        preferred_element_type=jnp.float32) + bv_ref[layer, h]
            # full batch-folded score slab; block-diagonal mask keeps batches apart
            s = jax.lax.dot_general(q, k, (((1,), (1,)), ((), ())),
                                    preferred_element_type=jnp.float32)
            s = s * ATTN_SCALE + madd
            s = s - jnp.max(s, axis=-1, keepdims=True)
            p = jnp.exp(s)
            p = p * pl.reciprocal(jnp.sum(p, axis=-1, keepdims=True))
            ctx = jnp.dot(p, v, preferred_element_type=jnp.float32)  # (n_rows, dH)
            ctx_proj = ctx_proj + jnp.dot(ctx, wo_ref[layer, h],
                                          preferred_element_type=jnp.float32)
        attn_out = ctx_proj + bo_ref[layer]

        # residual + LN 1
        y = _ln(attn_out + x, ln1g_ref[layer], ln1b_ref[layer])
        # FFN (GELU) + residual + LN 2
        inter = _gelu(jnp.dot(y, wi_ref[layer],
                              preferred_element_type=jnp.float32) + bi_ref[layer])
        ffn = jnp.dot(inter, wf_ref[layer],
                      preferred_element_type=jnp.float32) + bf_ref[layer]
        x = _ln(ffn + y, ln2g_ref[layer], ln2b_ref[layer])

    # ---- heads: pooled-mean rows and CLS rows selected with one matmul ----
    # hsel is (2*bb, bb*l): rows 0..bb-1 average the non-CLS rows of each batch,
    # rows bb..2bb-1 pick each batch's CLS row.
    lhs = jnp.dot(hsel_ref[...], x, preferred_element_type=jnp.float32)      # (2*bb, H)
    fc_out = jnp.dot(lhs, fcw_ref[...],
                     preferred_element_type=jnp.float32) + fcb_ref[...]      # (2*bb, 256)
    h1 = jnp.maximum(fc_out[bb:2 * bb, :], 0.0)                              # proj_head ReLU
    emb_cls = jnp.dot(h1, pw_ref[...],
                      preferred_element_type=jnp.float32) + pb_ref[...]      # (bb, 256)
    out_ref[0] = jnp.concatenate([fc_out[0:bb, :], emb_cls], axis=0)         # (2*bb, 256)


# ---------------- parameters (deterministic, synthetic) ----------------
def init_params(key):
    keys = iter(jax.random.split(key, 64))

    def nrm(shape):
        return 0.02 * jax.random.normal(next(keys), shape, jnp.float32)

    def zeros(*shape):
        return jnp.zeros(shape, jnp.float32)

    def ones(*shape):
        return jnp.ones(shape, jnp.float32)

    nl, nh, dh = NUM_LAYERS, NUM_HEADS, HEAD_DIM
    return {
        # text BertEmbeddings
        "word_emb": nrm((VOCAB, HIDDEN)),
        "pos_emb": nrm((MAX_POS, HIDDEN)),
        "type_emb": nrm((2, HIDDEN)),
        "emb_ln_g": ones(1, HIDDEN), "emb_ln_b": zeros(1, HIDDEN),
        # video_fc + video BertEmbeddings
        "video_fc_w": nrm((VIDEO_DIM, HIDDEN)), "video_fc_b": zeros(1, HIDDEN),
        "vpos_emb": nrm((MAX_POS, HIDDEN)),
        "vtype_emb": nrm((2, HIDDEN)),
        "vemb_ln_g": ones(1, HIDDEN), "vemb_ln_b": zeros(1, HIDDEN),
        # encoder layers, per-head layout (no in-kernel lane slicing)
        "wq": nrm((nl, nh, HIDDEN, dh)), "bq": zeros(nl, nh, 1, dh),
        "wk": nrm((nl, nh, HIDDEN, dh)), "bk": zeros(nl, nh, 1, dh),
        "wv": nrm((nl, nh, HIDDEN, dh)), "bv": zeros(nl, nh, 1, dh),
        "wo": nrm((nl, nh, dh, HIDDEN)), "bo": zeros(nl, 1, HIDDEN),
        "ln1_g": ones(nl, 1, HIDDEN), "ln1_b": zeros(nl, 1, HIDDEN),
        "wi": nrm((nl, HIDDEN, INTERMEDIATE)), "bi": zeros(nl, 1, INTERMEDIATE),
        "wf": nrm((nl, INTERMEDIATE, HIDDEN)), "bf": zeros(nl, 1, HIDDEN),
        "ln2_g": ones(nl, 1, HIDDEN), "ln2_b": zeros(nl, 1, HIDDEN),
        # heads
        "fc_hidden_w": nrm((HIDDEN, PROJ_DIM)), "fc_hidden_b": zeros(1, PROJ_DIM),
        "proj_w": nrm((PROJ_DIM, PROJ_DIM)), "proj_b": zeros(1, PROJ_DIM),
    }


# ---------------- forward pass ----------------
def uni_model_finetune_forward(params, video_feature, video_mask,
                               text_input_ids, text_mask, target=None):
    B, T = text_input_ids.shape
    M = video_feature.shape[1]
    L = T + M                                   # == 1 + M + (T - 1)
    G = _grid_steps(B)                          # grid steps (1 or 2)
    BB = B // G                                 # batch rows folded per grid step

    # ---- tiny XLA glue: index/mask tables only, no activation round-trips ----
    ids2d = text_input_ids.astype(jnp.int32).reshape(B * T, 1)
    vfeat2d = video_feature.reshape(B * M, VIDEO_DIM)
    text_pt = jnp.tile(params["pos_emb"][:T] + params["type_emb"][0][None, :], (BB, 1))
    vpt = jnp.tile(params["vpos_emb"][:M] + params["vtype_emb"][0][None, :], (BB, 1))

    # Block-diagonal additive attention mask in kernel row/col order
    # ([text | video] per batch, BB batches folded per grid step).
    tm = text_mask.astype(jnp.float32).reshape(G, BB, T)
    vm = video_mask.astype(jnp.float32).reshape(G, BB, M)
    colmask = jnp.concatenate([tm.reshape(G, BB * T), vm.reshape(G, BB * M)], axis=1)
    seg = np.concatenate([np.repeat(np.arange(BB), T), np.repeat(np.arange(BB), M)])
    same = jnp.asarray(seg[:, None] == seg[None, :])                 # (BB*L, BB*L)
    madd = (1.0 - colmask) * -10000.0                                # (G, BB*L)
    bigmask = jnp.where(same[None, :, :], madd[:, None, :],
                        NEG_BIG).reshape(G * BB * L, BB * L)

    # Constant pooling/selection matrix for the heads (mean over non-CLS rows,
    # CLS-row select), in the same internal row order.
    sel = np.zeros((2 * BB, BB * L), np.float32)
    for b in range(BB):
        sel[b, b * T + 1:(b + 1) * T] = 1.0 / (L - 1)                # text[1:]
        sel[b, BB * T + b * M: BB * T + (b + 1) * M] = 1.0 / (L - 1)  # video
        sel[BB + b, b * T] = 1.0                                      # CLS
    head_sel = jnp.asarray(sel)

    weights = (params["word_emb"], text_pt, params["emb_ln_g"], params["emb_ln_b"],
               params["video_fc_w"], params["video_fc_b"], vpt,
               params["vemb_ln_g"], params["vemb_ln_b"],
               params["wq"], params["wk"], params["wv"],
               params["bq"], params["bk"], params["bv"],
               params["wo"], params["bo"], params["ln1_g"], params["ln1_b"],
               params["wi"], params["bi"], params["wf"], params["bf"],
               params["ln2_g"], params["ln2_b"],
               head_sel, params["fc_hidden_w"], params["fc_hidden_b"],
               params["proj_w"], params["proj_b"])

    in_specs = [
        pl.BlockSpec((BB * T, 1), lambda g: (g, 0)),
        pl.BlockSpec((BB * M, VIDEO_DIM), lambda g: (g, 0)),
        pl.BlockSpec((BB * L, BB * L), lambda g: (g, 0)),
    ] + [_const_spec(w) for w in weights]
    out_specs = pl.BlockSpec((1, 2 * BB, PROJ_DIM), lambda g: (g, 0, 0))
    out_shape = jax.ShapeDtypeStruct((G, 2 * BB, PROJ_DIM), jnp.float32)

    operands = [ids2d, vfeat2d, bigmask] + list(weights)
    flops = int(2 * B * L * NUM_LAYERS * (4 * HIDDEN * HIDDEN
                                          + 2 * BB * L * HIDDEN
                                          + 2 * HIDDEN * INTERMEDIATE)
                + 2 * B * M * VIDEO_DIM * HIDDEN
                + 2 * B * T * VOCAB * HIDDEN
                + 2 * B * (2 * HIDDEN * PROJ_DIM + PROJ_DIM * PROJ_DIM))
    transcendentals = int(B * NUM_LAYERS * (NUM_HEADS * BB * L * L + L * INTERMEDIATE))
    bytes_accessed = int(sum(int(a.size) * a.dtype.itemsize for a in operands)
                         + G * 2 * BB * PROJ_DIM * 4)

    out = pl.pallas_call(
        functools.partial(_fused_kernel, bb=BB, t=T, m=M),
        out_shape=out_shape,
        grid=(G,),
        in_specs=in_specs,
        out_specs=out_specs,
        compiler_params=pltpu.CompilerParams(dimension_semantics=("parallel",)),
        cost_estimate=pl.CostEstimate(flops=flops,
                                      transcendentals=transcendentals,
                                      bytes_accessed=bytes_accessed),
    )(*operands)

    out = out.reshape(G, 2, BB, PROJ_DIM)
    embedding_mean = out[:, 0].reshape(B, PROJ_DIM)
    embedding_cls = out[:, 1].reshape(B, PROJ_DIM)

    pred = None   # 'tag' not in task
    loss = 0.0
    return pred, embedding_mean, embedding_cls, loss


if __name__ == "__main__":
    key = jax.random.PRNGKey(0)
    kp, kv, kt = jax.random.split(key, 3)
    params = init_params(kp)

    B, T, M = 2, 8, 8      # total seq L = 1 + M + (T-1) = 16
    video_feature = jax.random.normal(kv, (B, M, VIDEO_DIM), jnp.float32)
    text_input_ids = jax.random.randint(kt, (B, T), 1, VOCAB)
    video_mask = jnp.ones((B, M), jnp.float32).at[1, M - 1].set(0.0)
    text_mask = jnp.ones((B, T), jnp.float32).at[1, T - 1].set(0.0)

    fwd = jax.jit(uni_model_finetune_forward)
    pred, emb_mean, emb_cls, loss = fwd(
        params, video_feature, video_mask, text_input_ids, text_mask)
    jax.block_until_ready((emb_mean, emb_cls))
    assert emb_mean.shape == (B, PROJ_DIM) and emb_cls.shape == (B, PROJ_DIM)
    assert bool(jnp.all(jnp.isfinite(emb_mean))) and bool(jnp.all(jnp.isfinite(emb_cls)))
    print("KERNEL_OK")
</pallas_src>

<mosaic_0001>
module attributes {stable_mosaic.version = 11 : i64} {
  func.func @_fused_kernel(%arg0: i32, %arg1: memref<16x1xi32, #tpu.memory_space<vmem>>, %arg2: memref<16x512xf32, #tpu.memory_space<vmem>>, %arg3: memref<32x32xf32, #tpu.memory_space<vmem>>, %arg4: memref<50x32xf32, #tpu.memory_space<vmem>>, %arg5: memref<16x32xf32, #tpu.memory_space<vmem>>, %arg6: memref<1x32xf32, #tpu.memory_space<vmem>>, %arg7: memref<1x32xf32, #tpu.memory_space<vmem>>, %arg8: memref<512x32xf32, #tpu.memory_space<vmem>>, %arg9: memref<1x32xf32, #tpu.memory_space<vmem>>, %arg10: memref<16x32xf32, #tpu.memory_space<vmem>>, %arg11: memref<1x32xf32, #tpu.memory_space<vmem>>, %arg12: memref<1x32xf32, #tpu.memory_space<vmem>>, %arg13: memref<2x2x32x16xf32, #tpu.memory_space<vmem>>, %arg14: memref<2x2x32x16xf32, #tpu.memory_space<vmem>>, %arg15: memref<2x2x32x16xf32, #tpu.memory_space<vmem>>, %arg16: memref<2x2x1x16xf32, #tpu.memory_space<vmem>>, %arg17: memref<2x2x1x16xf32, #tpu.memory_space<vmem>>, %arg18: memref<2x2x1x16xf32, #tpu.memory_space<vmem>>, %arg19: memref<2x2x16x32xf32, #tpu.memory_space<vmem>>, %arg20: memref<2x1x32xf32, #tpu.memory_space<vmem>>, %arg21: memref<2x1x32xf32, #tpu.memory_space<vmem>>, %arg22: memref<2x1x32xf32, #tpu.memory_space<vmem>>, %arg23: memref<2x32x64xf32, #tpu.memory_space<vmem>>, %arg24: memref<2x1x64xf32, #tpu.memory_space<vmem>>, %arg25: memref<2x64x32xf32, #tpu.memory_space<vmem>>, %arg26: memref<2x1x32xf32, #tpu.memory_space<vmem>>, %arg27: memref<2x1x32xf32, #tpu.memory_space<vmem>>, %arg28: memref<2x1x32xf32, #tpu.memory_space<vmem>>, %arg29: memref<4x32xf32, #tpu.memory_space<vmem>>, %arg30: memref<32x256xf32, #tpu.memory_space<vmem>>, %arg31: memref<1x256xf32, #tpu.memory_space<vmem>>, %arg32: memref<256x256xf32, #tpu.memory_space<vmem>>, %arg33: memref<1x256xf32, #tpu.memory_space<vmem>>, %arg34: memref<1x4x256xf32, #tpu.memory_space<vmem>>) attributes {dimension_semantics = [#tpu.dimension_semantics<parallel>], iteration_bounds = array<i64: 1>, scalar_prefetch = 0 : i64, scratch_operands = 0 : i64, tpu.core_type = #tpu.core_type<tc>, window_params = [{transform_indices = @transform_0, window_bounds = array<i64: 16, 1>}, {transform_indices = @transform_1, window_bounds = array<i64: 16, 512>}, {transform_indices = @transform_2, window_bounds = array<i64: 32, 32>}, {pipeline_mode = #tpu.pipeline_mode<synchronous>, transform_indices = @transform_3, window_bounds = array<i64: 50, 32>}, {pipeline_mode = #tpu.pipeline_mode<synchronous>, transform_indices = @transform_4, window_bounds = array<i64: 16, 32>}, {pipeline_mode = #tpu.pipeline_mode<synchronous>, transform_indices = @transform_5, window_bounds = array<i64: 1, 32>}, {pipeline_mode = #tpu.pipeline_mode<synchronous>, transform_indices = @transform_6, window_bounds = array<i64: 1, 32>}, {pipeline_mode = #tpu.pipeline_mode<synchronous>, transform_indices = @transform_7, window_bounds = array<i64: 512, 32>}, {pipeline_mode = #tpu.pipeline_mode<synchronous>, transform_indices = @transform_8, window_bounds = array<i64: 1, 32>}, {pipeline_mode = #tpu.pipeline_mode<synchronous>, transform_indices = @transform_9, window_bounds = array<i64: 16, 32>}, {pipeline_mode = #tpu.pipeline_mode<synchronous>, transform_indices = @transform_10, window_bounds = array<i64: 1, 32>}, {pipeline_mode = #tpu.pipeline_mode<synchronous>, transform_indices = @transform_11, window_bounds = array<i64: 1, 32>}, {pipeline_mode = #tpu.pipeline_mode<synchronous>, transform_indices = @transform_12, window_bounds = array<i64: 2, 2, 32, 16>}, {pipeline_mode = #tpu.pipeline_mode<synchronous>, transform_indices = @transform_13, window_bounds = array<i64: 2, 2, 32, 16>}, {pipeline_mode = #tpu.pipeline_mode<synchronous>, transform_indices = @transform_14, window_bounds = array<i64: 2, 2, 32, 16>}, {pipeline_mode = #tpu.pipeline_mode<synchronous>, transform_indices = @transform_15, window_bounds = array<i64: 2, 2, 1, 16>}, {pipeline_mode = #tpu.pipeline_mode<synchronous>, transform_indices = @transform_16, window_bounds = array<i64: 2, 2, 1, 16>}, {pipeline_mode = #tpu.pipeline_mode<synchronous>, transform_indices = @transform_17, window_bounds = array<i64: 2, 2, 1, 16>}, {pipeline_mode = #tpu.pipeline_mode<synchronous>, transform_indices = @transform_18, window_bounds = array<i64: 2, 2, 16, 32>}, {pipeline_mode = #tpu.pipeline_mode<synchronous>, transform_indices = @transform_19, window_bounds = array<i64: 2, 1, 32>}, {pipeline_mode = #tpu.pipeline_mode<synchronous>, transform_indices = @transform_20, window_bounds = array<i64: 2, 1, 32>}, {pipeline_mode = #tpu.pipeline_mode<synchronous>, transform_indices = @transform_21, window_bounds = array<i64: 2, 1, 32>}, {pipeline_mode = #tpu.pipeline_mode<synchronous>, transform_indices = @transform_22, window_bounds = array<i64: 2, 32, 64>}, {pipeline_mode = #tpu.pipeline_mode<synchronous>, transform_indices = @transform_23, window_bounds = array<i64: 2, 1, 64>}, {pipeline_mode = #tpu.pipeline_mode<synchronous>, transform_indices = @transform_24, window_bounds = array<i64: 2, 64, 32>}, {pipeline_mode = #tpu.pipeline_mode<synchronous>, transform_indices = @transform_25, window_bounds = array<i64: 2, 1, 32>}, {pipeline_mode = #tpu.pipeline_mode<synchronous>, transform_indices = @transform_26, window_bounds = array<i64: 2, 1, 32>}, {pipeline_mode = #tpu.pipeline_mode<synchronous>, transform_indices = @transform_27, window_bounds = array<i64: 2, 1, 32>}, {pipeline_mode = #tpu.pipeline_mode<synchronous>, transform_indices = @transform_28, window_bounds = array<i64: 4, 32>}, {pipeline_mode = #tpu.pipeline_mode<synchronous>, transform_indices = @transform_29, window_bounds = array<i64: 32, 256>}, {pipeline_mode = #tpu.pipeline_mode<synchronous>, transform_indices = @transform_30, window_bounds = array<i64: 1, 256>}, {pipeline_mode = #tpu.pipeline_mode<synchronous>, transform_indices = @transform_31, window_bounds = array<i64: 256, 256>}, {pipeline_mode = #tpu.pipeline_mode<synchronous>, transform_indices = @transform_32, window_bounds = array<i64: 1, 256>}, {transform_indices = @transform_33, window_bounds = array<i64: 1, 4, 256>}]} {
    %c0 = arith.constant 0 : index
    %c0_0 = arith.constant 0 : index
    %0 = vector.load %arg1[%c0, %c0_0] : memref<16x1xi32, #tpu.memory_space<vmem>>, vector<16x1xi32>
    %1 = tpu.iota {dimensions = array<i32: 1>} : vector<16x50xi32>
    %2 = vector.broadcast %0 : vector<16x1xi32> to vector<16x50xi32>
    %3 = arith.cmpi eq, %2, %1 : vector<16x50xi32>
    %4 = arith.extui %3 : vector<16x50xi1> to vector<16x50xi32>
    %5 = arith.sitofp %4 : vector<16x50xi32> to vector<16x50xf32>
    %c0_1 = arith.constant 0 : index
    %c0_2 = arith.constant 0 : index
    %6 = vector.load %arg4[%c0_1, %c0_2] : memref<50x32xf32, #tpu.memory_space<vmem>>, vector<50x32xf32>
    %cst = arith.constant dense<0.000000e+00> : vector<16x32xf32>
    %7 = tpu.matmul %5, %6, %cst {dimension_numbers = #tpu.dot_dimension_numbers<[1], [0], [0], [1], [0, 0, 1, 1], [], []>} : vector<16x50xf32>, vector<50x32xf32>, vector<16x32xf32> -> vector<16x32xf32>
    %c0_3 = arith.constant 0 : index
    %c0_4 = arith.constant 0 : index
    %8 = vector.load %arg5[%c0_3, %c0_4] : memref<16x32xf32, #tpu.memory_space<vmem>>, vector<16x32xf32>
    %9 = arith.addf %7, %8 : vector<16x32xf32>
    %c0_5 = arith.constant 0 : index
    %c0_6 = arith.constant 0 : index
    %10 = vector.load %arg6[%c0_5, %c0_6] : memref<1x32xf32, #tpu.memory_space<vmem>>, vector<1x32xf32>
    %c0_7 = arith.constant 0 : index
    %c0_8 = arith.constant 0 : index
    %11 = vector.load %arg7[%c0_7, %c0_8] : memref<1x32xf32, #tpu.memory_space<vmem>>, vector<1x32xf32>
    %cst_9 = arith.constant dense<0.000000e+00> : vector<16xf32>
    %12 = vector.multi_reduction <add>, %9, %cst_9 [1] : vector<16x32xf32> to vector<16xf32>
    %13 = vector.shape_cast %12 : vector<16xf32> to vector<16x1xf32>
    %cst_10 = arith.constant 3.200000e+01 : f32
    %14 = vector.broadcast %cst_10 : f32 to vector<16x1xf32>
    %15 = arith.divf %13, %14 : vector<16x1xf32>
    %16 = vector.broadcast %15 : vector<16x1xf32> to vector<16x32xf32>
    %17 = arith.subf %9, %16 : vector<16x32xf32>
    %18 = arith.mulf %17, %17 : vector<16x32xf32>
    %cst_11 = arith.constant dense<0.000000e+00> : vector<16xf32>
    %19 = vector.multi_reduction <add>, %18, %cst_11 [1] : vector<16x32xf32> to vector<16xf32>
    %20 = vector.shape_cast %19 : vector<16xf32> to vector<16x1xf32>
    %cst_12 = arith.constant 3.200000e+01 : f32
    %21 = vector.broadcast %cst_12 : f32 to vector<16x1xf32>
    %22 = arith.divf %20, %21 : vector<16x1xf32>
    %23 = vector.broadcast %15 : vector<16x1xf32> to vector<16x32xf32>
    %24 = arith.subf %9, %23 : vector<16x32xf32>
    %cst_13 = arith.constant 9.99999996E-13 : f32
    %25 = vector.broadcast %cst_13 : f32 to vector<16x1xf32>
    %26 = arith.addf %22, %25 : vector<16x1xf32>
    %27 = math.rsqrt %26 : vector<16x1xf32>
    %28 = vector.broadcast %27 : vector<16x1xf32> to vector<16x32xf32>
    %29 = arith.mulf %24, %28 : vector<16x32xf32>
    %30 = vector.broadcast %10 : vector<1x32xf32> to vector<16x32xf32>
    %31 = arith.mulf %29, %30 : vector<16x32xf32>
    %32 = vector.broadcast %11 : vector<1x32xf32> to vector<16x32xf32>
    %33 = arith.addf %31, %32 : vector<16x32xf32>
    %c0_14 = arith.constant 0 : index
    %c0_15 = arith.constant 0 : index
    %34 = vector.load %arg2[%c0_14, %c0_15] : memref<16x512xf32, #tpu.memory_space<vmem>>, vector<16x512xf32>
    %c0_16 = arith.constant 0 : index
    %c0_17 = arith.constant 0 : index
    %35 = vector.load %arg8[%c0_16, %c0_17] : memref<512x32xf32, #tpu.memory_space<vmem>>, vector<512x32xf32>
    %cst_18 = arith.constant dense<0.000000e+00> : vector<16x32xf32>
    %36 = tpu.matmul %34, %35, %cst_18 {dimension_numbers = #tpu.dot_dimension_numbers<[1], [0], [0], [1], [0, 0, 1, 1], [], []>} : vector<16x512xf32>, vector<512x32xf32>, vector<16x32xf32> -> vector<16x32xf32>
    %c0_19 = arith.constant 0 : index
    %c0_20 = arith.constant 0 : index
    %37 = vector.load %arg9[%c0_19, %c0_20] : memref<1x32xf32, #tpu.memory_space<vmem>>, vector<1x32xf32>
    %38 = vector.broadcast %37 : vector<1x32xf32> to vector<16x32xf32>
    %39 = arith.addf %36, %38 : vector<16x32xf32>
    %c0_21 = arith.constant 0 : index
    %c0_22 = arith.constant 0 : index
    %40 = vector.load %arg10[%c0_21, %c0_22] : memref<16x32xf32, #tpu.memory_space<vmem>>, vector<16x32xf32>
    %41 = arith.addf %39, %40 : vector<16x32xf32>
    %c0_23 = arith.constant 0 : index
    %c0_24 = arith.constant 0 : index
    %42 = vector.load %arg11[%c0_23, %c0_24] : memref<1x32xf32, #tpu.memory_space<vmem>>, vector<1x32xf32>
    %c0_25 = arith.constant 0 : index
    %c0_26 = arith.constant 0 : index
    %43 = vector.load %arg12[%c0_25, %c0_26] : memref<1x32xf32, #tpu.memory_space<vmem>>, vector<1x32xf32>
    %cst_27 = arith.constant dense<0.000000e+00> : vector<16xf32>
    %44 = vector.multi_reduction <add>, %41, %cst_27 [1] : vector<16x32xf32> to vector<16xf32>
    %45 = vector.shape_cast %44 : vector<16xf32> to vector<16x1xf32>
    %cst_28 = arith.constant 3.200000e+01 : f32
    %46 = vector.broadcast %cst_28 : f32 to vector<16x1xf32>
    %47 = arith.divf %45, %46 : vector<16x1xf32>
    %48 = vector.broadcast %47 : vector<16x1xf32> to vector<16x32xf32>
    %49 = arith.subf %41, %48 : vector<16x32xf32>
    %50 = arith.mulf %49, %49 : vector<16x32xf32>
    %cst_29 = arith.constant dense<0.000000e+00> : vector<16xf32>
    %51 = vector.multi_reduction <add>, %50, %cst_29 [1] : vector<16x32xf32> to vector<16xf32>
    %52 = vector.shape_cast %51 : vector<16xf32> to vector<16x1xf32>
    %cst_30 = arith.constant 3.200000e+01 : f32
    %53 = vector.broadcast %cst_30 : f32 to vector<16x1xf32>
    %54 = arith.divf %52, %53 : vector<16x1xf32>
    %55 = vector.broadcast %47 : vector<16x1xf32> to vector<16x32xf32>
    %56 = arith.subf %41, %55 : vector<16x32xf32>
    %cst_31 = arith.constant 9.99999996E-13 : f32
    %57 = vector.broadcast %cst_31 : f32 to vector<16x1xf32>
    %58 = arith.addf %54, %57 : vector<16x1xf32>
    %59 = math.rsqrt %58 : vector<16x1xf32>
    %60 = vector.broadcast %59 : vector<16x1xf32> to vector<16x32xf32>
    %61 = arith.mulf %56, %60 : vector<16x32xf32>
    %62 = vector.broadcast %42 : vector<1x32xf32> to vector<16x32xf32>
    %63 = arith.mulf %61, %62 : vector<16x32xf32>
    %64 = vector.broadcast %43 : vector<1x32xf32> to vector<16x32xf32>
    %65 = arith.addf %63, %64 : vector<16x32xf32>
    %66 = tpu.concatenate %33, %65 in 0 : vector<16x32xf32>, vector<16x32xf32> -> vector<32x32xf32>
    %c0_32 = arith.constant 0 : index
    %c0_33 = arith.constant 0 : index
    %67 = vector.load %arg3[%c0_32, %c0_33] : memref<32x32xf32, #tpu.memory_space<vmem>>, vector<32x32xf32>
    %cst_34 = arith.constant 0.000000e+00 : f32
    %68 = vector.broadcast %cst_34 : f32 to vector<32x32xf32>
    %c0_35 = arith.constant 0 : index
    %c0_36 = arith.constant 0 : index
    %c0_37 = arith.constant 0 : index
    %c0_38 = arith.constant 0 : index
    %69 = vector.load %arg13[%c0_35, %c0_36, %c0_37, %c0_38] : memref<2x2x32x16xf32, #tpu.memory_space<vmem>>, vector<1x1x32x16xf32>
    %70 = vector.shape_cast %69 : vector<1x1x32x16xf32> to vector<32x16xf32>
    %cst_39 = arith.constant dense<0.000000e+00> : vector<32x16xf32>
    %71 = tpu.matmul %66, %70, %cst_39 {dimension_numbers = #tpu.dot_dimension_numbers<[1], [0], [0], [1], [0, 0, 1, 1], [], []>} : vector<32x32xf32>, vector<32x16xf32>, vector<32x16xf32> -> vector<32x16xf32>
    %c0_40 = arith.constant 0 : index
    %c0_41 = arith.constant 0 : index
    %c0_42 = arith.constant 0 : index
    %c0_43 = arith.constant 0 : index
    %72 = vector.load %arg16[%c0_40, %c0_41, %c0_42, %c0_43] : memref<2x2x1x16xf32, #tpu.memory_space<vmem>>, vector<1x1x1x16xf32>
    %73 = vector.shape_cast %72 : vector<1x1x1x16xf32> to vector<1x16xf32>
    %74 = vector.broadcast %73 : vector<1x16xf32> to vector<32x16xf32>
    %75 = arith.addf %71, %74 : vector<32x16xf32>
    %c0_44 = arith.constant 0 : index
    %c0_45 = arith.constant 0 : index
    %c0_46 = arith.constant 0 : index
    %c0_47 = arith.constant 0 : index
    %76 = vector.load %arg14[%c0_44, %c0_45, %c0_46, %c0_47] : memref<2x2x32x16xf32, #tpu.memory_space<vmem>>, vector<1x1x32x16xf32>
    %77 = vector.shape_cast %76 : vector<1x1x32x16xf32> to vector<32x16xf32>
    %cst_48 = arith.constant dense<0.000000e+00> : vector<32x16xf32>
    %78 = tpu.matmul %66, %77, %cst_48 {dimension_numbers = #tpu.dot_dimension_numbers<[1], [0], [0], [1], [0, 0, 1, 1], [], []>} : vector<32x32xf32>, vector<32x16xf32>, vector<32x16xf32> -> vector<32x16xf32>
    %c0_49 = arith.constant 0 : index
    %c0_50 = arith.constant 0 : index
    %c0_51 = arith.constant 0 : index
    %c0_52 = arith.constant 0 : index
    %79 = vector.load %arg17[%c0_49, %c0_50, %c0_51, %c0_52] : memref<2x2x1x16xf32, #tpu.memory_space<vmem>>, vector<1x1x1x16xf32>
    %80 = vector.shape_cast %79 : vector<1x1x1x16xf32> to vector<1x16xf32>
    %81 = vector.broadcast %80 : vector<1x16xf32> to vector<32x16xf32>
    %82 = arith.addf %78, %81 : vector<32x16xf32>
    %c0_53 = arith.constant 0 : index
    %c0_54 = arith.constant 0 : index
    %c0_55 = arith.constant 0 : index
    %c0_56 = arith.constant 0 : index
    %83 = vector.load %arg15[%c0_53, %c0_54, %c0_55, %c0_56] : memref<2x2x32x16xf32, #tpu.memory_space<vmem>>, vector<1x1x32x16xf32>
    %84 = vector.shape_cast %83 : vector<1x1x32x16xf32> to vector<32x16xf32>
    %cst_57 = arith.constant dense<0.000000e+00> : vector<32x16xf32>
    %85 = tpu.matmul %66, %84, %cst_57 {dimension_numbers = #tpu.dot_dimension_numbers<[1], [0], [0], [1], [0, 0, 1, 1], [], []>} : vector<32x32xf32>, vector<32x16xf32>, vector<32x16xf32> -> vector<32x16xf32>
    %c0_58 = arith.constant 0 : index
    %c0_59 = arith.constant 0 : index
    %c0_60 = arith.constant 0 : index
    %c0_61 = arith.constant 0 : index
    %86 = vector.load %arg18[%c0_58, %c0_59, %c0_60, %c0_61] : memref<2x2x1x16xf32, #tpu.memory_space<vmem>>, vector<1x1x1x16xf32>
    %87 = vector.shape_cast %86 : vector<1x1x1x16xf32> to vector<1x16xf32>
    %88 = vector.broadcast %87 : vector<1x16xf32> to vector<32x16xf32>
    %89 = arith.addf %85, %88 : vector<32x16xf32>
    %cst_62 = arith.constant dense<0.000000e+00> : vector<32x32xf32>
    %90 = tpu.matmul %75, %82, %cst_62 {dimension_numbers = #tpu.dot_dimension_numbers<[1], [1], [0], [0], [0, 0, 1, 0], [], []>} : vector<32x16xf32>, vector<32x16xf32>, vector<32x32xf32> -> vector<32x32xf32>
    %cst_63 = arith.constant 2.500000e-01 : f32
    %91 = vector.broadcast %cst_63 : f32 to vector<32x32xf32>
    %92 = arith.mulf %90, %91 : vector<32x32xf32>
    %93 = arith.addf %92, %67 : vector<32x32xf32>
    %cst_64 = arith.constant dense<0xFF800000> : vector<32xf32>
    %94 = vector.multi_reduction <maximumf>, %93, %cst_64 [1] : vector<32x32xf32> to vector<32xf32>
    %95 = vector.shape_cast %94 : vector<32xf32> to vector<32x1xf32>
    %96 = vector.broadcast %95 : vector<32x1xf32> to vector<32x32xf32>
    %97 = arith.subf %93, %96 : vector<32x32xf32>
    %98 = math.exp %97 : vector<32x32xf32>
    %cst_65 = arith.constant dense<0.000000e+00> : vector<32xf32>
    %99 = vector.multi_reduction <add>, %98, %cst_65 [1] : vector<32x32xf32> to vector<32xf32>
    %100 = vector.shape_cast %99 : vector<32xf32> to vector<32x1xf32>
    %101 = tpu.reciprocal %100 : vector<32x1xf32> -> vector<32x1xf32>
    %102 = vector.broadcast %101 : vector<32x1xf32> to vector<32x32xf32>
    %103 = arith.mulf %98, %102 : vector<32x32xf32>
    %cst_66 = arith.constant dense<0.000000e+00> : vector<32x16xf32>
    %104 = tpu.matmul %103, %89, %cst_66 {dimension_numbers = #tpu.dot_dimension_numbers<[1], [0], [0], [1], [0, 0, 1, 1], [], []>} : vector<32x32xf32>, vector<32x16xf32>, vector<32x16xf32> -> vector<32x16xf32>
    %c0_67 = arith.constant 0 : index
    %c0_68 = arith.constant 0 : index
    %c0_69 = arith.constant 0 : index
    %c0_70 = arith.constant 0 : index
    %105 = vector.load %arg19[%c0_67, %c0_68, %c0_69, %c0_70] : memref<2x2x16x32xf32, #tpu.memory_space<vmem>>, vector<1x1x16x32xf32>
    %106 = vector.shape_cast %105 : vector<1x1x16x32xf32> to vector<16x32xf32>
    %cst_71 = arith.constant dense<0.000000e+00> : vector<32x32xf32>
    %107 = tpu.matmul %104, %106, %cst_71 {dimension_numbers = #tpu.dot_dimension_numbers<[1], [0], [0], [1], [0, 0, 1, 1], [], []>} : vector<32x16xf32>, vector<16x32xf32>, vector<32x32xf32> -> vector<32x32xf32>
    %108 = arith.addf %68, %107 : vector<32x32xf32>
    %c0_72 = arith.constant 0 : index
    %c1 = arith.constant 1 : index
    %c0_73 = arith.constant 0 : index
    %c0_74 = arith.constant 0 : index
    %109 = vector.load %arg13[%c0_72, %c1, %c0_73, %c0_74] : memref<2x2x32x16xf32, #tpu.memory_space<vmem>>, vector<1x1x32x16xf32>
    %110 = vector.shape_cast %109 : vector<1x1x32x16xf32> to vector<32x16xf32>
    %cst_75 = arith.constant dense<0.000000e+00> : vector<32x16xf32>
    %111 = tpu.matmul %66, %110, %cst_75 {dimension_numbers = #tpu.dot_dimension_numbers<[1], [0], [0], [1], [0, 0, 1, 1], [], []>} : vector<32x32xf32>, vector<32x16xf32>, vector<32x16xf32> -> vector<32x16xf32>
    %c0_76 = arith.constant 0 : index
    %c1_77 = arith.constant 1 : index
    %c0_78 = arith.constant 0 : index
    %c0_79 = arith.constant 0 : index
    %112 = vector.load %arg16[%c0_76, %c1_77, %c0_78, %c0_79] : memref<2x2x1x16xf32, #tpu.memory_space<vmem>>, vector<1x1x1x16xf32>
    %113 = vector.shape_cast %112 : vector<1x1x1x16xf32> to vector<1x16xf32>
    %114 = vector.broadcast %113 : vector<1x16xf32> to vector<32x16xf32>
    %115 = arith.addf %111, %114 : vector<32x16xf32>
    %c0_80 = arith.constant 0 : index
    %c1_81 = arith.constant 1 : index
    %c0_82 = arith.constant 0 : index
    %c0_83 = arith.constant 0 : index
    %116 = vector.load %arg14[%c0_80, %c1_81, %c0_82, %c0_83] : memref<2x2x32x16xf32, #tpu.memory_space<vmem>>, vector<1x1x32x16xf32>
    %117 = vector.shape_cast %116 : vector<1x1x32x16xf32> to vector<32x16xf32>
    %cst_84 = arith.constant dense<0.000000e+00> : vector<32x16xf32>
    %118 = tpu.matmul %66, %117, %cst_84 {dimension_numbers = #tpu.dot_dimension_numbers<[1], [0], [0], [1], [0, 0, 1, 1], [], []>} : vector<32x32xf32>, vector<32x16xf32>, vector<32x16xf32> -> vector<32x16xf32>
    %c0_85 = arith.constant 0 : index
    %c1_86 = arith.constant 1 : index
    %c0_87 = arith.constant 0 : index
    %c0_88 = arith.constant 0 : index
    %119 = vector.load %arg17[%c0_85, %c1_86, %c0_87, %c0_88] : memref<2x2x1x16xf32, #tpu.memory_space<vmem>>, vector<1x1x1x16xf32>
    %120 = vector.shape_cast %119 : vector<1x1x1x16xf32> to vector<1x16xf32>
    %121 = vector.broadcast %120 : vector<1x16xf32> to vector<32x16xf32>
    %122 = arith.addf %118, %121 : vector<32x16xf32>
    %c0_89 = arith.constant 0 : index
    %c1_90 = arith.constant 1 : index
    %c0_91 = arith.constant 0 : index
    %c0_92 = arith.constant 0 : index
    %123 = vector.load %arg15[%c0_89, %c1_90, %c0_91, %c0_92] : memref<2x2x32x16xf32, #tpu.memory_space<vmem>>, vector<1x1x32x16xf32>
    %124 = vector.shape_cast %123 : vector<1x1x32x16xf32> to vector<32x16xf32>
    %cst_93 = arith.constant dense<0.000000e+00> : vector<32x16xf32>
    %125 = tpu.matmul %66, %124, %cst_93 {dimension_numbers = #tpu.dot_dimension_numbers<[1], [0], [0], [1], [0, 0, 1, 1], [], []>} : vector<32x32xf32>, vector<32x16xf32>, vector<32x16xf32> -> vector<32x16xf32>
    %c0_94 = arith.constant 0 : index
    %c1_95 = arith.constant 1 : index
    %c0_96 = arith.constant 0 : index
    %c0_97 = arith.constant 0 : index
    %126 = vector.load %arg18[%c0_94, %c1_95, %c0_96, %c0_97] : memref<2x2x1x16xf32, #tpu.memory_space<vmem>>, vector<1x1x1x16xf32>
    %127 = vector.shape_cast %126 : vector<1x1x1x16xf32> to vector<1x16xf32>
    %128 = vector.broadcast %127 : vector<1x16xf32> to vector<32x16xf32>
    %129 = arith.addf %125, %128 : vector<32x16xf32>
    %cst_98 = arith.constant dense<0.000000e+00> : vector<32x32xf32>
    %130 = tpu.matmul %115, %122, %cst_98 {dimension_numbers = #tpu.dot_dimension_numbers<[1], [1], [0], [0], [0, 0, 1, 0], [], []>} : vector<32x16xf32>, vector<32x16xf32>, vector<32x32xf32> -> vector<32x32xf32>
    %cst_99 = arith.constant 2.500000e-01 : f32
    %131 = vector.broadcast %cst_99 : f32 to vector<32x32xf32>
    %132 = arith.mulf %130, %131 : vector<32x32xf32>
    %133 = arith.addf %132, %67 : vector<32x32xf32>
    %cst_100 = arith.constant dense<0xFF800000> : vector<32xf32>
    %134 = vector.multi_reduction <maximumf>, %133, %cst_100 [1] : vector<32x32xf32> to vector<32xf32>
    %135 = vector.shape_cast %134 : vector<32xf32> to vector<32x1xf32>
    %136 = vector.broadcast %135 : vector<32x1xf32> to vector<32x32xf32>
    %137 = arith.subf %133, %136 : vector<32x32xf32>
    %138 = math.exp %137 : vector<32x32xf32>
    %cst_101 = arith.constant dense<0.000000e+00> : vector<32xf32>
    %139 = vector.multi_reduction <add>, %138, %cst_101 [1] : vector<32x32xf32> to vector<32xf32>
    %140 = vector.shape_cast %139 : vector<32xf32> to vector<32x1xf32>
    %141 = tpu.reciprocal %140 : vector<32x1xf32> -> vector<32x1xf32>
    %142 = vector.broadcast %141 : vector<32x1xf32> to vector<32x32xf32>
    %143 = arith.mulf %138, %142 : vector<32x32xf32>
    %cst_102 = arith.constant dense<0.000000e+00> : vector<32x16xf32>
    %144 = tpu.matmul %143, %129, %cst_102 {dimension_numbers = #tpu.dot_dimension_numbers<[1], [0], [0], [1], [0, 0, 1, 1], [], []>} : vector<32x32xf32>, vector<32x16xf32>, vector<32x16xf32> -> vector<32x16xf32>
    %c0_103 = arith.constant 0 : index
    %c1_104 = arith.constant 1 : index
    %c0_105 = arith.constant 0 : index
    %c0_106 = arith.constant 0 : index
    %145 = vector.load %arg19[%c0_103, %c1_104, %c0_105, %c0_106] : memref<2x2x16x32xf32, #tpu.memory_space<vmem>>, vector<1x1x16x32xf32>
    %146 = vector.shape_cast %145 : vector<1x1x16x32xf32> to vector<16x32xf32>
    %cst_107 = arith.constant dense<0.000000e+00> : vector<32x32xf32>
    %147 = tpu.matmul %144, %146, %cst_107 {dimension_numbers = #tpu.dot_dimension_numbers<[1], [0], [0], [1], [0, 0, 1, 1], [], []>} : vector<32x16xf32>, vector<16x32xf32>, vector<32x32xf32> -> vector<32x32xf32>
    %148 = arith.addf %108, %147 : vector<32x32xf32>
    %c0_108 = arith.constant 0 : index
    %c0_109 = arith.constant 0 : index
    %c0_110 = arith.constant 0 : index
    %149 = vector.load %arg20[%c0_108, %c0_109, %c0_110] : memref<2x1x32xf32, #tpu.memory_space<vmem>>, vector<1x1x32xf32>
    %150 = vector.shape_cast %149 : vector<1x1x32xf32> to vector<1x32xf32>
    %151 = vector.broadcast %150 : vector<1x32xf32> to vector<32x32xf32>
    %152 = arith.addf %148, %151 : vector<32x32xf32>
    %153 = arith.addf %152, %66 : vector<32x32xf32>
    %c0_111 = arith.constant 0 : index
    %c0_112 = arith.constant 0 : index
    %c0_113 = arith.constant 0 : index
    %154 = vector.load %arg21[%c0_111, %c0_112, %c0_113] : memref<2x1x32xf32, #tpu.memory_space<vmem>>, vector<1x1x32xf32>
    %155 = vector.shape_cast %154 : vector<1x1x32xf32> to vector<1x32xf32>
    %c0_114 = arith.constant 0 : index
    %c0_115 = arith.constant 0 : index
    %c0_116 = arith.constant 0 : index
    %156 = vector.load %arg22[%c0_114, %c0_115, %c0_116] : memref<2x1x32xf32, #tpu.memory_space<vmem>>, vector<1x1x32xf32>
    %157 = vector.shape_cast %156 : vector<1x1x32xf32> to vector<1x32xf32>
    %cst_117 = arith.constant dense<0.000000e+00> : vector<32xf32>
    %158 = vector.multi_reduction <add>, %153, %cst_117 [1] : vector<32x32xf32> to vector<32xf32>
    %159 = vector.shape_cast %158 : vector<32xf32> to vector<32x1xf32>
    %cst_118 = arith.constant 3.200000e+01 : f32
    %160 = vector.broadcast %cst_118 : f32 to vector<32x1xf32>
    %161 = arith.divf %159, %160 : vector<32x1xf32>
    %162 = vector.broadcast %161 : vector<32x1xf32> to vector<32x32xf32>
    %163 = arith.subf %153, %162 : vector<32x32xf32>
    %164 = arith.mulf %163, %163 : vector<32x32xf32>
    %cst_119 = arith.constant dense<0.000000e+00> : vector<32xf32>
    %165 = vector.multi_reduction <add>, %164, %cst_119 [1] : vector<32x32xf32> to vector<32xf32>
    %166 = vector.shape_cast %165 : vector<32xf32> to vector<32x1xf32>
    %cst_120 = arith.constant 3.200000e+01 : f32
    %167 = vector.broadcast %cst_120 : f32 to vector<32x1xf32>
    %168 = arith.divf %166, %167 : vector<32x1xf32>
    %169 = vector.broadcast %161 : vector<32x1xf32> to vector<32x32xf32>
    %170 = arith.subf %153, %169 : vector<32x32xf32>
    %cst_121 = arith.constant 9.99999996E-13 : f32
    %171 = vector.broadcast %cst_121 : f32 to vector<32x1xf32>
    %172 = arith.addf %168, %171 : vector<32x1xf32>
    %173 = math.rsqrt %172 : vector<32x1xf32>
    %174 = vector.broadcast %173 : vector<32x1xf32> to vector<32x32xf32>
    %175 = arith.mulf %170, %174 : vector<32x32xf32>
    %176 = vector.broadcast %155 : vector<1x32xf32> to vector<32x32xf32>
    %177 = arith.mulf %175, %176 : vector<32x32xf32>
    %178 = vector.broadcast %157 : vector<1x32xf32> to vector<32x32xf32>
    %179 = arith.addf %177, %178 : vector<32x32xf32>
    %c0_122 = arith.constant 0 : index
    %c0_123 = arith.constant 0 : index
    %c0_124 = arith.constant 0 : index
    %180 = vector.load %arg23[%c0_122, %c0_123, %c0_124] : memref<2x32x64xf32, #tpu.memory_space<vmem>>, vector<1x32x64xf32>
    %181 = vector.shape_cast %180 : vector<1x32x64xf32> to vector<32x64xf32>
    %cst_125 = arith.constant dense<0.000000e+00> : vector<32x64xf32>
    %182 = tpu.matmul %179, %181, %cst_125 {dimension_numbers = #tpu.dot_dimension_numbers<[1], [0], [0], [1], [0, 0, 1, 1], [], []>} : vector<32x32xf32>, vector<32x64xf32>, vector<32x64xf32> -> vector<32x64xf32>
    %c0_126 = arith.constant 0 : index
    %c0_127 = arith.constant 0 : index
    %c0_128 = arith.constant 0 : index
    %183 = vector.load %arg24[%c0_126, %c0_127, %c0_128] : memref<2x1x64xf32, #tpu.memory_space<vmem>>, vector<1x1x64xf32>
    %184 = vector.shape_cast %183 : vector<1x1x64xf32> to vector<1x64xf32>
    %185 = vector.broadcast %184 : vector<1x64xf32> to vector<32x64xf32>
    %186 = arith.addf %182, %185 : vector<32x64xf32>
    %cst_129 = arith.constant 5.000000e-01 : f32
    %187 = vector.broadcast %cst_129 : f32 to vector<32x64xf32>
    %188 = arith.mulf %187, %186 : vector<32x64xf32>
    %cst_130 = arith.constant 4.471500e-02 : f32
    %189 = vector.broadcast %cst_130 : f32 to vector<32x64xf32>
    %190 = arith.mulf %189, %186 : vector<32x64xf32>
    %191 = arith.mulf %190, %186 : vector<32x64xf32>
    %192 = arith.mulf %191, %186 : vector<32x64xf32>
    %193 = arith.addf %186, %192 : vector<32x64xf32>
    %cst_131 = arith.constant 0.797884583 : f32
    %194 = vector.broadcast %cst_131 : f32 to vector<32x64xf32>
    %195 = arith.mulf %194, %193 : vector<32x64xf32>
    %196 = math.tanh %195 : vector<32x64xf32>
    %cst_132 = arith.constant 1.000000e+00 : f32
    %197 = vector.broadcast %cst_132 : f32 to vector<32x64xf32>
    %198 = arith.addf %197, %196 : vector<32x64xf32>
    %199 = arith.mulf %188, %198 : vector<32x64xf32>
    %c0_133 = arith.constant 0 : index
    %c0_134 = arith.constant 0 : index
    %c0_135 = arith.constant 0 : index
    %200 = vector.load %arg25[%c0_133, %c0_134, %c0_135] : memref<2x64x32xf32, #tpu.memory_space<vmem>>, vector<1x64x32xf32>
    %201 = vector.shape_cast %200 : vector<1x64x32xf32> to vector<64x32xf32>
    %cst_136 = arith.constant dense<0.000000e+00> : vector<32x32xf32>
    %202 = tpu.matmul %199, %201, %cst_136 {dimension_numbers = #tpu.dot_dimension_numbers<[1], [0], [0], [1], [0, 0, 1, 1], [], []>} : vector<32x64xf32>, vector<64x32xf32>, vector<32x32xf32> -> vector<32x32xf32>
    %c0_137 = arith.constant 0 : index
    %c0_138 = arith.constant 0 : index
    %c0_139 = arith.constant 0 : index
    %203 = vector.load %arg26[%c0_137, %c0_138, %c0_139] : memref<2x1x32xf32, #tpu.memory_space<vmem>>, vector<1x1x32xf32>
    %204 = vector.shape_cast %203 : vector<1x1x32xf32> to vector<1x32xf32>
    %205 = vector.broadcast %204 : vector<1x32xf32> to vector<32x32xf32>
    %206 = arith.addf %202, %205 : vector<32x32xf32>
    %207 = arith.addf %206, %179 : vector<32x32xf32>
    %c0_140 = arith.constant 0 : index
    %c0_141 = arith.constant 0 : index
    %c0_142 = arith.constant 0 : index
    %208 = vector.load %arg27[%c0_140, %c0_141, %c0_142] : memref<2x1x32xf32, #tpu.memory_space<vmem>>, vector<1x1x32xf32>
    %209 = vector.shape_cast %208 : vector<1x1x32xf32> to vector<1x32xf32>
    %c0_143 = arith.constant 0 : index
    %c0_144 = arith.constant 0 : index
    %c0_145 = arith.constant 0 : index
    %210 = vector.load %arg28[%c0_143, %c0_144, %c0_145] : memref<2x1x32xf32, #tpu.memory_space<vmem>>, vector<1x1x32xf32>
    %211 = vector.shape_cast %210 : vector<1x1x32xf32> to vector<1x32xf32>
    %cst_146 = arith.constant dense<0.000000e+00> : vector<32xf32>
    %212 = vector.multi_reduction <add>, %207, %cst_146 [1] : vector<32x32xf32> to vector<32xf32>
    %213 = vector.shape_cast %212 : vector<32xf32> to vector<32x1xf32>
    %cst_147 = arith.constant 3.200000e+01 : f32
    %214 = vector.broadcast %cst_147 : f32 to vector<32x1xf32>
    %215 = arith.divf %213, %214 : vector<32x1xf32>
    %216 = vector.broadcast %215 : vector<32x1xf32> to vector<32x32xf32>
    %217 = arith.subf %207, %216 : vector<32x32xf32>
    %218 = arith.mulf %217, %217 : vector<32x32xf32>
    %cst_148 = arith.constant dense<0.000000e+00> : vector<32xf32>
    %219 = vector.multi_reduction <add>, %218, %cst_148 [1] : vector<32x32xf32> to vector<32xf32>
    %220 = vector.shape_cast %219 : vector<32xf32> to vector<32x1xf32>
    %cst_149 = arith.constant 3.200000e+01 : f32
    %221 = vector.broadcast %cst_149 : f32 to vector<32x1xf32>
    %222 = arith.divf %220, %221 : vector<32x1xf32>
    %223 = vector.broadcast %215 : vector<32x1xf32> to vector<32x32xf32>
    %224 = arith.subf %207, %223 : vector<32x32xf32>
    %cst_150 = arith.constant 9.99999996E-13 : f32
    %225 = vector.broadcast %cst_150 : f32 to vector<32x1xf32>
    %226 = arith.addf %222, %225 : vector<32x1xf32>
    %227 = math.rsqrt %226 : vector<32x1xf32>
    %228 = vector.broadcast %227 : vector<32x1xf32> to vector<32x32xf32>
    %229 = arith.mulf %224, %228 : vector<32x32xf32>
    %230 = vector.broadcast %209 : vector<1x32xf32> to vector<32x32xf32>
    %231 = arith.mulf %229, %230 : vector<32x32xf32>
    %232 = vector.broadcast %211 : vector<1x32xf32> to vector<32x32xf32>
    %233 = arith.addf %231, %232 : vector<32x32xf32>
    %cst_151 = arith.constant 0.000000e+00 : f32
    %234 = vector.broadcast %cst_151 : f32 to vector<32x32xf32>
    %c1_152 = arith.constant 1 : index
    %c0_153 = arith.constant 0 : index
    %c0_154 = arith.constant 0 : index
    %c0_155 = arith.constant 0 : index
    %235 = vector.load %arg13[%c1_152, %c0_153, %c0_154, %c0_155] : memref<2x2x32x16xf32, #tpu.memory_space<vmem>>, vector<1x1x32x16xf32>
    %236 = vector.shape_cast %235 : vector<1x1x32x16xf32> to vector<32x16xf32>
    %cst_156 = arith.constant dense<0.000000e+00> : vector<32x16xf32>
    %237 = tpu.matmul %233, %236, %cst_156 {dimension_numbers = #tpu.dot_dimension_numbers<[1], [0], [0], [1], [0, 0, 1, 1], [], []>} : vector<32x32xf32>, vector<32x16xf32>, vector<32x16xf32> -> vector<32x16xf32>
    %c1_157 = arith.constant 1 : index
    %c0_158 = arith.constant 0 : index
    %c0_159 = arith.constant 0 : index
    %c0_160 = arith.constant 0 : index
    %238 = vector.load %arg16[%c1_157, %c0_158, %c0_159, %c0_160] : memref<2x2x1x16xf32, #tpu.memory_space<vmem>>, vector<1x1x1x16xf32>
    %239 = vector.shape_cast %238 : vector<1x1x1x16xf32> to vector<1x16xf32>
    %240 = vector.broadcast %239 : vector<1x16xf32> to vector<32x16xf32>
    %241 = arith.addf %237, %240 : vector<32x16xf32>
    %c1_161 = arith.constant 1 : index
    %c0_162 = arith.constant 0 : index
    %c0_163 = arith.constant 0 : index
    %c0_164 = arith.constant 0 : index
    %242 = vector.load %arg14[%c1_161, %c0_162, %c0_163, %c0_164] : memref<2x2x32x16xf32, #tpu.memory_space<vmem>>, vector<1x1x32x16xf32>
    %243 = vector.shape_cast %242 : vector<1x1x32x16xf32> to vector<32x16xf32>
    %cst_165 = arith.constant dense<0.000000e+00> : vector<32x16xf32>
    %244 = tpu.matmul %233, %243, %cst_165 {dimension_numbers = #tpu.dot_dimension_numbers<[1], [0], [0], [1], [0, 0, 1, 1], [], []>} : vector<32x32xf32>, vector<32x16xf32>, vector<32x16xf32> -> vector<32x16xf32>
    %c1_166 = arith.constant 1 : index
    %c0_167 = arith.constant 0 : index
    %c0_168 = arith.constant 0 : index
    %c0_169 = arith.constant 0 : index
    %245 = vector.load %arg17[%c1_166, %c0_167, %c0_168, %c0_169] : memref<2x2x1x16xf32, #tpu.memory_space<vmem>>, vector<1x1x1x16xf32>
    %246 = vector.shape_cast %245 : vector<1x1x1x16xf32> to vector<1x16xf32>
    %247 = vector.broadcast %246 : vector<1x16xf32> to vector<32x16xf32>
    %248 = arith.addf %244, %247 : vector<32x16xf32>
    %c1_170 = arith.constant 1 : index
    %c0_171 = arith.constant 0 : index
    %c0_172 = arith.constant 0 : index
    %c0_173 = arith.constant 0 : index
    %249 = vector.load %arg15[%c1_170, %c0_171, %c0_172, %c0_173] : memref<2x2x32x16xf32, #tpu.memory_space<vmem>>, vector<1x1x32x16xf32>
    %250 = vector.shape_cast %249 : vector<1x1x32x16xf32> to vector<32x16xf32>
    %cst_174 = arith.constant dense<0.000000e+00> : vector<32x16xf32>
    %251 = tpu.matmul %233, %250, %cst_174 {dimension_numbers = #tpu.dot_dimension_numbers<[1], [0], [0], [1], [0, 0, 1, 1], [], []>} : vector<32x32xf32>, vector<32x16xf32>, vector<32x16xf32> -> vector<32x16xf32>
    %c1_175 = arith.constant 1 : index
    %c0_176 = arith.constant 0 : index
    %c0_177 = arith.constant 0 : index
    %c0_178 = arith.constant 0 : index
    %252 = vector.load %arg18[%c1_175, %c0_176, %c0_177, %c0_178] : memref<2x2x1x16xf32, #tpu.memory_space<vmem>>, vector<1x1x1x16xf32>
    %253 = vector.shape_cast %252 : vector<1x1x1x16xf32> to vector<1x16xf32>
    %254 = vector.broadcast %253 : vector<1x16xf32> to vector<32x16xf32>
    %255 = arith.addf %251, %254 : vector<32x16xf32>
    %cst_179 = arith.constant dense<0.000000e+00> : vector<32x32xf32>
    %256 = tpu.matmul %241, %248, %cst_179 {dimension_numbers = #tpu.dot_dimension_numbers<[1], [1], [0], [0], [0, 0, 1, 0], [], []>} : vector<32x16xf32>, vector<32x16xf32>, vector<32x32xf32> -> vector<32x32xf32>
    %cst_180 = arith.constant 2.500000e-01 : f32
    %257 = vector.broadcast %cst_180 : f32 to vector<32x32xf32>
    %258 = arith.mulf %256, %257 : vector<32x32xf32>
    %259 = arith.addf %258, %67 : vector<32x32xf32>
    %cst_181 = arith.constant dense<0xFF800000> : vector<32xf32>
    %260 = vector.multi_reduction <maximumf>, %259, %cst_181 [1] : vector<32x32xf32> to vector<32xf32>
    %261 = vector.shape_cast %260 : vector<32xf32> to vector<32x1xf32>
    %262 = vector.broadcast %261 : vector<32x1xf32> to vector<32x32xf32>
    %263 = arith.subf %259, %262 : vector<32x32xf32>
    %264 = math.exp %263 : vector<32x32xf32>
    %cst_182 = arith.constant dense<0.000000e+00> : vector<32xf32>
    %265 = vector.multi_reduction <add>, %264, %cst_182 [1] : vector<32x32xf32> to vector<32xf32>
    %266 = vector.shape_cast %265 : vector<32xf32> to vector<32x1xf32>
    %267 = tpu.reciprocal %266 : vector<32x1xf32> -> vector<32x1xf32>
    %268 = vector.broadcast %267 : vector<32x1xf32> to vector<32x32xf32>
    %269 = arith.mulf %264, %268 : vector<32x32xf32>
    %cst_183 = arith.constant dense<0.000000e+00> : vector<32x16xf32>
    %270 = tpu.matmul %269, %255, %cst_183 {dimension_numbers = #tpu.dot_dimension_numbers<[1], [0], [0], [1], [0, 0, 1, 1], [], []>} : vector<32x32xf32>, vector<32x16xf32>, vector<32x16xf32> -> vector<32x16xf32>
    %c1_184 = arith.constant 1 : index
    %c0_185 = arith.constant 0 : index
    %c0_186 = arith.constant 0 : index
    %c0_187 = arith.constant 0 : index
    %271 = vector.load %arg19[%c1_184, %c0_185, %c0_186, %c0_187] : memref<2x2x16x32xf32, #tpu.memory_space<vmem>>, vector<1x1x16x32xf32>
    %272 = vector.shape_cast %271 : vector<1x1x16x32xf32> to vector<16x32xf32>
    %cst_188 = arith.constant dense<0.000000e+00> : vector<32x32xf32>
    %273 = tpu.matmul %270, %272, %cst_188 {dimension_numbers = #tpu.dot_dimension_numbers<[1], [0], [0], [1], [0, 0, 1, 1], [], []>} : vector<32x16xf32>, vector<16x32xf32>, vector<32x32xf32> -> vector<32x32xf32>
    %274 = arith.addf %234, %273 : vector<32x32xf32>
    %c1_189 = arith.constant 1 : index
    %c1_190 = arith.constant 1 : index
    %c0_191 = arith.constant 0 : index
    %c0_192 = arith.constant 0 : index
    %275 = vector.load %arg13[%c1_189, %c1_190, %c0_191, %c0_192] : memref<2x2x32x16xf32, #tpu.memory_space<vmem>>, vector<1x1x32x16xf32>
    %276 = vector.shape_cast %275 : vector<1x1x32x16xf32> to vector<32x16xf32>
    %cst_193 = arith.constant dense<0.000000e+00> : vector<32x16xf32>
    %277 = tpu.matmul %233, %276, %cst_193 {dimension_numbers = #tpu.dot_dimension_numbers<[1], [0], [0], [1], [0, 0, 1, 1], [], []>} : vector<32x32xf32>, vector<32x16xf32>, vector<32x16xf32> -> vector<32x16xf32>
    %c1_194 = arith.constant 1 : index
    %c1_195 = arith.constant 1 : index
    %c0_196 = arith.constant 0 : index
    %c0_197 = arith.constant 0 : index
    %278 = vector.load %arg16[%c1_194, %c1_195, %c0_196, %c0_197] : memref<2x2x1x16xf32, #tpu.memory_space<vmem>>, vector<1x1x1x16xf32>
    %279 = vector.shape_cast %278 : vector<1x1x1x16xf32> to vector<1x16xf32>
    %280 = vector.broadcast %279 : vector<1x16xf32> to vector<32x16xf32>
    %281 = arith.addf %277, %280 : vector<32x16xf32>
    %c1_198 = arith.constant 1 : index
    %c1_199 = arith.constant 1 : index
    %c0_200 = arith.constant 0 : index
    %c0_201 = arith.constant 0 : index
    %282 = vector.load %arg14[%c1_198, %c1_199, %c0_200, %c0_201] : memref<2x2x32x16xf32, #tpu.memory_space<vmem>>, vector<1x1x32x16xf32>
    %283 = vector.shape_cast %282 : vector<1x1x32x16xf32> to vector<32x16xf32>
    %cst_202 = arith.constant dense<0.000000e+00> : vector<32x16xf32>
    %284 = tpu.matmul %233, %283, %cst_202 {dimension_numbers = #tpu.dot_dimension_numbers<[1], [0], [0], [1], [0, 0, 1, 1], [], []>} : vector<32x32xf32>, vector<32x16xf32>, vector<32x16xf32> -> vector<32x16xf32>
    %c1_203 = arith.constant 1 : index
    %c1_204 = arith.constant 1 : index
    %c0_205 = arith.constant 0 : index
    %c0_206 = arith.constant 0 : index
    %285 = vector.load %arg17[%c1_203, %c1_204, %c0_205, %c0_206] : memref<2x2x1x16xf32, #tpu.memory_space<vmem>>, vector<1x1x1x16xf32>
    %286 = vector.shape_cast %285 : vector<1x1x1x16xf32> to vector<1x16xf32>
    %287 = vector.broadcast %286 : vector<1x16xf32> to vector<32x16xf32>
    %288 = arith.addf %284, %287 : vector<32x16xf32>
    %c1_207 = arith.constant 1 : index
    %c1_208 = arith.constant 1 : index
    %c0_209 = arith.constant 0 : index
    %c0_210 = arith.constant 0 : index
    %289 = vector.load %arg15[%c1_207, %c1_208, %c0_209, %c0_210] : memref<2x2x32x16xf32, #tpu.memory_space<vmem>>, vector<1x1x32x16xf32>
    %290 = vector.shape_cast %289 : vector<1x1x32x16xf32> to vector<32x16xf32>
    %cst_211 = arith.constant dense<0.000000e+00> : vector<32x16xf32>
    %291 = tpu.matmul %233, %290, %cst_211 {dimension_numbers = #tpu.dot_dimension_numbers<[1], [0], [0], [1], [0, 0, 1, 1], [], []>} : vector<32x32xf32>, vector<32x16xf32>, vector<32x16xf32> -> vector<32x16xf32>
    %c1_212 = arith.constant 1 : index
    %c1_213 = arith.constant 1 : index
    %c0_214 = arith.constant 0 : index
    %c0_215 = arith.constant 0 : index
    %292 = vector.load %arg18[%c1_212, %c1_213, %c0_214, %c0_215] : memref<2x2x1x16xf32, #tpu.memory_space<vmem>>, vector<1x1x1x16xf32>
    %293 = vector.shape_cast %292 : vector<1x1x1x16xf32> to vector<1x16xf32>
    %294 = vector.broadcast %293 : vector<1x16xf32> to vector<32x16xf32>
    %295 = arith.addf %291, %294 : vector<32x16xf32>
    %cst_216 = arith.constant dense<0.000000e+00> : vector<32x32xf32>
    %296 = tpu.matmul %281, %288, %cst_216 {dimension_numbers = #tpu.dot_dimension_numbers<[1], [1], [0], [0], [0, 0, 1, 0], [], []>} : vector<32x16xf32>, vector<32x16xf32>, vector<32x32xf32> -> vector<32x32xf32>
    %cst_217 = arith.constant 2.500000e-01 : f32
    %297 = vector.broadcast %cst_217 : f32 to vector<32x32xf32>
    %298 = arith.mulf %296, %297 : vector<32x32xf32>
    %299 = arith.addf %298, %67 : vector<32x32xf32>
    %cst_218 = arith.constant dense<0xFF800000> : vector<32xf32>
    %300 = vector.multi_reduction <maximumf>, %299, %cst_218 [1] : vector<32x32xf32> to vector<32xf32>
    %301 = vector.shape_cast %300 : vector<32xf32> to vector<32x1xf32>
    %302 = vector.broadcast %301 : vector<32x1xf32> to vector<32x32xf32>
    %303 = arith.subf %299, %302 : vector<32x32xf32>
    %304 = math.exp %303 : vector<32x32xf32>
    %cst_219 = arith.constant dense<0.000000e+00> : vector<32xf32>
    %305 = vector.multi_reduction <add>, %304, %cst_219 [1] : vector<32x32xf32> to vector<32xf32>
    %306 = vector.shape_cast %305 : vector<32xf32> to vector<32x1xf32>
    %307 = tpu.reciprocal %306 : vector<32x1xf32> -> vector<32x1xf32>
    %308 = vector.broadcast %307 : vector<32x1xf32> to vector<32x32xf32>
    %309 = arith.mulf %304, %308 : vector<32x32xf32>
    %cst_220 = arith.constant dense<0.000000e+00> : vector<32x16xf32>
    %310 = tpu.matmul %309, %295, %cst_220 {dimension_numbers = #tpu.dot_dimension_numbers<[1], [0], [0], [1], [0, 0, 1, 1], [], []>} : vector<32x32xf32>, vector<32x16xf32>, vector<32x16xf32> -> vector<32x16xf32>
    %c1_221 = arith.constant 1 : index
    %c1_222 = arith.constant 1 : index
    %c0_223 = arith.constant 0 : index
    %c0_224 = arith.constant 0 : index
    %311 = vector.load %arg19[%c1_221, %c1_222, %c0_223, %c0_224] : memref<2x2x16x32xf32, #tpu.memory_space<vmem>>, vector<1x1x16x32xf32>
    %312 = vector.shape_cast %311 : vector<1x1x16x32xf32> to vector<16x32xf32>
    %cst_225 = arith.constant dense<0.000000e+00> : vector<32x32xf32>
    %313 = tpu.matmul %310, %312, %cst_225 {dimension_numbers = #tpu.dot_dimension_numbers<[1], [0], [0], [1], [0, 0, 1, 1], [], []>} : vector<32x16xf32>, vector<16x32xf32>, vector<32x32xf32> -> vector<32x32xf32>
    %314 = arith.addf %274, %313 : vector<32x32xf32>
    %c1_226 = arith.constant 1 : index
    %c0_227 = arith.constant 0 : index
    %c0_228 = arith.constant 0 : index
    %315 = vector.load %arg20[%c1_226, %c0_227, %c0_228] : memref<2x1x32xf32, #tpu.memory_space<vmem>>, vector<1x1x32xf32>
    %316 = vector.shape_cast %315 : vector<1x1x32xf32> to vector<1x32xf32>
    %317 = vector.broadcast %316 : vector<1x32xf32> to vector<32x32xf32>
    %318 = arith.addf %314, %317 : vector<32x32xf32>
    %319 = arith.addf %318, %233 : vector<32x32xf32>
    %c1_229 = arith.constant 1 : index
    %c0_230 = arith.constant 0 : index
    %c0_231 = arith.constant 0 : index
    %320 = vector.load %arg21[%c1_229, %c0_230, %c0_231] : memref<2x1x32xf32, #tpu.memory_space<vmem>>, vector<1x1x32xf32>
    %321 = vector.shape_cast %320 : vector<1x1x32xf32> to vector<1x32xf32>
    %c1_232 = arith.constant 1 : index
    %c0_233 = arith.constant 0 : index
    %c0_234 = arith.constant 0 : index
    %322 = vector.load %arg22[%c1_232, %c0_233, %c0_234] : memref<2x1x32xf32, #tpu.memory_space<vmem>>, vector<1x1x32xf32>
    %323 = vector.shape_cast %322 : vector<1x1x32xf32> to vector<1x32xf32>
    %cst_235 = arith.constant dense<0.000000e+00> : vector<32xf32>
    %324 = vector.multi_reduction <add>, %319, %cst_235 [1] : vector<32x32xf32> to vector<32xf32>
    %325 = vector.shape_cast %324 : vector<32xf32> to vector<32x1xf32>
    %cst_236 = arith.constant 3.200000e+01 : f32
    %326 = vector.broadcast %cst_236 : f32 to vector<32x1xf32>
    %327 = arith.divf %325, %326 : vector<32x1xf32>
    %328 = vector.broadcast %327 : vector<32x1xf32> to vector<32x32xf32>
    %329 = arith.subf %319, %328 : vector<32x32xf32>
    %330 = arith.mulf %329, %329 : vector<32x32xf32>
    %cst_237 = arith.constant dense<0.000000e+00> : vector<32xf32>
    %331 = vector.multi_reduction <add>, %330, %cst_237 [1] : vector<32x32xf32> to vector<32xf32>
    %332 = vector.shape_cast %331 : vector<32xf32> to vector<32x1xf32>
    %cst_238 = arith.constant 3.200000e+01 : f32
    %333 = vector.broadcast %cst_238 : f32 to vector<32x1xf32>
    %334 = arith.divf %332, %333 : vector<32x1xf32>
    %335 = vector.broadcast %327 : vector<32x1xf32> to vector<32x32xf32>
    %336 = arith.subf %319, %335 : vector<32x32xf32>
    %cst_239 = arith.constant 9.99999996E-13 : f32
    %337 = vector.broadcast %cst_239 : f32 to vector<32x1xf32>
    %338 = arith.addf %334, %337 : vector<32x1xf32>
    %339 = math.rsqrt %338 : vector<32x1xf32>
    %340 = vector.broadcast %339 : vector<32x1xf32> to vector<32x32xf32>
    %341 = arith.mulf %336, %340 : vector<32x32xf32>
    %342 = vector.broadcast %321 : vector<1x32xf32> to vector<32x32xf32>
    %343 = arith.mulf %341, %342 : vector<32x32xf32>
    %344 = vector.broadcast %323 : vector<1x32xf32> to vector<32x32xf32>
    %345 = arith.addf %343, %344 : vector<32x32xf32>
    %c1_240 = arith.constant 1 : index
    %c0_241 = arith.constant 0 : index
    %c0_242 = arith.constant 0 : index
    %346 = vector.load %arg23[%c1_240, %c0_241, %c0_242] : memref<2x32x64xf32, #tpu.memory_space<vmem>>, vector<1x32x64xf32>
    %347 = vector.shape_cast %346 : vector<1x32x64xf32> to vector<32x64xf32>
    %cst_243 = arith.constant dense<0.000000e+00> : vector<32x64xf32>
    %348 = tpu.matmul %345, %347, %cst_243 {dimension_numbers = #tpu.dot_dimension_numbers<[1], [0], [0], [1], [0, 0, 1, 1], [], []>} : vector<32x32xf32>, vector<32x64xf32>, vector<32x64xf32> -> vector<32x64xf32>
    %c1_244 = arith.constant 1 : index
    %c0_245 = arith.constant 0 : index
    %c0_246 = arith.constant 0 : index
    %349 = vector.load %arg24[%c1_244, %c0_245, %c0_246] : memref<2x1x64xf32, #tpu.memory_space<vmem>>, vector<1x1x64xf32>
    %350 = vector.shape_cast %349 : vector<1x1x64xf32> to vector<1x64xf32>
    %351 = vector.broadcast %350 : vector<1x64xf32> to vector<32x64xf32>
    %352 = arith.addf %348, %351 : vector<32x64xf32>
    %cst_247 = arith.constant 5.000000e-01 : f32
    %353 = vector.broadcast %cst_247 : f32 to vector<32x64xf32>
    %354 = arith.mulf %353, %352 : vector<32x64xf32>
    %cst_248 = arith.constant 4.471500e-02 : f32
    %355 = vector.broadcast %cst_248 : f32 to vector<32x64xf32>
    %356 = arith.mulf %355, %352 : vector<32x64xf32>
    %357 = arith.mulf %356, %352 : vector<32x64xf32>
    %358 = arith.mulf %357, %352 : vector<32x64xf32>
    %359 = arith.addf %352, %358 : vector<32x64xf32>
    %cst_249 = arith.constant 0.797884583 : f32
    %360 = vector.broadcast %cst_249 : f32 to vector<32x64xf32>
    %361 = arith.mulf %360, %359 : vector<32x64xf32>
    %362 = math.tanh %361 : vector<32x64xf32>
    %cst_250 = arith.constant 1.000000e+00 : f32
    %363 = vector.broadcast %cst_250 : f32 to vector<32x64xf32>
    %364 = arith.addf %363, %362 : vector<32x64xf32>
    %365 = arith.mulf %354, %364 : vector<32x64xf32>
    %c1_251 = arith.constant 1 : index
    %c0_252 = arith.constant 0 : index
    %c0_253 = arith.constant 0 : index
    %366 = vector.load %arg25[%c1_251, %c0_252, %c0_253] : memref<2x64x32xf32, #tpu.memory_space<vmem>>, vector<1x64x32xf32>
    %367 = vector.shape_cast %366 : vector<1x64x32xf32> to vector<64x32xf32>
    %cst_254 = arith.constant dense<0.000000e+00> : vector<32x32xf32>
    %368 = tpu.matmul %365, %367, %cst_254 {dimension_numbers = #tpu.dot_dimension_numbers<[1], [0], [0], [1], [0, 0, 1, 1], [], []>} : vector<32x64xf32>, vector<64x32xf32>, vector<32x32xf32> -> vector<32x32xf32>
    %c1_255 = arith.constant 1 : index
    %c0_256 = arith.constant 0 : index
    %c0_257 = arith.constant 0 : index
    %369 = vector.load %arg26[%c1_255, %c0_256, %c0_257] : memref<2x1x32xf32, #tpu.memory_space<vmem>>, vector<1x1x32xf32>
    %370 = vector.shape_cast %369 : vector<1x1x32xf32> to vector<1x32xf32>
    %371 = vector.broadcast %370 : vector<1x32xf32> to vector<32x32xf32>
    %372 = arith.addf %368, %371 : vector<32x32xf32>
    %373 = arith.addf %372, %345 : vector<32x32xf32>
    %c1_258 = arith.constant 1 : index
    %c0_259 = arith.constant 0 : index
    %c0_260 = arith.constant 0 : index
    %374 = vector.load %arg27[%c1_258, %c0_259, %c0_260] : memref<2x1x32xf32, #tpu.memory_space<vmem>>, vector<1x1x32xf32>
    %375 = vector.shape_cast %374 : vector<1x1x32xf32> to vector<1x32xf32>
    %c1_261 = arith.constant 1 : index
    %c0_262 = arith.constant 0 : index
    %c0_263 = arith.constant 0 : index
    %376 = vector.load %arg28[%c1_261, %c0_262, %c0_263] : memref<2x1x32xf32, #tpu.memory_space<vmem>>, vector<1x1x32xf32>
    %377 = vector.shape_cast %376 : vector<1x1x32xf32> to vector<1x32xf32>
    %cst_264 = arith.constant dense<0.000000e+00> : vector<32xf32>
    %378 = vector.multi_reduction <add>, %373, %cst_264 [1] : vector<32x32xf32> to vector<32xf32>
    %379 = vector.shape_cast %378 : vector<32xf32> to vector<32x1xf32>
    %cst_265 = arith.constant 3.200000e+01 : f32
    %380 = vector.broadcast %cst_265 : f32 to vector<32x1xf32>
    %381 = arith.divf %379, %380 : vector<32x1xf32>
    %382 = vector.broadcast %381 : vector<32x1xf32> to vector<32x32xf32>
    %383 = arith.subf %373, %382 : vector<32x32xf32>
    %384 = arith.mulf %383, %383 : vector<32x32xf32>
    %cst_266 = arith.constant dense<0.000000e+00> : vector<32xf32>
    %385 = vector.multi_reduction <add>, %384, %cst_266 [1] : vector<32x32xf32> to vector<32xf32>
    %386 = vector.shape_cast %385 : vector<32xf32> to vector<32x1xf32>
    %cst_267 = arith.constant 3.200000e+01 : f32
    %387 = vector.broadcast %cst_267 : f32 to vector<32x1xf32>
    %388 = arith.divf %386, %387 : vector<32x1xf32>
    %389 = vector.broadcast %381 : vector<32x1xf32> to vector<32x32xf32>
    %390 = arith.subf %373, %389 : vector<32x32xf32>
    %cst_268 = arith.constant 9.99999996E-13 : f32
    %391 = vector.broadcast %cst_268 : f32 to vector<32x1xf32>
    %392 = arith.addf %388, %391 : vector<32x1xf32>
    %393 = math.rsqrt %392 : vector<32x1xf32>
    %394 = vector.broadcast %393 : vector<32x1xf32> to vector<32x32xf32>
    %395 = arith.mulf %390, %394 : vector<32x32xf32>
    %396 = vector.broadcast %375 : vector<1x32xf32> to vector<32x32xf32>
    %397 = arith.mulf %395, %396 : vector<32x32xf32>
    %398 = vector.broadcast %377 : vector<1x32xf32> to vector<32x32xf32>
    %399 = arith.addf %397, %398 : vector<32x32xf32>
    %c0_269 = arith.constant 0 : index
    %c0_270 = arith.constant 0 : index
    %400 = vector.load %arg29[%c0_269, %c0_270] : memref<4x32xf32, #tpu.memory_space<vmem>>, vector<4x32xf32>
    %cst_271 = arith.constant dense<0.000000e+00> : vector<4x32xf32>
    %401 = tpu.matmul %400, %399, %cst_271 {dimension_numbers = #tpu.dot_dimension_numbers<[1], [0], [0], [1], [0, 0, 1, 1], [], []>} : vector<4x32xf32>, vector<32x32xf32>, vector<4x32xf32> -> vector<4x32xf32>
    %c0_272 = arith.constant 0 : index
    %c0_273 = arith.constant 0 : index
    %402 = vector.load %arg30[%c0_272, %c0_273] : memref<32x256xf32, #tpu.memory_space<vmem>>, vector<32x256xf32>
    %cst_274 = arith.constant dense<0.000000e+00> : vector<4x256xf32>
    %403 = tpu.matmul %401, %402, %cst_274 {dimension_numbers = #tpu.dot_dimension_numbers<[1], [0], [0], [1], [0, 0, 1, 1], [], []>} : vector<4x32xf32>, vector<32x256xf32>, vector<4x256xf32> -> vector<4x256xf32>
    %c0_275 = arith.constant 0 : index
    %c0_276 = arith.constant 0 : index
    %404 = vector.load %arg31[%c0_275, %c0_276] : memref<1x256xf32, #tpu.memory_space<vmem>>, vector<1x256xf32>
    %405 = vector.broadcast %404 : vector<1x256xf32> to vector<4x256xf32>
    %406 = arith.addf %403, %405 : vector<4x256xf32>
    %407 = vector.extract_strided_slice %406 {offsets = [2, 0], sizes = [2, 256], strides = [1, 1]} : vector<4x256xf32> to vector<2x256xf32>
    %cst_277 = arith.constant 0.000000e+00 : f32
    %408 = vector.broadcast %cst_277 : f32 to vector<2x256xf32>
    %409 = arith.maximumf %407, %408 : vector<2x256xf32>
    %c0_278 = arith.constant 0 : index
    %c0_279 = arith.constant 0 : index
    %410 = vector.load %arg32[%c0_278, %c0_279] : memref<256x256xf32, #tpu.memory_space<vmem>>, vector<256x256xf32>
    %cst_280 = arith.constant dense<0.000000e+00> : vector<2x256xf32>
    %411 = tpu.matmul %409, %410, %cst_280 {dimension_numbers = #tpu.dot_dimension_numbers<[1], [0], [0], [1], [0, 0, 1, 1], [], []>} : vector<2x256xf32>, vector<256x256xf32>, vector<2x256xf32> -> vector<2x256xf32>
    %c0_281 = arith.constant 0 : index
    %c0_282 = arith.constant 0 : index
    %412 = vector.load %arg33[%c0_281, %c0_282] : memref<1x256xf32, #tpu.memory_space<vmem>>, vector<1x256xf32>
    %413 = vector.broadcast %412 : vector<1x256xf32> to vector<2x256xf32>
    %414 = arith.addf %411, %413 : vector<2x256xf32>
    %415 = vector.extract_strided_slice %406 {offsets = [0, 0], sizes = [2, 256], strides = [1, 1]} : vector<4x256xf32> to vector<2x256xf32>
    %416 = tpu.concatenate %415, %414 in 0 : vector<2x256xf32>, vector<2x256xf32> -> vector<4x256xf32>
    %c0_283 = arith.constant 0 : index
    %c0_284 = arith.constant 0 : index
    %c0_285 = arith.constant 0 : index
    %417 = vector.load %arg34[%c0_283, %c0_284, %c0_285] : memref<1x4x256xf32, #tpu.memory_space<vmem>>, vector<1x4x256xf32>
    %418 = vector.shape_cast %417 : vector<1x4x256xf32> to vector<4x256xf32>
    %419 = vector.shape_cast %416 : vector<4x256xf32> to vector<1x4x256xf32>
    tpu.vector_store %arg34[%c0_283, %c0_284, %c0_285], %419 {strides = array<i32>} : memref<1x4x256xf32, #tpu.memory_space<vmem>>, vector<1x4x256xf32>,
    return
  }
  func.func @transform_0(%arg0: i32) -> (i32, i32) {
    %c0_i32 = arith.constant 0 : i32
    %c0_i32_0 = arith.constant 0 : i32
    return %arg0, %c0_i32 : i32, i32
  }
  func.func @transform_1(%arg0: i32) -> (i32, i32) {
    %c0_i32 = arith.constant 0 : i32
    %c0_i32_0 = arith.constant 0 : i32
    return %arg0, %c0_i32 : i32, i32
  }
  func.func @transform_2(%arg0: i32) -> (i32, i32) {
    %c0_i32 = arith.constant 0 : i32
    %c0_i32_0 = arith.constant 0 : i32
    return %arg0, %c0_i32 : i32, i32
  }
  func.func @transform_3(%arg0: i32) -> (i32, i32) {
    %c0_i32 = arith.constant 0 : i32
    %c0_i32_0 = arith.constant 0 : i32
    %c0_i32_1 = arith.constant 0 : i32
    return %c0_i32, %c0_i32_0 : i32, i32
  }
  func.func @transform_4(%arg0: i32) -> (i32, i32) {
    %c0_i32 = arith.constant 0 : i32
    %c0_i32_0 = arith.constant 0 : i32
    %c0_i32_1 = arith.constant 0 : i32
    return %c0_i32, %c0_i32_0 : i32, i32
  }
  func.func @transform_5(%arg0: i32) -> (i32, i32) {
    %c0_i32 = arith.constant 0 : i32
    %c0_i32_0 = arith.constant 0 : i32
    %c0_i32_1 = arith.constant 0 : i32
    return %c0_i32, %c0_i32_0 : i32, i32
  }
  func.func @transform_6(%arg0: i32) -> (i32, i32) {
    %c0_i32 = arith.constant 0 : i32
    %c0_i32_0 = arith.constant 0 : i32
    %c0_i32_1 = arith.constant 0 : i32
    return %c0_i32, %c0_i32_0 : i32, i32
  }
  func.func @transform_7(%arg0: i32) -> (i32, i32) {
    %c0_i32 = arith.constant 0 : i32
    %c0_i32_0 = arith.constant 0 : i32
    %c0_i32_1 = arith.constant 0 : i32
    return %c0_i32, %c0_i32_0 : i32, i32
  }
  func.func @transform_8(%arg0: i32) -> (i32, i32) {
    %c0_i32 = arith.constant 0 : i32
    %c0_i32_0 = arith.constant 0 : i32
    %c0_i32_1 = arith.constant 0 : i32
    return %c0_i32, %c0_i32_0 : i32, i32
  }
  func.func @transform_9(%arg0: i32) -> (i32, i32) {
    %c0_i32 = arith.constant 0 : i32
    %c0_i32_0 = arith.constant 0 : i32
    %c0_i32_1 = arith.constant 0 : i32
    return %c0_i32, %c0_i32_0 : i32, i32
  }
  func.func @transform_10(%arg0: i32) -> (i32, i32) {
    %c0_i32 = arith.constant 0 : i32
    %c0_i32_0 = arith.constant 0 : i32
    %c0_i32_1 = arith.constant 0 : i32
    return %c0_i32, %c0_i32_0 : i32, i32
  }
  func.func @transform_11(%arg0: i32) -> (i32, i32) {
    %c0_i32 = arith.constant 0 : i32
    %c0_i32_0 = arith.constant 0 : i32
    %c0_i32_1 = arith.constant 0 : i32
    return %c0_i32, %c0_i32_0 : i32, i32
  }
  func.func @transform_12(%arg0: i32) -> (i32, i32, i32, i32) {
    %c0_i32 = arith.constant 0 : i32
    %c0_i32_0 = arith.constant 0 : i32
    %c0_i32_1 = arith.constant 0 : i32
    %c0_i32_2 = arith.constant 0 : i32
    %c0_i32_3 = arith.constant 0 : i32
    return %c0_i32, %c0_i32_0, %c0_i32_1, %c0_i32_2 : i32, i32, i32, i32
  }
  func.func @transform_13(%arg0: i32) -> (i32, i32, i32, i32) {
    %c0_i32 = arith.constant 0 : i32
    %c0_i32_0 = arith.constant 0 : i32
    %c0_i32_1 = arith.constant 0 : i32
    %c0_i32_2 = arith.constant 0 : i32
    %c0_i32_3 = arith.constant 0 : i32
    return %c0_i32, %c0_i32_0, %c0_i32_1, %c0_i32_2 : i32, i32, i32, i32
  }
  func.func @transform_14(%arg0: i32) -> (i32, i32, i32, i32) {
    %c0_i32 = arith.constant 0 : i32
    %c0_i32_0 = arith.constant 0 : i32
    %c0_i32_1 = arith.constant 0 : i32
    %c0_i32_2 = arith.constant 0 : i32
    %c0_i32_3 = arith.constant 0 : i32
    return %c0_i32, %c0_i32_0, %c0_i32_1, %c0_i32_2 : i32, i32, i32, i32
  }
  func.func @transform_15(%arg0: i32) -> (i32, i32, i32, i32) {
    %c0_i32 = arith.constant 0 : i32
    %c0_i32_0 = arith.constant 0 : i32
    %c0_i32_1 = arith.constant 0 : i32
    %c0_i32_2 = arith.constant 0 : i32
    %c0_i32_3 = arith.constant 0 : i32
    return %c0_i32, %c0_i32_0, %c0_i32_1, %c0_i32_2 : i32, i32, i32, i32
  }
  func.func @transform_16(%arg0: i32) -> (i32, i32, i32, i32) {
    %c0_i32 = arith.constant 0 : i32
    %c0_i32_0 = arith.constant 0 : i32
    %c0_i32_1 = arith.constant 0 : i32
    %c0_i32_2 = arith.constant 0 : i32
    %c0_i32_3 = arith.constant 0 : i32
    return %c0_i32, %c0_i32_0, %c0_i32_1, %c0_i32_2 : i32, i32, i32, i32
  }
  func.func @transform_17(%arg0: i32) -> (i32, i32, i32, i32) {
    %c0_i32 = arith.constant 0 : i32
    %c0_i32_0 = arith.constant 0 : i32
    %c0_i32_1 = arith.constant 0 : i32
    %c0_i32_2 = arith.constant 0 : i32
    %c0_i32_3 = arith.constant 0 : i32
    return %c0_i32, %c0_i32_0, %c0_i32_1, %c0_i32_2 : i32, i32, i32, i32
  }
  func.func @transform_18(%arg0: i32) -> (i32, i32, i32, i32) {
    %c0_i32 = arith.constant 0 : i32
    %c0_i32_0 = arith.constant 0 : i32
    %c0_i32_1 = arith.constant 0 : i32
    %c0_i32_2 = arith.constant 0 : i32
    %c0_i32_3 = arith.constant 0 : i32
    return %c0_i32, %c0_i32_0, %c0_i32_1, %c0_i32_2 : i32, i32, i32, i32
  }
  func.func @transform_19(%arg0: i32) -> (i32, i32, i32) {
    %c0_i32 = arith.constant 0 : i32
    %c0_i32_0 = arith.constant 0 : i32
    %c0_i32_1 = arith.constant 0 : i32
    %c0_i32_2 = arith.constant 0 : i32
    return %c0_i32, %c0_i32_0, %c0_i32_1 : i32, i32, i32
  }
  func.func @transform_20(%arg0: i32) -> (i32, i32, i32) {
    %c0_i32 = arith.constant 0 : i32
    %c0_i32_0 = arith.constant 0 : i32
    %c0_i32_1 = arith.constant 0 : i32
    %c0_i32_2 = arith.constant 0 : i32
    return %c0_i32, %c0_i32_0, %c0_i32_1 : i32, i32, i32
  }
  func.func @transform_21(%arg0: i32) -> (i32, i32, i32) {
    %c0_i32 = arith.constant 0 : i32
    %c0_i32_0 = arith.constant 0 : i32
    %c0_i32_1 = arith.constant 0 : i32
    %c0_i32_2 = arith.constant 0 : i32
    return %c0_i32, %c0_i32_0, %c0_i32_1 : i32, i32, i32
  }
  func.func @transform_22(%arg0: i32) -> (i32, i32, i32) {
    %c0_i32 = arith.constant 0 : i32
    %c0_i32_0 = arith.constant 0 : i32
    %c0_i32_1 = arith.constant 0 : i32
    %c0_i32_2 = arith.constant 0 : i32
    return %c0_i32, %c0_i32_0, %c0_i32_1 : i32, i32, i32
  }
  func.func @transform_23(%arg0: i32) -> (i32, i32, i32) {
    %c0_i32 = arith.constant 0 : i32
    %c0_i32_0 = arith.constant 0 : i32
    %c0_i32_1 = arith.constant 0 : i32
    %c0_i32_2 = arith.constant 0 : i32
    return %c0_i32, %c0_i32_0, %c0_i32_1 : i32, i32, i32
  }
  func.func @transform_24(%arg0: i32) -> (i32, i32, i32) {
    %c0_i32 = arith.constant 0 : i32
    %c0_i32_0 = arith.constant 0 : i32
    %c0_i32_1 = arith.constant 0 : i32
    %c0_i32_2 = arith.constant 0 : i32
    return %c0_i32, %c0_i32_0, %c0_i32_1 : i32, i32, i32
  }
  func.func @transform_25(%arg0: i32) -> (i32, i32, i32) {
    %c0_i32 = arith.constant 0 : i32
    %c0_i32_0 = arith.constant 0 : i32
    %c0_i32_1 = arith.constant 0 : i32
    %c0_i32_2 = arith.constant 0 : i32
    return %c0_i32, %c0_i32_0, %c0_i32_1 : i32, i32, i32
  }
  func.func @transform_26(%arg0: i32) -> (i32, i32, i32) {
    %c0_i32 = arith.constant 0 : i32
    %c0_i32_0 = arith.constant 0 : i32
    %c0_i32_1 = arith.constant 0 : i32
    %c0_i32_2 = arith.constant 0 : i32
    return %c0_i32, %c0_i32_0, %c0_i32_1 : i32, i32, i32
  }
  func.func @transform_27(%arg0: i32) -> (i32, i32, i32) {
    %c0_i32 = arith.constant 0 : i32
    %c0_i32_0 = arith.constant 0 : i32
    %c0_i32_1 = arith.constant 0 : i32
    %c0_i32_2 = arith.constant 0 : i32
    return %c0_i32, %c0_i32_0, %c0_i32_1 : i32, i32, i32
  }
  func.func @transform_28(%arg0: i32) -> (i32, i32) {
    %c0_i32 = arith.constant 0 : i32
    %c0_i32_0 = arith.constant 0 : i32
    %c0_i32_1 = arith.constant 0 : i32
    return %c0_i32, %c0_i32_0 : i32, i32
  }
  func.func @transform_29(%arg0: i32) -> (i32, i32) {
    %c0_i32 = arith.constant 0 : i32
    %c0_i32_0 = arith.constant 0 : i32
    %c0_i32_1 = arith.constant 0 : i32
    return %c0_i32, %c0_i32_0 : i32, i32
  }
  func.func @transform_30(%arg0: i32) -> (i32, i32) {
    %c0_i32 = arith.constant 0 : i32
    %c0_i32_0 = arith.constant 0 : i32
    %c0_i32_1 = arith.constant 0 : i32
    return %c0_i32, %c0_i32_0 : i32, i32
  }
  func.func @transform_31(%arg0: i32) -> (i32, i32) {
    %c0_i32 = arith.constant 0 : i32
    %c0_i32_0 = arith.constant 0 : i32
    %c0_i32_1 = arith.constant 0 : i32
    return %c0_i32, %c0_i32_0 : i32, i32
  }
  func.func @transform_32(%arg0: i32) -> (i32, i32) {
    %c0_i32 = arith.constant 0 : i32
    %c0_i32_0 = arith.constant 0 : i32
    %c0_i32_1 = arith.constant 0 : i32
    return %c0_i32, %c0_i32_0 : i32, i32
  }
  func.func @transform_33(%arg0: i32) -> (i32, i32, i32) {
    %c0_i32 = arith.constant 0 : i32
    %c0_i32_0 = arith.constant 0 : i32
    %c0_i32_1 = arith.constant 0 : i32
    return %arg0, %c0_i32, %c0_i32_0 : i32, i32, i32
  }
}

</mosaic_0001>

<llo_original>
// kernel: uni_model_finetune_forward.1
$region0: #{uni_model_finetune_forward.1}
  #allocation0 [shape = 'u32[]', space=smem, size = 0x4, offset = 0x4, fixed_abs, tag = 'smem constant byte address 0x4 - core index']
  #allocation1 [shape = 'u32[144,128]{1,0:T(1,128)}', space=vmem, size = 0x12000, scoped, tag = 'internal scratch']
  %s0 = inlined_call_operand.smem [shape: u32[34], index: -1, kind: input, shape index: {}]
  %s1 = sld [smem:[%s0]]
  %s2 = scalar_lea.smem %s0, 1
  %s3 = sld [smem:[%s2]]
  %s4 = scalar_lea.smem %s0, 2
  %s5 = sld [smem:[%s4]]
  %s6 = scalar_lea.smem %s0, 3
  %s7 = sld [smem:[%s6]]
  %s8 = scalar_lea.smem %s0, 4
  %s9 = sld [smem:[%s8]]
  %s10 = scalar_lea.smem %s0, 5
  %s11 = sld [smem:[%s10]]
  %s12 = scalar_lea.smem %s0, 6
  %s13 = sld [smem:[%s12]]
  %s14 = scalar_lea.smem %s0, 7
  %s15 = sld [smem:[%s14]]
  %s16 = scalar_lea.smem %s0, 8
  %s17 = sld [smem:[%s16]]
  %s18 = scalar_lea.smem %s0, 9
  %s19 = sld [smem:[%s18]]
  %s20 = scalar_lea.smem %s0, 10
  %s21 = sld [smem:[%s20]]
  %s22 = scalar_lea.smem %s0, 11
  %s23 = sld [smem:[%s22]]
  %s24 = scalar_lea.smem %s0, 12
  %s25 = sld [smem:[%s24]]
  %s26 = scalar_lea.smem %s0, 13
  %s27 = sld [smem:[%s26]]
  %s28 = scalar_lea.smem %s0, 14
  %s29 = sld [smem:[%s28]]
  %s30 = scalar_lea.smem %s0, 15
  %s31 = sld [smem:[%s30]]
  %s32 = scalar_lea.smem %s0, 16
  %s33 = sld [smem:[%s32]]
  %s34 = scalar_lea.smem %s0, 17
  %s35 = sld [smem:[%s34]]
  %s36 = scalar_lea.smem %s0, 18
  %s37 = sld [smem:[%s36]]
  %s38 = scalar_lea.smem %s0, 19
  %s39 = sld [smem:[%s38]]
  %s40 = scalar_lea.smem %s0, 20
  %s41 = sld [smem:[%s40]]
  %s42 = scalar_lea.smem %s0, 21
  %s43 = sld [smem:[%s42]]
  %s44 = scalar_lea.smem %s0, 22
  %s45 = sld [smem:[%s44]]
  %s46 = scalar_lea.smem %s0, 23
  %s47 = sld [smem:[%s46]]
  %s48 = scalar_lea.smem %s0, 24
  %s49 = sld [smem:[%s48]]
  %s50 = scalar_lea.smem %s0, 25
  %s51 = sld [smem:[%s50]]
  %s52 = scalar_lea.smem %s0, 26
  %s53 = sld [smem:[%s52]]
  %s54 = scalar_lea.smem %s0, 27
  %s55 = sld [smem:[%s54]]
  %s56 = scalar_lea.smem %s0, 28
  %s57 = sld [smem:[%s56]]
  %s58 = scalar_lea.smem %s0, 29
  %s59 = sld [smem:[%s58]]
  %s60 = scalar_lea.smem %s0, 30
  %s61 = sld [smem:[%s60]]
  %s62 = scalar_lea.smem %s0, 31
  %s63 = sld [smem:[%s62]]
  %s64 = scalar_lea.smem %s0, 32
  %s65 = sld [smem:[%s64]]
  %s66 = scalar_lea.smem %s0, 33
  %s67 = sld [smem:[%s66]]
  %s68 = sld [smem:[#allocation0]]
  $region142: #{uni_model_finetune_forward.1} parent=0
    _
  %s70 = ssub.s32 1, %s68
  %s71 = scalar_select 0, %s70, %s68
  // Predicated region
  $region2: #{uni_model_finetune_forward.1} parent=0 // pred_check
    _
  $region3: #{uni_model_finetune_forward.1} parent=0 // pred_check_branch
    %73 = sbr.rel (0) target = $region5
  $region4: #{uni_model_finetune_forward.1} parent=0 // pred_region
    _
  $region5: #{uni_model_finetune_forward.1} parent=0 // pred_fallthru
    _
  // Predicated region
  $region6: #{uni_model_finetune_forward.1} parent=0 // pred_check
    _
  $region7: #{uni_model_finetune_forward.1} parent=0 // pred_check_branch
    %75 = sbr.rel (0) target = $region9
  $region8: #{uni_model_finetune_forward.1} parent=0 // pred_region
    _
  $region9: #{uni_model_finetune_forward.1} parent=0 // pred_fallthru
    _
  // Predicated region
  $region10: #{uni_model_finetune_forward.1} parent=0 // pred_check
    _
  $region11: #{uni_model_finetune_forward.1} parent=0 // pred_check_branch
    %77 = sbr.rel (0) target = $region13
  $region12: #{uni_model_finetune_forward.1} parent=0 // pred_region
    _
  $region13: #{uni_model_finetune_forward.1} parent=0 // pred_fallthru
    _
  // Predicated region
  $region14: #{uni_model_finetune_forward.1} parent=0 // pred_check
    _
  $region15: #{uni_model_finetune_forward.1} parent=0 // pred_check_branch
    %79 = sbr.rel (0) target = $region17
  $region16: #{uni_model_finetune_forward.1} parent=0 // pred_region
    _
  $region17: #{uni_model_finetune_forward.1} parent=0 // pred_fallthru
    _
  // Predicated region
  $region18: #{uni_model_finetune_forward.1} parent=0 // pred_check
    _
  $region19: #{uni_model_finetune_forward.1} parent=0 // pred_check_branch
    %81 = sbr.rel (0) target = $region21
  $region20: #{uni_model_finetune_forward.1} parent=0 // pred_region
    _
  $region21: #{uni_model_finetune_forward.1} parent=0 // pred_fallthru
    _
  // Predicated region
  $region22: #{uni_model_finetune_forward.1} parent=0 // pred_check
    _
  $region23: #{uni_model_finetune_forward.1} parent=0 // pred_check_branch
    %83 = sbr.rel (0) target = $region25
  $region24: #{uni_model_finetune_forward.1} parent=0 // pred_region
    _
  $region25: #{uni_model_finetune_forward.1} parent=0 // pred_fallthru
    _
  // Predicated region
  $region26: #{uni_model_finetune_forward.1} parent=0 // pred_check
    _
  $region27: #{uni_model_finetune_forward.1} parent=0 // pred_check_branch
    %85 = sbr.rel (0) target = $region29
  $region28: #{uni_model_finetune_forward.1} parent=0 // pred_region
    _
  $region29: #{uni_model_finetune_forward.1} parent=0 // pred_fallthru
    _
  // Predicated region
  $region30: #{uni_model_finetune_forward.1} parent=0 // pred_check
    _
  $region31: #{uni_model_finetune_forward.1} parent=0 // pred_check_branch
    %87 = sbr.rel (0) target = $region33
  $region32: #{uni_model_finetune_forward.1} parent=0 // pred_region
    _
  $region33: #{uni_model_finetune_forward.1} parent=0 // pred_fallthru
    _
  // Predicated region
  $region34: #{uni_model_finetune_forward.1} parent=0 // pred_check
    _
  $region35: #{uni_model_finetune_forward.1} parent=0 // pred_check_branch
    %89 = sbr.rel (0) target = $region37
  $region36: #{uni_model_finetune_forward.1} parent=0 // pred_region
    _
  $region37: #{uni_model_finetune_forward.1} parent=0 // pred_fallthru
    _
  // Predicated region
  $region38: #{uni_model_finetune_forward.1} parent=0 // pred_check
    _
  $region39: #{uni_model_finetune_forward.1} parent=0 // pred_check_branch
    %91 = sbr.rel (0) target = $region41
  $region40: #{uni_model_finetune_forward.1} parent=0 // pred_region
    _
  $region41: #{uni_model_finetune_forward.1} parent=0 // pred_fallthru
    _
  // Predicated region
  $region42: #{uni_model_finetune_forward.1} parent=0 // pred_check
    _
  $region43: #{uni_model_finetune_forward.1} parent=0 // pred_check_branch
    %93 = sbr.rel (0) target = $region45
  $region44: #{uni_model_finetune_forward.1} parent=0 // pred_region
    _
  $region45: #{uni_model_finetune_forward.1} parent=0 // pred_fallthru
    _
  // Predicated region
  $region46: #{uni_model_finetune_forward.1} parent=0 // pred_check
    _
  $region47: #{uni_model_finetune_forward.1} parent=0 // pred_check_branch
    %95 = sbr.rel (0) target = $region49
  $region48: #{uni_model_finetune_forward.1} parent=0 // pred_region
    _
  $region49: #{uni_model_finetune_forward.1} parent=0 // pred_fallthru
    _
  // Predicated region
  $region50: #{uni_model_finetune_forward.1} parent=0 // pred_check
    _
  $region51: #{uni_model_finetune_forward.1} parent=0 // pred_check_branch
    %97 = sbr.rel (0) target = $region53
  $region52: #{uni_model_finetune_forward.1} parent=0 // pred_region
    _
  $region53: #{uni_model_finetune_forward.1} parent=0 // pred_fallthru
    _
  // Predicated region
  $region54: #{uni_model_finetune_forward.1} parent=0 // pred_check
    _
  $region55: #{uni_model_finetune_forward.1} parent=0 // pred_check_branch
    %99 = sbr.rel (0) target = $region57
  $region56: #{uni_model_finetune_forward.1} parent=0 // pred_region
    _
  $region57: #{uni_model_finetune_forward.1} parent=0 // pred_fallthru
    _
  // Predicated region
  $region58: #{uni_model_finetune_forward.1} parent=0 // pred_check
    _
  $region59: #{uni_model_finetune_forward.1} parent=0 // pred_check_branch
    %101 = sbr.rel (0) target = $region61
  $region60: #{uni_model_finetune_forward.1} parent=0 // pred_region
    _
  $region61: #{uni_model_finetune_forward.1} parent=0 // pred_fallthru
    _
  // Predicated region
  $region62: #{uni_model_finetune_forward.1} parent=0 // pred_check
    _
  $region63: #{uni_model_finetune_forward.1} parent=0 // pred_check_branch
    %103 = sbr.rel (0) target = $region65
  $region64: #{uni_model_finetune_forward.1} parent=0 // pred_region
    _
  $region65: #{uni_model_finetune_forward.1} parent=0 // pred_fallthru
    _
  // Predicated region
  $region66: #{uni_model_finetune_forward.1} parent=0 // pred_check
    _
  $region67: #{uni_model_finetune_forward.1} parent=0 // pred_check_branch
    %105 = sbr.rel (0) target = $region69
  $region68: #{uni_model_finetune_forward.1} parent=0 // pred_region
    _
  $region69: #{uni_model_finetune_forward.1} parent=0 // pred_fallthru
    _
  // Predicated region
  $region70: #{uni_model_finetune_forward.1} parent=0 // pred_check
    _
  $region71: #{uni_model_finetune_forward.1} parent=0 // pred_check_branch
    %107 = sbr.rel (0) target = $region73
  $region72: #{uni_model_finetune_forward.1} parent=0 // pred_region
    _
  $region73: #{uni_model_finetune_forward.1} parent=0 // pred_fallthru
    _
  // Predicated region
  $region74: #{uni_model_finetune_forward.1} parent=0 // pred_check
    _
  $region75: #{uni_model_finetune_forward.1} parent=0 // pred_check_branch
    %109 = sbr.rel (0) target = $region77
  $region76: #{uni_model_finetune_forward.1} parent=0 // pred_region
    _
  $region77: #{uni_model_finetune_forward.1} parent=0 // pred_fallthru
    _
  // Predicated region
  $region78: #{uni_model_finetune_forward.1} parent=0 // pred_check
    _
  $region79: #{uni_model_finetune_forward.1} parent=0 // pred_check_branch
    %111 = sbr.rel (0) target = $region81
  $region80: #{uni_model_finetune_forward.1} parent=0 // pred_region
    _
  $region81: #{uni_model_finetune_forward.1} parent=0 // pred_fallthru
    _
  // Predicated region
  $region82: #{uni_model_finetune_forward.1} parent=0 // pred_check
    _
  $region83: #{uni_model_finetune_forward.1} parent=0 // pred_check_branch
    %113 = sbr.rel (0) target = $region85
  $region84: #{uni_model_finetune_forward.1} parent=0 // pred_region
    _
  $region85: #{uni_model_finetune_forward.1} parent=0 // pred_fallthru
    _
  // Predicated region
  $region86: #{uni_model_finetune_forward.1} parent=0 // pred_check
    _
  $region87: #{uni_model_finetune_forward.1} parent=0 // pred_check_branch
    %115 = sbr.rel (0) target = $region89
  $region88: #{uni_model_finetune_forward.1} parent=0 // pred_region
    _
  $region89: #{uni_model_finetune_forward.1} parent=0 // pred_fallthru
    _
  // Predicated region
  $region90: #{uni_model_finetune_forward.1} parent=0 // pred_check
    _
  $region91: #{uni_model_finetune_forward.1} parent=0 // pred_check_branch
    %117 = sbr.rel (0) target = $region93
  $region92: #{uni_model_finetune_forward.1} parent=0 // pred_region
    _
  $region93: #{uni_model_finetune_forward.1} parent=0 // pred_fallthru
    _
  // Predicated region
  $region94: #{uni_model_finetune_forward.1} parent=0 // pred_check
    _
  $region95: #{uni_model_finetune_forward.1} parent=0 // pred_check_branch
    %119 = sbr.rel (0) target = $region97
  $region96: #{uni_model_finetune_forward.1} parent=0 // pred_region
    _
  $region97: #{uni_model_finetune_forward.1} parent=0 // pred_fallthru
    _
  // Predicated region
  $region98: #{uni_model_finetune_forward.1} parent=0 // pred_check
    _
  $region99: #{uni_model_finetune_forward.1} parent=0 // pred_check_branch
    %121 = sbr.rel (0) target = $region101
  $region100: #{uni_model_finetune_forward.1} parent=0 // pred_region
    _
  $region101: #{uni_model_finetune_forward.1} parent=0 // pred_fallthru
    _
  // Predicated region
  $region102: #{uni_model_finetune_forward.1} parent=0 // pred_check
    _
  $region103: #{uni_model_finetune_forward.1} parent=0 // pred_check_branch
    %123 = sbr.rel (0) target = $region105
  $region104: #{uni_model_finetune_forward.1} parent=0 // pred_region
    _
  $region105: #{uni_model_finetune_forward.1} parent=0 // pred_fallthru
    _
  // Predicated region
  $region106: #{uni_model_finetune_forward.1} parent=0 // pred_check
    _
  $region107: #{uni_model_finetune_forward.1} parent=0 // pred_check_branch
    %125 = sbr.rel (0) target = $region109
  $region108: #{uni_model_finetune_forward.1} parent=0 // pred_region
    _
  $region109: #{uni_model_finetune_forward.1} parent=0 // pred_fallthru
    _
  // Predicated region
  $region110: #{uni_model_finetune_forward.1} parent=0 // pred_check
    _
  $region111: #{uni_model_finetune_forward.1} parent=0 // pred_check_branch
    %127 = sbr.rel (0) target = $region113
  $region112: #{uni_model_finetune_forward.1} parent=0 // pred_region
    _
  $region113: #{uni_model_finetune_forward.1} parent=0 // pred_fallthru
    _
  // Predicated region
  $region114: #{uni_model_finetune_forward.1} parent=0 // pred_check
    _
  $region115: #{uni_model_finetune_forward.1} parent=0 // pred_check_branch
    %129 = sbr.rel (0) target = $region117
  $region116: #{uni_model_finetune_forward.1} parent=0 // pred_region
    _
  $region117: #{uni_model_finetune_forward.1} parent=0 // pred_fallthru
    _
  // Predicated region
  $region118: #{uni_model_finetune_forward.1} parent=0 // pred_check
    _
  $region119: #{uni_model_finetune_forward.1} parent=0 // pred_check_branch
    %131 = sbr.rel (0) target = $region121
  $region120: #{uni_model_finetune_forward.1} parent=0 // pred_region
    _
  $region121: #{uni_model_finetune_forward.1} parent=0 // pred_fallthru
    _
  // Predicated region
  $region122: #{uni_model_finetune_forward.1} parent=0 // pred_check
    _
  $region123: #{uni_model_finetune_forward.1} parent=0 // pred_check_branch
    %133 = sbr.rel (0) target = $region125
  $region124: #{uni_model_finetune_forward.1} parent=0 // pred_region
    _
  $region125: #{uni_model_finetune_forward.1} parent=0 // pred_fallthru
    _
  // Predicated region
  $region126: #{uni_model_finetune_forward.1} parent=0 // pred_check
    _
  $region127: #{uni_model_finetune_forward.1} parent=0 // pred_check_branch
    %135 = sbr.rel (0) target = $region129
  $region128: #{uni_model_finetune_forward.1} parent=0 // pred_region
    _
  $region129: #{uni_model_finetune_forward.1} parent=0 // pred_fallthru
    _
  // Predicated region
  $region130: #{uni_model_finetune_forward.1} parent=0 // pred_check
    _
  $region131: #{uni_model_finetune_forward.1} parent=0 // pred_check_branch
    %137 = sbr.rel (0) target = $region133
  $region132: #{uni_model_finetune_forward.1} parent=0 // pred_region
    _
  $region133: #{uni_model_finetune_forward.1} parent=0 // pred_fallthru
    _
  %v138 = vld [vmem:[%s1] sm:$0xff]
  %v139 = vld [vmem:[%s1 + $0x8] sm:$0xff]
  %v140 = vlaneseq
  %v141 = vand.u32 %v140, 127
  %142 = vset.pattern.permute.xlu0 0
  %143 = vperm.xlu0 %142, %v138
  %v144 = vpop.permute.xlu0 %143
  %145 = vset.pattern.permute.xlu0 0
  %146 = vperm.xlu0 %145, %v139
  %v147 = vpop.permute.xlu0 %146
  %vm148 = vcmp.eq.s32.totalorder %v144, %v141
  %vm149 = vcmp.eq.s32.totalorder %v147, %v141
  %v150 = vsel %vm148, 1, 0
  %v151 = vsel %vm149, 1, 0
  %v152 = vcvt.s32.f32 %v150
  %v153 = vcvt.s32.f32 %v151
  %v154 = vld [vmem:[%s7] sm:$0xff]
  %v155 = vld [vmem:[%s7 + $0x8] sm:$0xff]
  %v156 = vld [vmem:[%s7 + $0x10] sm:$0xff]
  %v157 = vld [vmem:[%s7 + $0x18] sm:$0xff]
  %v158 = vld [vmem:[%s7 + $0x20] sm:$0xff]
  %v159 = vld [vmem:[%s7 + $0x28] sm:$0xff]
  %v160 = vld [vmem:[%s7 + $0x30] sm:$0x3]
  %v161 = vld [vmem:[%s9] sm:$0xff]
  %v162 = vld [vmem:[%s9 + $0x8] sm:$0xff]
  %vm163 = vcmask 408576
  %v165 = vsel %vm163, %v152, 0
  %v168 = vsel %vm163, %v153, 0
  %vm170 = vcmask 1041408
  %v172 = vsel %vm170, %v160, 0
  %174 = vmatprep.subr.mxu0 0.0
  %175 = vmatpush1.msra.mxu0 %v154
  %176 = vmatprep.subr.mxu0 0.0
  %177 = vmatpush1.msra.mxu0 %v155
  %178 = vmatprep.subr.mxu0 0.0
  %179 = vmatpush1.msra.mxu0 %v156
  %180 = vmatprep.subr.mxu0 0.0
  %181 = vmatpush1.msra.mxu0 %v157
  %182 = vmatprep.subr.mxu0 0.0
  %183 = vmatpush1.msra.mxu0 %v158
  %184 = vmatprep.subr.mxu0 0.0
  %185 = vmatpush1.msra.mxu0 %v159
  %186 = vmatprep.subr.mxu0 0.0
  %187 = vmatpush1.msra.mxu0 %v172
  %188 = vmatprep.subr.mxu0 0.0
  %189 = vmatpush1.msra.mxu0 0.0
  %190 = vmatprep.subr.mxu0 0.0
  %191 = vmatpush1.msra.mxu0 0.0
  %192 = vmatprep.subr.mxu0 0.0
  %193 = vmatpush1.msra.mxu0 0.0
  %194 = vmatprep.subr.mxu0 0.0
  %195 = vmatpush1.msra.mxu0 0.0
  %196 = vmatprep.subr.mxu0 0.0
  %197 = vmatpush1.msra.mxu0 0.0
  %198 = vmatprep.subr.mxu0 0.0
  %199 = vmatpush1.msra.mxu0 0.0
  %200 = vmatprep.subr.mxu0 0.0
  %201 = vmatpush1.msra.mxu0 0.0
  %202 = vmatprep.subr.mxu0 0.0
  %203 = vmatpush1.msra.mxu0 0.0
  %204 = vmatprep.subr.mxu0 0.0
  %205 = vmatpush1.msra.mxu0 0.0
  %206 = vmatprep.subr.mxu0 0.0
  %207 = vmatpush1.msra.mxu0 0.0
  %208 = vmatprep.subr.mxu0 0.0
  %209 = vmatpush1.msra.mxu0 0.0
  %210 = vmatprep.subr.mxu0 0.0
  %211 = vmatpush1.msra.mxu0 0.0
  %212 = vmatprep.subr.mxu0 0.0
  %213 = vmatpush1.msra.mxu0 0.0
  %214 = vmatprep.subr.mxu0 0.0
  %215 = vmatpush1.msra.mxu0 0.0
  %216 = vmatprep.subr.mxu0 0.0
  %217 = vmatpush1.msra.mxu0 0.0
  %218 = vmatprep.subr.mxu0 0.0
  %219 = vmatpush1.msra.mxu0 0.0
  %220 = vmatprep.subr.mxu0 0.0
  %221 = vmatpush1.msra.mxu0 0.0
  %222 = vmatprep.subr.mxu0 0.0
  %223 = vmatpush1.msra.mxu0 0.0
  %224 = vmatprep.subr.mxu0 0.0
  %225 = vmatpush1.msra.mxu0 0.0
  %226 = vmatprep.subr.mxu0 0.0
  %227 = vmatpush1.msra.mxu0 0.0
  %228 = vmatprep.subr.mxu0 0.0
  %229 = vmatpush1.msra.mxu0 0.0
  %230 = vmatprep.subr.mxu0 0.0
  %231 = vmatpush1.msra.mxu0 0.0
  %232 = vmatprep.subr.mxu0 0.0
  %233 = vmatpush1.msra.mxu0 0.0
  %234 = vmatprep.subr.mxu0 0.0
  %235 = vmatpush1.msra.mxu0 0.0
  %236 = vmatprep.subr.mxu0 0.0
  %237 = vmatpush1.msra.mxu0 0.0
  %238 = vmatprep.mubr.f32.mxu0 0.0
  %239 = vmatmul.mubr.f32.gmra.mrb[0].mxu0 %v165
  %v240 = vpop.f32.mrb[0].mxu0
  %v241 = vadd.f32 %v161, %v240
  %v242 = vpop.f32.mrb[0].mxu0
  %243 = vmatprep.mubr.f32.mxu0 0.0
  %244 = vmatmul.mubr.f32.gmra.mrb[0].mxu0 %v168
  %v245 = vpop.f32.mrb[0].mxu0
  %v246 = vadd.f32 %v162, %v245
  %v247 = vpop.f32.mrb[0].mxu0
  %248 = vdwg.mxu0
  %v249 = vld [vmem:[%s11] sm:$0x1]
  %v250 = vld [vmem:[%s13] sm:$0x1]
  %vm251 = vcmask 261120
  %v252 = vsel %vm251, %v241, 0.0
  %253 = vadd.xlane.f32.xlu0 %v252
  %v254 = vpop.xlane.xlu0 %253
  %v255 = vsel %vm251, %v246, 0.0
  %256 = vadd.xlane.f32.xlu0 %v255
  %v257 = vpop.xlane.xlu0 %256
  %v258 = vrcp.pop 32.0
  %v259 = vmul.f32 %v254, %v258
  %v260 = vmul.f32 %v257, %v258
  %v261 = vsub.f32 %v241, %v259
  %v262 = vsub.f32 %v246, %v260
  %v263 = vmul.f32 %v261, %v261
  %v264 = vmul.f32 %v262, %v262
  %v265 = vsel %vm251, %v263, 0.0
  %266 = vadd.xlane.f32.xlu0 %v265
  %v267 = vpop.xlane.xlu0 %266
  %v268 = vsel %vm251, %v264, 0.0
  %269 = vadd.xlane.f32.xlu0 %v268
  %v270 = vpop.xlane.xlu0 %269
  %v271 = vmul.f32 %v267, %v258
  %v272 = vmul.f32 %v270, %v258
  %v273 = vadd.f32 %v271, 1e-12
  %v274 = vadd.f32 %v272, 1e-12
  %v275 = vrsqrt.pop %v273
  %v276 = vrsqrt.pop %v274
  %v277 = vmul.f32 %v261, %v275
  %v278 = vmul.f32 %v262, %v276
  %v280 = vlaneseq
  %v281 = vshrl.u32 %v280, 7
  %v282 = vsub.s32 0, %v281
  %v283 = vrot.slane %v249, %v282
  %v285 = vmul.f32 %v277, %v283
  %v286 = vmul.f32 %v278, %v283
  %v288 = vlaneseq
  %v289 = vshrl.u32 %v288, 7
  %v290 = vsub.s32 0, %v289
  %v291 = vrot.slane %v250, %v290
  %v293 = vadd.f32 %v285, %v291
  %v294 = vadd.f32 %v286, %v291
  %v295 = vld [vmem:[%s3] sm:$0xff]
  %v296 = vld [vmem:[%s3 + $0x8] sm:$0xff]
  %v297 = vld [vmem:[%s3 + $0x10] sm:$0xff]
  %v298 = vld [vmem:[%s3 + $0x18] sm:$0xff]
  %v299 = vld [vmem:[%s3 + $0x20] sm:$0xff]
  %v300 = vld [vmem:[%s3 + $0x28] sm:$0xff]
  %v301 = vld [vmem:[%s3 + $0x30] sm:$0xff]
  %v302 = vld [vmem:[%s3 + $0x38] sm:$0xff]
  %v303 = vld [vmem:[%s15] sm:$0xff]
  %v304 = vld [vmem:[%s15 + $0x8] sm:$0xff]
  %v305 = vld [vmem:[%s15 + $0x10] sm:$0xff]
  %v306 = vld [vmem:[%s15 + $0x18] sm:$0xff]
  %v307 = vld [vmem:[%s15 + $0x20] sm:$0xff]
  %v308 = vld [vmem:[%s15 + $0x28] sm:$0xff]
  %v309 = vld [vmem:[%s15 + $0x30] sm:$0xff]
  %v310 = vld [vmem:[%s15 + $0x38] sm:$0xff]
  %v311 = vld [vmem:[%s15 + $0x40] sm:$0xff]
  %v312 = vld [vmem:[%s15 + $0x48] sm:$0xff]
  %v313 = vld [vmem:[%s15 + $0x50] sm:$0xff]
  %v314 = vld [vmem:[%s15 + $0x58] sm:$0xff]
  %v315 = vld [vmem:[%s15 + $0x60] sm:$0xff]
  %v316 = vld [vmem:[%s15 + $0x68] sm:$0xff]
  %v317 = vld [vmem:[%s15 + $0x70] sm:$0xff]
  %v318 = vld [vmem:[%s15 + $0x78] sm:$0xff]
  %v319 = vld [vmem:[%s15 + $0x80] sm:$0xff]
  %v320 = vld [vmem:[%s15 + $0x88] sm:$0xff]
  %v321 = vld [vmem:[%s15 + $0x90] sm:$0xff]
  %v322 = vld [vmem:[%s15 + $0x98] sm:$0xff]
  %v323 = vld [vmem:[%s15 + $0xa0] sm:$0xff]
  %v324 = vld [vmem:[%s15 + $0xa8] sm:$0xff]
  %v325 = vld [vmem:[%s15 + $0xb0] sm:$0xff]
  %v326 = vld [vmem:[%s15 + $0xb8] sm:$0xff]
  %v327 = vld [vmem:[%s15 + $0xc0] sm:$0xff]
  %v328 = vld [vmem:[%s15 + $0xc8] sm:$0xff]
  %v329 = vld [vmem:[%s15 + $0xd0] sm:$0xff]
  %v330 = vld [vmem:[%s15 + $0xd8] sm:$0xff]
  %v331 = vld [vmem:[%s15 + $0xe0] sm:$0xff]
  %v332 = vld [vmem:[%s15 + $0xe8] sm:$0xff]
  %v333 = vld [vmem:[%s15 + $0xf0] sm:$0xff]
  %v334 = vld [vmem:[%s15 + $0xf8] sm:$0xff]
  %v335 = vld [vmem:[%s15 + $0x100] sm:$0xff]
  %v336 = vld [vmem:[%s15 + $0x108] sm:$0xff]
  %v337 = vld [vmem:[%s15 + $0x110] sm:$0xff]
  %v338 = vld [vmem:[%s15 + $0x118] sm:$0xff]
  %v339 = vld [vmem:[%s15 + $0x120] sm:$0xff]
  %v340 = vld [vmem:[%s15 + $0x128] sm:$0xff]
  %v341 = vld [vmem:[%s15 + $0x130] sm:$0xff]
  %v342 = vld [vmem:[%s15 + $0x138] sm:$0xff]
  %v343 = vld [vmem:[%s15 + $0x140] sm:$0xff]
  %v344 = vld [vmem:[%s15 + $0x148] sm:$0xff]
  %v345 = vld [vmem:[%s15 + $0x150] sm:$0xff]
  %v346 = vld [vmem:[%s15 + $0x158] sm:$0xff]
  %v347 = vld [vmem:[%s15 + $0x160] sm:$0xff]
  %v348 = vld [vmem:[%s15 + $0x168] sm:$0xff]
  %v349 = vld [vmem:[%s15 + $0x170] sm:$0xff]
  %v350 = vld [vmem:[%s15 + $0x178] sm:$0xff]
  %v351 = vld [vmem:[%s15 + $0x180] sm:$0xff]
  %v352 = vld [vmem:[%s15 + $0x188] sm:$0xff]
  %v353 = vld [vmem:[%s15 + $0x190] sm:$0xff]
  %v354 = vld [vmem:[%s15 + $0x198] sm:$0xff]
  %v355 = vld [vmem:[%s15 + $0x1a0] sm:$0xff]
  %v356 = vld [vmem:[%s15 + $0x1a8] sm:$0xff]
  %v357 = vld [vmem:[%s15 + $0x1b0] sm:$0xff]
  %v358 = vld [vmem:[%s15 + $0x1b8] sm:$0xff]
  %v359 = vld [vmem:[%s15 + $0x1c0] sm:$0xff]
  %v360 = vld [vmem:[%s15 + $0x1c8] sm:$0xff]
  %v361 = vld [vmem:[%s15 + $0x1d0] sm:$0xff]
  %v362 = vld [vmem:[%s15 + $0x1d8] sm:$0xff]
  %v363 = vld [vmem:[%s15 + $0x1e0] sm:$0xff]
  %v364 = vld [vmem:[%s15 + $0x1e8] sm:$0xff]
  %v365 = vld [vmem:[%s15 + $0x1f0] sm:$0xff]
  %v366 = vld [vmem:[%s15 + $0x1f8] sm:$0xff]
  %v367 = vld [vmem:[%s17] sm:$0x1]
  %v369 = vlaneseq
  %v370 = vshrl.u32 %v369, 7
  %v371 = vsub.s32 0, %v370
  %v372 = vrot.slane %v367, %v371
  %374 = vmatprep.subr.mxu0 0.0
  %375 = vmatpush1.msra.mxu0 %v303
  %376 = vmatprep.subr.mxu0 0.0
  %377 = vmatpush1.msra.mxu0 %v304
  %378 = vmatprep.subr.mxu0 0.0
  %379 = vmatpush1.msra.mxu0 %v305
  %380 = vmatprep.subr.mxu0 0.0
  %381 = vmatpush1.msra.mxu0 %v306
  %382 = vmatprep.subr.mxu0 0.0
  %383 = vmatpush1.msra.mxu0 %v307
  %384 = vmatprep.subr.mxu0 0.0
  %385 = vmatpush1.msra.mxu0 %v308
  %386 = vmatprep.subr.mxu0 0.0
  %387 = vmatpush1.msra.mxu0 %v309
  %388 = vmatprep.subr.mxu0 0.0
  %389 = vmatpush1.msra.mxu0 %v310
  %390 = vmatprep.subr.mxu0 0.0
  %391 = vmatpush1.msra.mxu0 %v311
  %392 = vmatprep.subr.mxu0 0.0
  %393 = vmatpush1.msra.mxu0 %v312
  %394 = vmatprep.subr.mxu0 0.0
  %395 = vmatpush1.msra.mxu0 %v313
  %396 = vmatprep.subr.mxu0 0.0
  %397 = vmatpush1.msra.mxu0 %v314
  %398 = vmatprep.subr.mxu0 0.0
  %399 = vmatpush1.msra.mxu0 %v315
  %400 = vmatprep.subr.mxu0 0.0
  %401 = vmatpush1.msra.mxu0 %v316
  %402 = vmatprep.subr.mxu0 0.0
  %403 = vmatpush1.msra.mxu0 %v317
  %404 = vmatprep.subr.mxu0 0.0
  %405 = vmatpush1.msra.mxu0 %v318
  %406 = vmatprep.subr.mxu0 0.0
  %407 = vmatpush1.msra.mxu0 %v319
  %408 = vmatprep.subr.mxu0 0.0
  %409 = vmatpush1.msra.mxu0 %v320
  %410 = vmatprep.subr.mxu0 0.0
  %411 = vmatpush1.msra.mxu0 %v321
  %412 = vmatprep.subr.mxu0 0.0
  %413 = vmatpush1.msra.mxu0 %v322
  %414 = vmatprep.subr.mxu0 0.0
  %415 = vmatpush1.msra.mxu0 %v323
  %416 = vmatprep.subr.mxu0 0.0
  %417 = vmatpush1.msra.mxu0 %v324
  %418 = vmatprep.subr.mxu0 0.0
  %419 = vmatpush1.msra.mxu0 %v325
  %420 = vmatprep.subr.mxu0 0.0
  %421 = vmatpush1.msra.mxu0 %v326
  %422 = vmatprep.subr.mxu0 0.0
  %423 = vmatpush1.msra.mxu0 %v327
  %424 = vmatprep.subr.mxu0 0.0
  %425 = vmatpush1.msra.mxu0 %v328
  %426 = vmatprep.subr.mxu0 0.0
  %427 = vmatpush1.msra.mxu0 %v329
  %428 = vmatprep.subr.mxu0 0.0
  %429 = vmatpush1.msra.mxu0 %v330
  %430 = vmatprep.subr.mxu0 0.0
  %431 = vmatpush1.msra.mxu0 %v331
  %432 = vmatprep.subr.mxu0 0.0
  %433 = vmatpush1.msra.mxu0 %v332
  %434 = vmatprep.subr.mxu0 0.0
  %435 = vmatpush1.msra.mxu0 %v333
  %436 = vmatprep.subr.mxu0 0.0
  %437 = vmatpush1.msra.mxu0 %v334
  %438 = vmatprep.mubr.f32.mxu0 %v296
  %439 = vmatmul.mubr.f32.gmra.mrb[0].mxu0 %v295
  %v440 = vpop.f32.mrb[0].mxu0
  %v441 = vadd.f32 %v372, %v440
  %v442 = vpop.f32.mrb[0].mxu0
  %443 = vmatprep.mubr.f32.mxu0 %v300
  %444 = vmatmul.mubr.f32.gmra.mrb[0].mxu0 %v299
  %v445 = vpop.f32.mrb[0].mxu0
  %v446 = vadd.f32 %v372, %v445
  %v447 = vpop.f32.mrb[0].mxu0
  %448 = vdwg.mxu0
  %449 = vmatprep.subr.mxu0 0.0
  %450 = vmatpush1.msra.mxu0 %v335
  %451 = vmatprep.subr.mxu0 0.0
  %452 = vmatpush1.msra.mxu0 %v336
  %453 = vmatprep.subr.mxu0 0.0
  %454 = vmatpush1.msra.mxu0 %v337
  %455 = vmatprep.subr.mxu0 0.0
  %456 = vmatpush1.msra.mxu0 %v338
  %457 = vmatprep.subr.mxu0 0.0
  %458 = vmatpush1.msra.mxu0 %v339
  %459 = vmatprep.subr.mxu0 0.0
  %460 = vmatpush1.msra.mxu0 %v340
  %461 = vmatprep.subr.mxu0 0.0
  %462 = vmatpush1.msra.mxu0 %v341
  %463 = vmatprep.subr.mxu0 0.0
  %464 = vmatpush1.msra.mxu0 %v342
  %465 = vmatprep.subr.mxu0 0.0
  %466 = vmatpush1.msra.mxu0 %v343
  %467 = vmatprep.subr.mxu0 0.0
  %468 = vmatpush1.msra.mxu0 %v344
  %469 = vmatprep.subr.mxu0 0.0
  %470 = vmatpush1.msra.mxu0 %v345
  %471 = vmatprep.subr.mxu0 0.0
  %472 = vmatpush1.msra.mxu0 %v346
  %473 = vmatprep.subr.mxu0 0.0
  %474 = vmatpush1.msra.mxu0 %v347
  %475 = vmatprep.subr.mxu0 0.0
  %476 = vmatpush1.msra.mxu0 %v348
  %477 = vmatprep.subr.mxu0 0.0
  %478 = vmatpush1.msra.mxu0 %v349
  %479 = vmatprep.subr.mxu0 0.0
  %480 = vmatpush1.msra.mxu0 %v350
  %481 = vmatprep.subr.mxu0 0.0
  %482 = vmatpush1.msra.mxu0 %v351
  %483 = vmatprep.subr.mxu0 0.0
  %484 = vmatpush1.msra.mxu0 %v352
  %485 = vmatprep.subr.mxu0 0.0
  %486 = vmatpush1.msra.mxu0 %v353
  %487 = vmatprep.subr.mxu0 0.0
  %488 = vmatpush1.msra.mxu0 %v354
  %489 = vmatprep.subr.mxu0 0.0
  %490 = vmatpush1.msra.mxu0 %v355
  %491 = vmatprep.subr.mxu0 0.0
  %492 = vmatpush1.msra.mxu0 %v356
  %493 = vmatprep.subr.mxu0 0.0
  %494 = vmatpush1.msra.mxu0 %v357
  %495 = vmatprep.subr.mxu0 0.0
  %496 = vmatpush1.msra.mxu0 %v358
  %497 = vmatprep.subr.mxu0 0.0
  %498 = vmatpush1.msra.mxu0 %v359
  %499 = vmatprep.subr.mxu0 0.0
  %500 = vmatpush1.msra.mxu0 %v360
  %501 = vmatprep.subr.mxu0 0.0
  %502 = vmatpush1.msra.mxu0 %v361
  %503 = vmatprep.subr.mxu0 0.0
  %504 = vmatpush1.msra.mxu0 %v362
  %505 = vmatprep.subr.mxu0 0.0
  %506 = vmatpush1.msra.mxu0 %v363
  %507 = vmatprep.subr.mxu0 0.0
  %508 = vmatpush1.msra.mxu0 %v364
  %509 = vmatprep.subr.mxu0 0.0
  %510 = vmatpush1.msra.mxu0 %v365
  %511 = vmatprep.subr.mxu0 0.0
  %512 = vmatpush1.msra.mxu0 %v366
  %513 = vmatprep.mubr.f32.mxu0 %v298
  %514 = vmatmul.mubr.f32.gmra.mrb[0].mxu0 %v297
  %v515 = vpop.f32.mrb[0].mxu0
  %v516 = vadd.f32 %v441, %v515
  %v517 = vpop.f32.mrb[0].mxu0
  %518 = vmatprep.mubr.f32.mxu0 %v302
  %519 = vmatmul.mubr.f32.gmra.mrb[0].mxu0 %v301
  %v520 = vpop.f32.mrb[0].mxu0
  %v521 = vadd.f32 %v446, %v520
  %v522 = vpop.f32.mrb[0].mxu0
  %523 = vdwg.mxu0
  %v524 = vld [vmem:[%s19] sm:$0xff]
  %v525 = vld [vmem:[%s19 + $0x8] sm:$0xff]
  %v526 = vadd.f32 %v516, %v524
  %v527 = vadd.f32 %v521, %v525
  %v528 = vld [vmem:[%s21] sm:$0x1]
  %v529 = vld [vmem:[%s23] sm:$0x1]
  %v530 = vsel %vm251, %v526, 0.0
  %531 = vadd.xlane.f32.xlu0 %v530
  %v532 = vpop.xlane.xlu0 %531
  %v533 = vsel %vm251, %v527, 0.0
  %534 = vadd.xlane.f32.xlu0 %v533
  %v535 = vpop.xlane.xlu0 %534
  %v536 = vmul.f32 %v532, %v258
  %v537 = vmul.f32 %v535, %v258
  %v538 = vsub.f32 %v526, %v536
  %v539 = vsub.f32 %v527, %v537
  %v540 = vmul.f32 %v538, %v538
  %v541 = vmul.f32 %v539, %v539
  %v542 = vsel %vm251, %v540, 0.0
  %543 = vadd.xlane.f32.xlu0 %v542
  %v544 = vpop.xlane.xlu0 %543
  %v545 = vsel %vm251, %v541, 0.0
  %546 = vadd.xlane.f32.xlu0 %v545
  %v547 = vpop.xlane.xlu0 %546
  %v548 = vmul.f32 %v544, %v258
  %v549 = vmul.f32 %v547, %v258
  %v550 = vadd.f32 %v548, 1e-12
  %v551 = vadd.f32 %v549, 1e-12
  %v552 = vrsqrt.pop %v550
  %v553 = vrsqrt.pop %v551
  %v554 = vmul.f32 %v538, %v552
  %v555 = vmul.f32 %v539, %v553
  %v557 = vlaneseq
  %v558 = vshrl.u32 %v557, 7
  %v559 = vsub.s32 0, %v558
  %v560 = vrot.slane %v528, %v559
  %v562 = vmul.f32 %v554, %v560
  %v563 = vmul.f32 %v555, %v560
  %v565 = vlaneseq
  %v566 = vshrl.u32 %v565, 7
  %v567 = vsub.s32 0, %v566
  %v568 = vrot.slane %v529, %v567
  %v570 = vadd.f32 %v562, %v568
  %v571 = vadd.f32 %v563, %v568
  %v572 = vld [vmem:[%s5] sm:$0xff]
  %v573 = vld [vmem:[%s5 + $0x8] sm:$0xff]
  %v574 = vld [vmem:[%s5 + $0x10] sm:$0xff]
  %v575 = vld [vmem:[%s5 + $0x18] sm:$0xff]
  %v576 = vld [vmem:[%s25] sm:$0xff]
  %v577 = vld [vmem:[%s25 + $0x8] sm:$0xff]
  %v578 = vld [vmem:[%s25 + $0x10] sm:$0xff]
  %v579 = vld [vmem:[%s25 + $0x18] sm:$0xff]
  %v580 = vld [vmem:[%s31] sm:$0x1]
  %v582 = vlaneseq
  %v583 = vshrl.u32 %v582, 7
  %v584 = vsub.s32 0, %v583
  %v585 = vrot.slane %v580, %v584
  %v588 = vsel %vm251, %v293, 0
  %v591 = vsel %vm251, %v294, 0
  %v594 = vsel %vm251, %v570, 0
  %v597 = vsel %vm251, %v571, 0
  %599 = vmatprep.subr.mxu0 0.0
  %600 = vmatpush1.msra.mxu0 %v576
  %601 = vmatprep.subr.mxu0 0.0
  %602 = vmatpush1.msra.mxu0 %v577
  %603 = vmatprep.subr.mxu0 0.0
  %604 = vmatpush1.msra.mxu0 %v578
  %605 = vmatprep.subr.mxu0 0.0
  %606 = vmatpush1.msra.mxu0 %v579
  %607 = vmatprep.subr.mxu0 0.0
  %608 = vmatpush1.msra.mxu0 0.0
  %609 = vmatprep.subr.mxu0 0.0
  %610 = vmatpush1.msra.mxu0 0.0
  %611 = vmatprep.subr.mxu0 0.0
  %612 = vmatpush1.msra.mxu0 0.0
  %613 = vmatprep.subr.mxu0 0.0
  %614 = vmatpush1.msra.mxu0 0.0
  %615 = vmatprep.subr.mxu0 0.0
  %616 = vmatpush1.msra.mxu0 0.0
  %617 = vmatprep.subr.mxu0 0.0
  %618 = vmatpush1.msra.mxu0 0.0
  %619 = vmatprep.subr.mxu0 0.0
  %620 = vmatpush1.msra.mxu0 0.0
  %621 = vmatprep.subr.mxu0 0.0
  %622 = vmatpush1.msra.mxu0 0.0
  %623 = vmatprep.subr.mxu0 0.0
  %624 = vmatpush1.msra.mxu0 0.0
  %625 = vmatprep.subr.mxu0 0.0
  %626 = vmatpush1.msra.mxu0 0.0
  %627 = vmatprep.subr.mxu0 0.0
  %628 = vmatpush1.msra.mxu0 0.0
  %629 = vmatprep.subr.mxu0 0.0
  %630 = vmatpush1.msra.mxu0 0.0
  %631 = vmatprep.subr.mxu0 0.0
  %632 = vmatpush1.msra.mxu0 0.0
  %633 = vmatprep.subr.mxu0 0.0
  %634 = vmatpush1.msra.mxu0 0.0
  %635 = vmatprep.subr.mxu0 0.0
  %636 = vmatpush1.msra.mxu0 0.0
  %637 = vmatprep.subr.mxu0 0.0
  %638 = vmatpush1.msra.mxu0 0.0
  %639 = vmatprep.subr.mxu0 0.0
  %640 = vmatpush1.msra.mxu0 0.0
  %641 = vmatprep.subr.mxu0 0.0
  %642 = vmatpush1.msra.mxu0 0.0
  %643 = vmatprep.subr.mxu0 0.0
  %644 = vmatpush1.msra.mxu0 0.0
  %645 = vmatprep.subr.mxu0 0.0
  %646 = vmatpush1.msra.mxu0 0.0
  %647 = vmatprep.subr.mxu0 0.0
  %648 = vmatpush1.msra.mxu0 0.0
  %649 = vmatprep.subr.mxu0 0.0
  %650 = vmatpush1.msra.mxu0 0.0
  %651 = vmatprep.subr.mxu0 0.0
  %652 = vmatpush1.msra.mxu0 0.0
  %653 = vmatprep.subr.mxu0 0.0
  %654 = vmatpush1.msra.mxu0 0.0
  %655 = vmatprep.subr.mxu0 0.0
  %656 = vmatpush1.msra.mxu0 0.0
  %657 = vmatprep.subr.mxu0 0.0
  %658 = vmatpush1.msra.mxu0 0.0
  %659 = vmatprep.subr.mxu0 0.0
  %660 = vmatpush1.msra.mxu0 0.0
  %661 = vmatprep.subr.mxu0 0.0
  %662 = vmatpush1.msra.mxu0 0.0
  %663 = vmatprep.mubr.f32.mxu0 0.0
  %664 = vmatmul.mubr.f32.gmra.mrb[0].mxu0 %v588
  %v665 = vpop.f32.mrb[0].mxu0
  %v666 = vadd.f32 %v585, %v665
  %v667 = vpop.f32.mrb[0].mxu0
  %668 = vmatprep.mubr.f32.mxu0 0.0
  %669 = vmatmul.mubr.f32.gmra.mrb[0].mxu0 %v591
  %v670 = vpop.f32.mrb[0].mxu0
  %v671 = vadd.f32 %v585, %v670
  %v672 = vpop.f32.mrb[0].mxu0
  %673 = vmatprep.mubr.f32.mxu0 0.0
  %674 = vmatmul.mubr.f32.gmra.mrb[0].mxu0 %v594
  %v675 = vpop.f32.mrb[0].mxu0
  %v676 = vadd.f32 %v585, %v675
  %v677 = vpop.f32.mrb[0].mxu0
  %678 = vmatprep.mubr.f32.mxu0 0.0
  %679 = vmatmul.mubr.f32.gmra.mrb[0].mxu0 %v597
  %v680 = vpop.f32.mrb[0].mxu0
  %v681 = vadd.f32 %v585, %v680
  %v682 = vpop.f32.mrb[0].mxu0
  %683 = vdwg.mxu0
  %v684 = vld [vmem:[%s27] sm:$0xff]
  %v685 = vld [vmem:[%s27 + $0x8] sm:$0xff]
  %v686 = vld [vmem:[%s27 + $0x10] sm:$0xff]
  %v687 = vld [vmem:[%s27 + $0x18] sm:$0xff]
  %v688 = vld [vmem:[%s33] sm:$0x1]
  %v690 = vlaneseq
  %v691 = vshrl.u32 %v690, 7
  %v692 = vsub.s32 0, %v691
  %v693 = vrot.slane %v688, %v692
  %695 = vmatprep.subr.mxu0 0.0
  %696 = vmatpush1.msra.mxu0 %v684
  %697 = vmatprep.subr.mxu0 0.0
  %698 = vmatpush1.msra.mxu0 %v685
  %699 = vmatprep.subr.mxu0 0.0
  %700 = vmatpush1.msra.mxu0 %v686
  %701 = vmatprep.subr.mxu0 0.0
  %702 = vmatpush1.msra.mxu0 %v687
  %703 = vmatprep.subr.mxu0 0.0
  %704 = vmatpush1.msra.mxu0 0.0
  %705 = vmatprep.subr.mxu0 0.0
  %706 = vmatpush1.msra.mxu0 0.0
  %707 = vmatprep.subr.mxu0 0.0
  %708 = vmatpush1.msra.mxu0 0.0
  %709 = vmatprep.subr.mxu0 0.0
  %710 = vmatpush1.msra.mxu0 0.0
  %711 = vmatprep.subr.mxu0 0.0
  %712 = vmatpush1.msra.mxu0 0.0
  %713 = vmatprep.subr.mxu0 0.0
  %714 = vmatpush1.msra.mxu0 0.0
  %715 = vmatprep.subr.mxu0 0.0
  %716 = vmatpush1.msra.mxu0 0.0
  %717 = vmatprep.subr.mxu0 0.0
  %718 = vmatpush1.msra.mxu0 0.0
  %719 = vmatprep.subr.mxu0 0.0
  %720 = vmatpush1.msra.mxu0 0.0
  %721 = vmatprep.subr.mxu0 0.0
  %722 = vmatpush1.msra.mxu0 0.0
  %723 = vmatprep.subr.mxu0 0.0
  %724 = vmatpush1.msra.mxu0 0.0
  %725 = vmatprep.subr.mxu0 0.0
  %726 = vmatpush1.msra.mxu0 0.0
  %727 = vmatprep.subr.mxu0 0.0
  %728 = vmatpush1.msra.mxu0 0.0
  %729 = vmatprep.subr.mxu0 0.0
  %730 = vmatpush1.msra.mxu0 0.0
  %731 = vmatprep.subr.mxu0 0.0
  %732 = vmatpush1.msra.mxu0 0.0
  %733 = vmatprep.subr.mxu0 0.0
  %734 = vmatpush1.msra.mxu0 0.0
  %735 = vmatprep.subr.mxu0 0.0
  %736 = vmatpush1.msra.mxu0 0.0
  %737 = vmatprep.subr.mxu0 0.0
  %738 = vmatpush1.msra.mxu0 0.0
  %739 = vmatprep.subr.mxu0 0.0
  %740 = vmatpush1.msra.mxu0 0.0
  %741 = vmatprep.subr.mxu0 0.0
  %742 = vmatpush1.msra.mxu0 0.0
  %743 = vmatprep.subr.mxu0 0.0
  %744 = vmatpush1.msra.mxu0 0.0
  %745 = vmatprep.subr.mxu0 0.0
  %746 = vmatpush1.msra.mxu0 0.0
  %747 = vmatprep.subr.mxu0 0.0
  %748 = vmatpush1.msra.mxu0 0.0
  %749 = vmatprep.subr.mxu0 0.0
  %750 = vmatpush1.msra.mxu0 0.0
  %751 = vmatprep.subr.mxu0 0.0
  %752 = vmatpush1.msra.mxu0 0.0
  %753 = vmatprep.subr.mxu0 0.0
  %754 = vmatpush1.msra.mxu0 0.0
  %755 = vmatprep.subr.mxu0 0.0
  %756 = vmatpush1.msra.mxu0 0.0
  %757 = vmatprep.subr.mxu0 0.0
  %758 = vmatpush1.msra.mxu0 0.0
  %759 = vmatprep.mubr.f32.mxu0 0.0
  %760 = vmatmul.mubr.f32.gmra.mrb[0].mxu0 %v588
  %v761 = vpop.f32.mrb[0].mxu0
  %v762 = vadd.f32 %v693, %v761
  %v763 = vpop.f32.mrb[0].mxu0
  %764 = vmatprep.mubr.f32.mxu0 0.0
  %765 = vmatmul.mubr.f32.gmra.mrb[0].mxu0 %v591
  %v766 = vpop.f32.mrb[0].mxu0
  %v767 = vadd.f32 %v693, %v766
  %v768 = vpop.f32.mrb[0].mxu0
  %769 = vmatprep.mubr.f32.mxu0 0.0
  %770 = vmatmul.mubr.f32.gmra.mrb[0].mxu0 %v594
  %v771 = vpop.f32.mrb[0].mxu0
  %v772 = vadd.f32 %v693, %v771
  %v773 = vpop.f32.mrb[0].mxu0
  %774 = vmatprep.mubr.f32.mxu0 0.0
  %775 = vmatmul.mubr.f32.gmra.mrb[0].mxu0 %v597
  %v776 = vpop.f32.mrb[0].mxu0
  %v777 = vadd.f32 %v693, %v776
  %v778 = vpop.f32.mrb[0].mxu0
  %779 = vdwg.mxu0
  %v780 = vld [vmem:[%s29] sm:$0xff]
  %v781 = vld [vmem:[%s29 + $0x8] sm:$0xff]
  %v782 = vld [vmem:[%s29 + $0x10] sm:$0xff]
  %v783 = vld [vmem:[%s29 + $0x18] sm:$0xff]
  %v784 = vld [vmem:[%s35] sm:$0x1]
  %v786 = vlaneseq
  %v787 = vshrl.u32 %v786, 7
  %v788 = vsub.s32 0, %v787
  %v789 = vrot.slane %v784, %v788
  %791 = vmatprep.subr.mxu0 0.0
  %792 = vmatpush1.msra.mxu0 %v780
  %793 = vmatprep.subr.mxu0 0.0
  %794 = vmatpush1.msra.mxu0 %v781
  %795 = vmatprep.subr.mxu0 0.0
  %796 = vmatpush1.msra.mxu0 %v782
  %797 = vmatprep.subr.mxu0 0.0
  %798 = vmatpush1.msra.mxu0 %v783
  %799 = vmatprep.subr.mxu0 0.0
  %800 = vmatpush1.msra.mxu0 0.0
  %801 = vmatprep.subr.mxu0 0.0
  %802 = vmatpush1.msra.mxu0 0.0
  %803 = vmatprep.subr.mxu0 0.0
  %804 = vmatpush1.msra.mxu0 0.0
  %805 = vmatprep.subr.mxu0 0.0
  %806 = vmatpush1.msra.mxu0 0.0
  %807 = vmatprep.subr.mxu0 0.0
  %808 = vmatpush1.msra.mxu0 0.0
  %809 = vmatprep.subr.mxu0 0.0
  %810 = vmatpush1.msra.mxu0 0.0
  %811 = vmatprep.subr.mxu0 0.0
  %812 = vmatpush1.msra.mxu0 0.0
  %813 = vmatprep.subr.mxu0 0.0
  %814 = vmatpush1.msra.mxu0 0.0
  %815 = vmatprep.subr.mxu0 0.0
  %816 = vmatpush1.msra.mxu0 0.0
  %817 = vmatprep.subr.mxu0 0.0
  %818 = vmatpush1.msra.mxu0 0.0
  %819 = vmatprep.subr.mxu0 0.0
  %820 = vmatpush1.msra.mxu0 0.0
  %821 = vmatprep.subr.mxu0 0.0
  %822 = vmatpush1.msra.mxu0 0.0
  %823 = vmatprep.subr.mxu0 0.0
  %824 = vmatpush1.msra.mxu0 0.0
  %825 = vmatprep.subr.mxu0 0.0
  %826 = vmatpush1.msra.mxu0 0.0
  %827 = vmatprep.subr.mxu0 0.0
  %828 = vmatpush1.msra.mxu0 0.0
  %829 = vmatprep.subr.mxu0 0.0
  %830 = vmatpush1.msra.mxu0 0.0
  %831 = vmatprep.subr.mxu0 0.0
  %832 = vmatpush1.msra.mxu0 0.0
  %833 = vmatprep.subr.mxu0 0.0
  %834 = vmatpush1.msra.mxu0 0.0
  %835 = vmatprep.subr.mxu0 0.0
  %836 = vmatpush1.msra.mxu0 0.0
  %837 = vmatprep.subr.mxu0 0.0
  %838 = vmatpush1.msra.mxu0 0.0
  %839 = vmatprep.subr.mxu0 0.0
  %840 = vmatpush1.msra.mxu0 0.0
  %841 = vmatprep.subr.mxu0 0.0
  %842 = vmatpush1.msra.mxu0 0.0
  %843 = vmatprep.subr.mxu0 0.0
  %844 = vmatpush1.msra.mxu0 0.0
  %845 = vmatprep.subr.mxu0 0.0
  %846 = vmatpush1.msra.mxu0 0.0
  %847 = vmatprep.subr.mxu0 0.0
  %848 = vmatpush1.msra.mxu0 0.0
  %849 = vmatprep.subr.mxu0 0.0
  %850 = vmatpush1.msra.mxu0 0.0
  %851 = vmatprep.subr.mxu0 0.0
  %852 = vmatpush1.msra.mxu0 0.0
  %853 = vmatprep.subr.mxu0 0.0
  %854 = vmatpush1.msra.mxu0 0.0
  %855 = vmatprep.mubr.f32.mxu0 0.0
  %856 = vmatmul.mubr.f32.gmra.mrb[0].mxu0 %v588
  %v857 = vpop.f32.mrb[0].mxu0
  %v858 = vadd.f32 %v789, %v857
  %v859 = vpop.f32.mrb[0].mxu0
  %860 = vmatprep.mubr.f32.mxu0 0.0
  %861 = vmatmul.mubr.f32.gmra.mrb[0].mxu0 %v591
  %v862 = vpop.f32.mrb[0].mxu0
  %v863 = vadd.f32 %v789, %v862
  %v864 = vpop.f32.mrb[0].mxu0
  %865 = vmatprep.mubr.f32.mxu0 0.0
  %866 = vmatmul.mubr.f32.gmra.mrb[0].mxu0 %v594
  %v867 = vpop.f32.mrb[0].mxu0
  %v868 = vadd.f32 %v789, %v867
  %v869 = vpop.f32.mrb[0].mxu0
  %870 = vmatprep.mubr.f32.mxu0 0.0
  %871 = vmatmul.mubr.f32.gmra.mrb[0].mxu0 %v597
  %v872 = vpop.f32.mrb[0].mxu0
  %v873 = vadd.f32 %v789, %v872
  %v874 = vpop.f32.mrb[0].mxu0
  %875 = vdwg.mxu0
  %vm876 = vcmask 130048
  %v878 = vsel %vm876, %v666, 0
  %v881 = vsel %vm876, %v671, 0
  %v884 = vsel %vm876, %v676, 0
  %v887 = vsel %vm876, %v681, 0
  %v890 = vsel %vm876, %v762, 0
  %v893 = vsel %vm876, %v767, 0
  %v896 = vsel %vm876, %v772, 0
  %v899 = vsel %vm876, %v777, 0
  %901 = vmatprep.subr.mxu0 0.0
  %902 = vmatpush1.xpose.msra.mxu0 %v890
  %903 = vmatprep.subr.mxu0 0.0
  %904 = vmatpush1.xpose.msra.mxu0 %v893
  %905 = vmatprep.subr.mxu0 0.0
  %906 = vmatpush1.xpose.msra.mxu0 %v896
  %907 = vmatprep.subr.mxu0 0.0
  %908 = vmatpush1.xpose.msra.mxu0 %v899
  %909 = vmatprep.subr.mxu0 0.0
  %910 = vmatpush1.xpose.msra.mxu0 0.0
  %911 = vmatprep.subr.mxu0 0.0
  %912 = vmatpush1.xpose.msra.mxu0 0.0
  %913 = vmatprep.subr.mxu0 0.0
  %914 = vmatpush1.xpose.msra.mxu0 0.0
  %915 = vmatprep.subr.mxu0 0.0
  %916 = vmatpush1.xpose.msra.mxu0 0.0
  %917 = vmatprep.subr.mxu0 0.0
  %918 = vmatpush1.xpose.msra.mxu0 0.0
  %919 = vmatprep.subr.mxu0 0.0
  %920 = vmatpush1.xpose.msra.mxu0 0.0
  %921 = vmatprep.subr.mxu0 0.0
  %922 = vmatpush1.xpose.msra.mxu0 0.0
  %923 = vmatprep.subr.mxu0 0.0
  %924 = vmatpush1.xpose.msra.mxu0 0.0
  %925 = vmatprep.subr.mxu0 0.0
  %926 = vmatpush1.xpose.msra.mxu0 0.0
  %927 = vmatprep.subr.mxu0 0.0
  %928 = vmatpush1.xpose.msra.mxu0 0.0
  %929 = vmatprep.subr.mxu0 0.0
  %930 = vmatpush1.xpose.msra.mxu0 0.0
  %931 = vmatprep.subr.mxu0 0.0
  %932 = vmatpush1.xpose.msra.mxu0 0.0
  %933 = vmatprep.subr.mxu0 0.0
  %934 = vmatpush1.xpose.msra.mxu0 0.0
  %935 = vmatprep.subr.mxu0 0.0
  %936 = vmatpush1.xpose.msra.mxu0 0.0
  %937 = vmatprep.subr.mxu0 0.0
  %938 = vmatpush1.xpose.msra.mxu0 0.0
  %939 = vmatprep.subr.mxu0 0.0
  %940 = vmatpush1.xpose.msra.mxu0 0.0
  %941 = vmatprep.subr.mxu0 0.0
  %942 = vmatpush1.xpose.msra.mxu0 0.0
  %943 = vmatprep.subr.mxu0 0.0
  %944 = vmatpush1.xpose.msra.mxu0 0.0
  %945 = vmatprep.subr.mxu0 0.0
  %946 = vmatpush1.xpose.msra.mxu0 0.0
  %947 = vmatprep.subr.mxu0 0.0
  %948 = vmatpush1.xpose.msra.mxu0 0.0
  %949 = vmatprep.subr.mxu0 0.0
  %950 = vmatpush1.xpose.msra.mxu0 0.0
  %951 = vmatprep.subr.mxu0 0.0
  %952 = vmatpush1.xpose.msra.mxu0 0.0
  %953 = vmatprep.subr.mxu0 0.0
  %954 = vmatpush1.xpose.msra.mxu0 0.0
  %955 = vmatprep.subr.mxu0 0.0
  %956 = vmatpush1.xpose.msra.mxu0 0.0
  %957 = vmatprep.subr.mxu0 0.0
  %958 = vmatpush1.xpose.msra.mxu0 0.0
  %959 = vmatprep.subr.mxu0 0.0
  %960 = vmatpush1.xpose.msra.mxu0 0.0
  %961 = vmatprep.subr.mxu0 0.0
  %962 = vmatpush1.xpose.msra.mxu0 0.0
  %963 = vmatprep.subr.mxu0 0.0
  %964 = vmatpush1.xpose.msra.mxu0 0.0
  %965 = vmatprep.mubr.f32.mxu0 0.0
  %966 = vmatmul.mubr.f32.gmra.mrb[0].mxu0 %v878
  %v967 = vpop.f32.mrb[0].mxu0
  %v968 = vadd.f32 0.0, %v967
  %v969 = vpop.f32.mrb[0].mxu0
  %970 = vmatprep.mubr.f32.mxu0 0.0
  %971 = vmatmul.mubr.f32.gmra.mrb[0].mxu0 %v881
  %v972 = vpop.f32.mrb[0].mxu0
  %v973 = vadd.f32 0.0, %v972
  %v974 = vpop.f32.mrb[0].mxu0
  %975 = vmatprep.mubr.f32.mxu0 0.0
  %976 = vmatmul.mubr.f32.gmra.mrb[0].mxu0 %v884
  %v977 = vpop.f32.mrb[0].mxu0
  %v978 = vadd.f32 0.0, %v977
  %v979 = vpop.f32.mrb[0].mxu0
  %980 = vmatprep.mubr.f32.mxu0 0.0
  %981 = vmatmul.mubr.f32.gmra.mrb[0].mxu0 %v887
  %v982 = vpop.f32.mrb[0].mxu0
  %v983 = vadd.f32 0.0, %v982
  %v984 = vpop.f32.mrb[0].mxu0
  %985 = vdwg.mxu0
  %v986 = vmul.f32 %v968, 0.25
  %v987 = vmul.f32 %v973, 0.25
  %v988 = vmul.f32 %v978, 0.25
  %v989 = vmul.f32 %v983, 0.25
  %v990 = vadd.f32 %v986, %v572
  %v991 = vadd.f32 %v987, %v573
  %v992 = vadd.f32 %v988, %v574
  %v993 = vadd.f32 %v989, %v575
  %v994 = vsel %vm251, %v990, -inf
  %995 = vmax.xlane.f32.xlu0 %v994
  %v996 = vpop.xlane.xlu0 %995
  %v997 = vsel %vm251, %v991, -inf
  %998 = vmax.xlane.f32.xlu0 %v997
  %v999 = vpop.xlane.xlu0 %998
  %v1000 = vsel %vm251, %v992, -inf
  %1001 = vmax.xlane.f32.xlu0 %v1000
  %v1002 = vpop.xlane.xlu0 %1001
  %v1003 = vsel %vm251, %v993, -inf
  %1004 = vmax.xlane.f32.xlu0 %v1003
  %v1005 = vpop.xlane.xlu0 %1004
  %v1006 = vsub.f32 %v990, %v996
  %v1007 = vsub.f32 %v991, %v999
  %v1008 = vsub.f32 %v992, %v1002
  %v1009 = vsub.f32 %v993, %v1005
  %v1010 = vmul.f32 %v1006, 1.442695
  %v1011 = vpow.pop %v1010
  %v1012 = vmul.f32 %v1007, 1.442695
  %v1013 = vpow.pop %v1012
  %v1014 = vmul.f32 %v1008, 1.442695
  %v1015 = vpow.pop %v1014
  %v1016 = vmul.f32 %v1009, 1.442695
  %v1017 = vpow.pop %v1016
  %v1018 = vsel %vm251, %v1011, 0.0
  %1019 = vadd.xlane.f32.xlu0 %v1018
  %v1020 = vpop.xlane.xlu0 %1019
  %v1021 = vsel %vm251, %v1013, 0.0
  %1022 = vadd.xlane.f32.xlu0 %v1021
  %v1023 = vpop.xlane.xlu0 %1022
  %v1024 = vsel %vm251, %v1015, 0.0
  %1025 = vadd.xlane.f32.xlu0 %v1024
  %v1026 = vpop.xlane.xlu0 %1025
  %v1027 = vsel %vm251, %v1017, 0.0
  %1028 = vadd.xlane.f32.xlu0 %v1027
  %v1029 = vpop.xlane.xlu0 %1028
  %v1030 = vrcp.pop %v1020
  %v1031 = vrcp.pop %v1023
  %v1032 = vrcp.pop %v1026
  %v1033 = vrcp.pop %v1029
  %v1034 = vmul.f32 %v1011, %v1030
  %v1035 = vmul.f32 %v1013, %v1031
  %v1036 = vmul.f32 %v1015, %v1032
  %v1037 = vmul.f32 %v1017, %v1033
  %v1039 = vsel %vm251, %v1034, 0
  %v1042 = vsel %vm251, %v1035, 0
  %v1045 = vsel %vm251, %v1036, 0
  %v1048 = vsel %vm251, %v1037, 0
  %1050 = vmatprep.subr.mxu0 0.0
  %1051 = vmatpush1.msra.mxu0 %v858
  %1052 = vmatprep.subr.mxu0 0.0
  %1053 = vmatpush1.msra.mxu0 %v863
  %1054 = vmatprep.subr.mxu0 0.0
  %1055 = vmatpush1.msra.mxu0 %v868
  %1056 = vmatprep.subr.mxu0 0.0
  %1057 = vmatpush1.msra.mxu0 %v873
  %1058 = vmatprep.subr.mxu0 0.0
  %1059 = vmatpush1.msra.mxu0 0.0
  %1060 = vmatprep.subr.mxu0 0.0
  %1061 = vmatpush1.msra.mxu0 0.0
  %1062 = vmatprep.subr.mxu0 0.0
  %1063 = vmatpush1.msra.mxu0 0.0
  %1064 = vmatprep.subr.mxu0 0.0
  %1065 = vmatpush1.msra.mxu0 0.0
  %1066 = vmatprep.subr.mxu0 0.0
  %1067 = vmatpush1.msra.mxu0 0.0
  %1068 = vmatprep.subr.mxu0 0.0
  %1069 = vmatpush1.msra.mxu0 0.0
  %1070 = vmatprep.subr.mxu0 0.0
  %1071 = vmatpush1.msra.mxu0 0.0
  %1072 = vmatprep.subr.mxu0 0.0
  %1073 = vmatpush1.msra.mxu0 0.0
  %1074 = vmatprep.subr.mxu0 0.0
  %1075 = vmatpush1.msra.mxu0 0.0
  %1076 = vmatprep.subr.mxu0 0.0
  %1077 = vmatpush1.msra.mxu0 0.0
  %1078 = vmatprep.subr.mxu0 0.0
  %1079 = vmatpush1.msra.mxu0 0.0
  %1080 = vmatprep.subr.mxu0 0.0
  %1081 = vmatpush1.msra.mxu0 0.0
  %1082 = vmatprep.subr.mxu0 0.0
  %1083 = vmatpush1.msra.mxu0 0.0
  %1084 = vmatprep.subr.mxu0 0.0
  %1085 = vmatpush1.msra.mxu0 0.0
  %1086 = vmatprep.subr.mxu0 0.0
  %1087 = vmatpush1.msra.mxu0 0.0
  %1088 = vmatprep.subr.mxu0 0.0
  %1089 = vmatpush1.msra.mxu0 0.0
  %1090 = vmatprep.subr.mxu0 0.0
  %1091 = vmatpush1.msra.mxu0 0.0
  %1092 = vmatprep.subr.mxu0 0.0
  %1093 = vmatpush1.msra.mxu0 0.0
  %1094 = vmatprep.subr.mxu0 0.0
  %1095 = vmatpush1.msra.mxu0 0.0
  %1096 = vmatprep.subr.mxu0 0.0
  %1097 = vmatpush1.msra.mxu0 0.0
  %1098 = vmatprep.subr.mxu0 0.0
  %1099 = vmatpush1.msra.mxu0 0.0
  %1100 = vmatprep.subr.mxu0 0.0
  %1101 = vmatpush1.msra.mxu0 0.0
  %1102 = vmatprep.subr.mxu0 0.0
  %1103 = vmatpush1.msra.mxu0 0.0
  %1104 = vmatprep.subr.mxu0 0.0
  %1105 = vmatpush1.msra.mxu0 0.0
  %1106 = vmatprep.subr.mxu0 0.0
  %1107 = vmatpush1.msra.mxu0 0.0
  %1108 = vmatprep.subr.mxu0 0.0
  %1109 = vmatpush1.msra.mxu0 0.0
  %1110 = vmatprep.subr.mxu0 0.0
  %1111 = vmatpush1.msra.mxu0 0.0
  %1112 = vmatprep.subr.mxu0 0.0
  %1113 = vmatpush1.msra.mxu0 0.0
  %1114 = vmatprep.mubr.f32.mxu0 0.0
  %1115 = vmatmul.mubr.f32.gmra.mrb[0].mxu0 %v1039
  %v1116 = vpop.f32.mrb[0].mxu0
  %v1117 = vadd.f32 0.0, %v1116
  %v1118 = vpop.f32.mrb[0].mxu0
  %1119 = vmatprep.mubr.f32.mxu0 0.0
  %1120 = vmatmul.mubr.f32.gmra.mrb[0].mxu0 %v1042
  %v1121 = vpop.f32.mrb[0].mxu0
  %v1122 = vadd.f32 0.0, %v1121
  %v1123 = vpop.f32.mrb[0].mxu0
  %1124 = vmatprep.mubr.f32.mxu0 0.0
  %1125 = vmatmul.mubr.f32.gmra.mrb[0].mxu0 %v1045
  %v1126 = vpop.f32.mrb[0].mxu0
  %v1127 = vadd.f32 0.0, %v1126
  %v1128 = vpop.f32.mrb[0].mxu0
  %1129 = vmatprep.mubr.f32.mxu0 0.0
  %1130 = vmatmul.mubr.f32.gmra.mrb[0].mxu0 %v1048
  %v1131 = vpop.f32.mrb[0].mxu0
  %v1132 = vadd.f32 0.0, %v1131
  %v1133 = vpop.f32.mrb[0].mxu0
  %1134 = vdwg.mxu0
  %v1135 = vld [vmem:[%s37] sm:$0xff]
  %v1136 = vld [vmem:[%s37 + $0x8] sm:$0xff]
  %s1137 = scalar_lea.vmem %s25, 32
  %v1138 = vld [vmem:[%s1137] sm:$0xff]
  %v1139 = vld [vmem:[%s1137 + $0x8] sm:$0xff]
  %v1140 = vld [vmem:[%s1137 + $0x10] sm:$0xff]
  %v1141 = vld [vmem:[%s1137 + $0x18] sm:$0xff]
  %s1142 = scalar_lea.vmem %s31, 1
  %v1143 = vld [vmem:[%s1142] sm:$0x1]
  %v1145 = vlaneseq
  %v1146 = vshrl.u32 %v1145, 7
  %v1147 = vsub.s32 0, %v1146
  %v1148 = vrot.slane %v1143, %v1147
  %1150 = vmatprep.subr.mxu0 0.0
  %1151 = vmatpush1.msra.mxu0 %v1138
  %1152 = vmatprep.subr.mxu0 0.0
  %1153 = vmatpush1.msra.mxu0 %v1139
  %1154 = vmatprep.subr.mxu0 0.0
  %1155 = vmatpush1.msra.mxu0 %v1140
  %1156 = vmatprep.subr.mxu0 0.0
  %1157 = vmatpush1.msra.mxu0 %v1141
  %1158 = vmatprep.subr.mxu0 0.0
  %1159 = vmatpush1.msra.mxu0 0.0
  %1160 = vmatprep.subr.mxu0 0.0
  %1161 = vmatpush1.msra.mxu0 0.0
  %1162 = vmatprep.subr.mxu0 0.0
  %1163 = vmatpush1.msra.mxu0 0.0
  %1164 = vmatprep.subr.mxu0 0.0
  %1165 = vmatpush1.msra.mxu0 0.0
  %1166 = vmatprep.subr.mxu0 0.0
  %1167 = vmatpush1.msra.mxu0 0.0
  %1168 = vmatprep.subr.mxu0 0.0
  %1169 = vmatpush1.msra.mxu0 0.0
  %1170 = vmatprep.subr.mxu0 0.0
  %1171 = vmatpush1.msra.mxu0 0.0
  %1172 = vmatprep.subr.mxu0 0.0
  %1173 = vmatpush1.msra.mxu0 0.0
  %1174 = vmatprep.subr.mxu0 0.0
  %1175 = vmatpush1.msra.mxu0 0.0
  %1176 = vmatprep.subr.mxu0 0.0
  %1177 = vmatpush1.msra.mxu0 0.0
  %1178 = vmatprep.subr.mxu0 0.0
  %1179 = vmatpush1.msra.mxu0 0.0
  %1180 = vmatprep.subr.mxu0 0.0
  %1181 = vmatpush1.msra.mxu0 0.0
  %1182 = vmatprep.subr.mxu0 0.0
  %1183 = vmatpush1.msra.mxu0 0.0
  %1184 = vmatprep.subr.mxu0 0.0
  %1185 = vmatpush1.msra.mxu0 0.0
  %1186 = vmatprep.subr.mxu0 0.0
  %1187 = vmatpush1.msra.mxu0 0.0
  %1188 = vmatprep.subr.mxu0 0.0
  %1189 = vmatpush1.msra.mxu0 0.0
  %1190 = vmatprep.subr.mxu0 0.0
  %1191 = vmatpush1.msra.mxu0 0.0
  %1192 = vmatprep.subr.mxu0 0.0
  %1193 = vmatpush1.msra.mxu0 0.0
  %1194 = vmatprep.subr.mxu0 0.0
  %1195 = vmatpush1.msra.mxu0 0.0
  %1196 = vmatprep.subr.mxu0 0.0
  %1197 = vmatpush1.msra.mxu0 0.0
  %1198 = vmatprep.subr.mxu0 0.0
  %1199 = vmatpush1.msra.mxu0 0.0
  %1200 = vmatprep.subr.mxu0 0.0
  %1201 = vmatpush1.msra.mxu0 0.0
  %1202 = vmatprep.subr.mxu0 0.0
  %1203 = vmatpush1.msra.mxu0 0.0
  %1204 = vmatprep.subr.mxu0 0.0
  %1205 = vmatpush1.msra.mxu0 0.0
  %1206 = vmatprep.subr.mxu0 0.0
  %1207 = vmatpush1.msra.mxu0 0.0
  %1208 = vmatprep.subr.mxu0 0.0
  %1209 = vmatpush1.msra.mxu0 0.0
  %1210 = vmatprep.subr.mxu0 0.0
  %1211 = vmatpush1.msra.mxu0 0.0
  %1212 = vmatprep.subr.mxu0 0.0
  %1213 = vmatpush1.msra.mxu0 0.0
  %1214 = vmatprep.mubr.f32.mxu0 0.0
  %1215 = vmatmul.mubr.f32.gmra.mrb[0].mxu0 %v588
  %v1216 = vpop.f32.mrb[0].mxu0
  %v1217 = vadd.f32 %v1148, %v1216
  %v1218 = vpop.f32.mrb[0].mxu0
  %1219 = vmatprep.mubr.f32.mxu0 0.0
  %1220 = vmatmul.mubr.f32.gmra.mrb[0].mxu0 %v591
  %v1221 = vpop.f32.mrb[0].mxu0
  %v1222 = vadd.f32 %v1148, %v1221
  %v1223 = vpop.f32.mrb[0].mxu0
  %1224 = vmatprep.mubr.f32.mxu0 0.0
  %1225 = vmatmul.mubr.f32.gmra.mrb[0].mxu0 %v594
  %v1226 = vpop.f32.mrb[0].mxu0
  %v1227 = vadd.f32 %v1148, %v1226
  %v1228 = vpop.f32.mrb[0].mxu0
  %1229 = vmatprep.mubr.f32.mxu0 0.0
  %1230 = vmatmul.mubr.f32.gmra.mrb[0].mxu0 %v597
  %v1231 = vpop.f32.mrb[0].mxu0
  %v1232 = vadd.f32 %v1148, %v1231
  %v1233 = vpop.f32.mrb[0].mxu0
  %1234 = vdwg.mxu0
  %s1235 = scalar_lea.vmem %s27, 32
  %v1236 = vld [vmem:[%s1235] sm:$0xff]
  %v1237 = vld [vmem:[%s1235 + $0x8] sm:$0xff]
  %v1238 = vld [vmem:[%s1235 + $0x10] sm:$0xff]
  %v1239 = vld [vmem:[%s1235 + $0x18] sm:$0xff]
  %s1240 = scalar_lea.vmem %s33, 1
  %v1241 = vld [vmem:[%s1240] sm:$0x1]
  %v1243 = vlaneseq
  %v1244 = vshrl.u32 %v1243, 7
  %v1245 = vsub.s32 0, %v1244
  %v1246 = vrot.slane %v1241, %v1245
  %1248 = vmatprep.subr.mxu0 0.0
  %1249 = vmatpush1.msra.mxu0 %v1236
  %1250 = vmatprep.subr.mxu0 0.0
  %1251 = vmatpush1.msra.mxu0 %v1237
  %1252 = vmatprep.subr.mxu0 0.0
  %1253 = vmatpush1.msra.mxu0 %v1238
  %1254 = vmatprep.subr.mxu0 0.0
  %1255 = vmatpush1.msra.mxu0 %v1239
  %1256 = vmatprep.subr.mxu0 0.0
  %1257 = vmatpush1.msra.mxu0 0.0
  %1258 = vmatprep.subr.mxu0 0.0
  %1259 = vmatpush1.msra.mxu0 0.0
  %1260 = vmatprep.subr.mxu0 0.0
  %1261 = vmatpush1.msra.mxu0 0.0
  %1262 = vmatprep.subr.mxu0 0.0
  %1263 = vmatpush1.msra.mxu0 0.0
  %1264 = vmatprep.subr.mxu0 0.0
  %1265 = vmatpush1.msra.mxu0 0.0
  %1266 = vmatprep.subr.mxu0 0.0
  %1267 = vmatpush1.msra.mxu0 0.0
  %1268 = vmatprep.subr.mxu0 0.0
  %1269 = vmatpush1.msra.mxu0 0.0
  %1270 = vmatprep.subr.mxu0 0.0
  %1271 = vmatpush1.msra.mxu0 0.0
  %1272 = vmatprep.subr.mxu0 0.0
  %1273 = vmatpush1.msra.mxu0 0.0
  %1274 = vmatprep.subr.mxu0 0.0
  %1275 = vmatpush1.msra.mxu0 0.0
  %1276 = vmatprep.subr.mxu0 0.0
  %1277 = vmatpush1.msra.mxu0 0.0
  %1278 = vmatprep.subr.mxu0 0.0
  %1279 = vmatpush1.msra.mxu0 0.0
  %1280 = vmatprep.subr.mxu0 0.0
  %1281 = vmatpush1.msra.mxu0 0.0
  %1282 = vmatprep.subr.mxu0 0.0
  %1283 = vmatpush1.msra.mxu0 0.0
  %1284 = vmatprep.subr.mxu0 0.0
  %1285 = vmatpush1.msra.mxu0 0.0
  %1286 = vmatprep.subr.mxu0 0.0
  %1287 = vmatpush1.msra.mxu0 0.0
  %1288 = vmatprep.subr.mxu0 0.0
  %1289 = vmatpush1.msra.mxu0 0.0
  %1290 = vmatprep.subr.mxu0 0.0
  %1291 = vmatpush1.msra.mxu0 0.0
  %1292 = vmatprep.subr.mxu0 0.0
  %1293 = vmatpush1.msra.mxu0 0.0
  %1294 = vmatprep.subr.mxu0 0.0
  %1295 = vmatpush1.msra.mxu0 0.0
  %1296 = vmatprep.subr.mxu0 0.0
  %1297 = vmatpush1.msra.mxu0 0.0
  %1298 = vmatprep.subr.mxu0 0.0
  %1299 = vmatpush1.msra.mxu0 0.0
  %1300 = vmatprep.subr.mxu0 0.0
  %1301 = vmatpush1.msra.mxu0 0.0
  %1302 = vmatprep.subr.mxu0 0.0
  %1303 = vmatpush1.msra.mxu0 0.0
  %1304 = vmatprep.subr.mxu0 0.0
  %1305 = vmatpush1.msra.mxu0 0.0
  %1306 = vmatprep.subr.mxu0 0.0
  %1307 = vmatpush1.msra.mxu0 0.0
  %1308 = vmatprep.subr.mxu0 0.0
  %1309 = vmatpush1.msra.mxu0 0.0
  %1310 = vmatprep.subr.mxu0 0.0
  %1311 = vmatpush1.msra.mxu0 0.0
  %1312 = vmatprep.mubr.f32.mxu0 0.0
  %1313 = vmatmul.mubr.f32.gmra.mrb[0].mxu0 %v588
  %v1314 = vpop.f32.mrb[0].mxu0
  %v1315 = vadd.f32 %v1246, %v1314
  %v1316 = vpop.f32.mrb[0].mxu0
  %1317 = vmatprep.mubr.f32.mxu0 0.0
  %1318 = vmatmul.mubr.f32.gmra.mrb[0].mxu0 %v591
  %v1319 = vpop.f32.mrb[0].mxu0
  %v1320 = vadd.f32 %v1246, %v1319
  %v1321 = vpop.f32.mrb[0].mxu0
  %1322 = vmatprep.mubr.f32.mxu0 0.0
  %1323 = vmatmul.mubr.f32.gmra.mrb[0].mxu0 %v594
  %v1324 = vpop.f32.mrb[0].mxu0
  %v1325 = vadd.f32 %v1246, %v1324
  %v1326 = vpop.f32.mrb[0].mxu0
  %1327 = vmatprep.mubr.f32.mxu0 0.0
  %1328 = vmatmul.mubr.f32.gmra.mrb[0].mxu0 %v597
  %v1329 = vpop.f32.mrb[0].mxu0
  %v1330 = vadd.f32 %v1246, %v1329
  %v1331 = vpop.f32.mrb[0].mxu0
  %1332 = vdwg.mxu0
  %s1333 = scalar_lea.vmem %s29, 32
  %v1334 = vld [vmem:[%s1333] sm:$0xff]
  %v1335 = vld [vmem:[%s1333 + $0x8] sm:$0xff]
  %v1336 = vld [vmem:[%s1333 + $0x10] sm:$0xff]
  %v1337 = vld [vmem:[%s1333 + $0x18] sm:$0xff]
  %s1338 = scalar_lea.vmem %s35, 1
  %v1339 = vld [vmem:[%s1338] sm:$0x1]
  %v1341 = vlaneseq
  %v1342 = vshrl.u32 %v1341, 7
  %v1343 = vsub.s32 0, %v1342
  %v1344 = vrot.slane %v1339, %v1343
  %1346 = vmatprep.subr.mxu0 0.0
  %1347 = vmatpush1.msra.mxu0 %v1334
  %1348 = vmatprep.subr.mxu0 0.0
  %1349 = vmatpush1.msra.mxu0 %v1335
  %1350 = vmatprep.subr.mxu0 0.0
  %1351 = vmatpush1.msra.mxu0 %v1336
  %1352 = vmatprep.subr.mxu0 0.0
  %1353 = vmatpush1.msra.mxu0 %v1337
  %1354 = vmatprep.subr.mxu0 0.0
  %1355 = vmatpush1.msra.mxu0 0.0
  %1356 = vmatprep.subr.mxu0 0.0
  %1357 = vmatpush1.msra.mxu0 0.0
  %1358 = vmatprep.subr.mxu0 0.0
  %1359 = vmatpush1.msra.mxu0 0.0
  %1360 = vmatprep.subr.mxu0 0.0
  %1361 = vmatpush1.msra.mxu0 0.0
  %1362 = vmatprep.subr.mxu0 0.0
  %1363 = vmatpush1.msra.mxu0 0.0
  %1364 = vmatprep.subr.mxu0 0.0
  %1365 = vmatpush1.msra.mxu0 0.0
  %1366 = vmatprep.subr.mxu0 0.0
  %1367 = vmatpush1.msra.mxu0 0.0
  %1368 = vmatprep.subr.mxu0 0.0
  %1369 = vmatpush1.msra.mxu0 0.0
  %1370 = vmatprep.subr.mxu0 0.0
  %1371 = vmatpush1.msra.mxu0 0.0
  %1372 = vmatprep.subr.mxu0 0.0
  %1373 = vmatpush1.msra.mxu0 0.0
  %1374 = vmatprep.subr.mxu0 0.0
  %1375 = vmatpush1.msra.mxu0 0.0
  %1376 = vmatprep.subr.mxu0 0.0
  %1377 = vmatpush1.msra.mxu0 0.0
  %1378 = vmatprep.subr.mxu0 0.0
  %1379 = vmatpush1.msra.mxu0 0.0
  %1380 = vmatprep.subr.mxu0 0.0
  %1381 = vmatpush1.msra.mxu0 0.0
  %1382 = vmatprep.subr.mxu0 0.0
  %1383 = vmatpush1.msra.mxu0 0.0
  %1384 = vmatprep.subr.mxu0 0.0
  %1385 = vmatpush1.msra.mxu0 0.0
  %1386 = vmatprep.subr.mxu0 0.0
  %1387 = vmatpush1.msra.mxu0 0.0
  %1388 = vmatprep.subr.mxu0 0.0
  %1389 = vmatpush1.msra.mxu0 0.0
  %1390 = vmatprep.subr.mxu0 0.0
  %1391 = vmatpush1.msra.mxu0 0.0
  %1392 = vmatprep.subr.mxu0 0.0
  %1393 = vmatpush1.msra.mxu0 0.0
  %1394 = vmatprep.subr.mxu0 0.0
  %1395 = vmatpush1.msra.mxu0 0.0
  %1396 = vmatprep.subr.mxu0 0.0
  %1397 = vmatpush1.msra.mxu0 0.0
  %1398 = vmatprep.subr.mxu0 0.0
  %1399 = vmatpush1.msra.mxu0 0.0
  %1400 = vmatprep.subr.mxu0 0.0
  %1401 = vmatpush1.msra.mxu0 0.0
  %1402 = vmatprep.subr.mxu0 0.0
  %1403 = vmatpush1.msra.mxu0 0.0
  %1404 = vmatprep.subr.mxu0 0.0
  %1405 = vmatpush1.msra.mxu0 0.0
  %1406 = vmatprep.subr.mxu0 0.0
  %1407 = vmatpush1.msra.mxu0 0.0
  %1408 = vmatprep.subr.mxu0 0.0
  %1409 = vmatpush1.msra.mxu0 0.0
  %1410 = vmatprep.mubr.f32.mxu0 0.0
  %1411 = vmatmul.mubr.f32.gmra.mrb[0].mxu0 %v588
  %v1412 = vpop.f32.mrb[0].mxu0
  %v1413 = vadd.f32 %v1344, %v1412
  %v1414 = vpop.f32.mrb[0].mxu0
  %1415 = vmatprep.mubr.f32.mxu0 0.0
  %1416 = vmatmul.mubr.f32.gmra.mrb[0].mxu0 %v591
  %v1417 = vpop.f32.mrb[0].mxu0
  %v1418 = vadd.f32 %v1344, %v1417
  %v1419 = vpop.f32.mrb[0].mxu0
  %1420 = vmatprep.mubr.f32.mxu0 0.0
  %1421 = vmatmul.mubr.f32.gmra.mrb[0].mxu0 %v594
  %v1422 = vpop.f32.mrb[0].mxu0
  %v1423 = vadd.f32 %v1344, %v1422
  %v1424 = vpop.f32.mrb[0].mxu0
  %1425 = vmatprep.mubr.f32.mxu0 0.0
  %1426 = vmatmul.mubr.f32.gmra.mrb[0].mxu0 %v597
  %v1427 = vpop.f32.mrb[0].mxu0
  %v1428 = vadd.f32 %v1344, %v1427
  %v1429 = vpop.f32.mrb[0].mxu0
  %1430 = vdwg.mxu0
  %v1432 = vsel %vm876, %v1217, 0
  %v1435 = vsel %vm876, %v1222, 0
  %v1438 = vsel %vm876, %v1227, 0
  %v1441 = vsel %vm876, %v1232, 0
  %v1444 = vsel %vm876, %v1315, 0
  %v1447 = vsel %vm876, %v1320, 0
  %v1450 = vsel %vm876, %v1325, 0
  %v1453 = vsel %vm876, %v1330, 0
  %1455 = vmatprep.subr.mxu0 0.0
  %1456 = vmatpush1.xpose.msra.mxu0 %v1444
  %1457 = vmatprep.subr.mxu0 0.0
  %1458 = vmatpush1.xpose.msra.mxu0 %v1447
  %1459 = vmatprep.subr.mxu0 0.0
  %1460 = vmatpush1.xpose.msra.mxu0 %v1450
  %1461 = vmatprep.subr.mxu0 0.0
  %1462 = vmatpush1.xpose.msra.mxu0 %v1453
  %1463 = vmatprep.subr.mxu0 0.0
  %1464 = vmatpush1.xpose.msra.mxu0 0.0
  %1465 = vmatprep.subr.mxu0 0.0
  %1466 = vmatpush1.xpose.msra.mxu0 0.0
  %1467 = vmatprep.subr.mxu0 0.0
  %1468 = vmatpush1.xpose.msra.mxu0 0.0
  %1469 = vmatprep.subr.mxu0 0.0
  %1470 = vmatpush1.xpose.msra.mxu0 0.0
  %1471 = vmatprep.subr.mxu0 0.0
  %1472 = vmatpush1.xpose.msra.mxu0 0.0
  %1473 = vmatprep.subr.mxu0 0.0
  %1474 = vmatpush1.xpose.msra.mxu0 0.0
  %1475 = vmatprep.subr.mxu0 0.0
  %1476 = vmatpush1.xpose.msra.mxu0 0.0
  %1477 = vmatprep.subr.mxu0 0.0
  %1478 = vmatpush1.xpose.msra.mxu0 0.0
  %1479 = vmatprep.subr.mxu0 0.0
  %1480 = vmatpush1.xpose.msra.mxu0 0.0
  %1481 = vmatprep.subr.mxu0 0.0
  %1482 = vmatpush1.xpose.msra.mxu0 0.0
  %1483 = vmatprep.subr.mxu0 0.0
  %1484 = vmatpush1.xpose.msra.mxu0 0.0
  %1485 = vmatprep.subr.mxu0 0.0
  %1486 = vmatpush1.xpose.msra.mxu0 0.0
  %1487 = vmatprep.subr.mxu0 0.0
  %1488 = vmatpush1.xpose.msra.mxu0 0.0
  %1489 = vmatprep.subr.mxu0 0.0
  %1490 = vmatpush1.xpose.msra.mxu0 0.0
  %1491 = vmatprep.subr.mxu0 0.0
  %1492 = vmatpush1.xpose.msra.mxu0 0.0
  %1493 = vmatprep.subr.mxu0 0.0
  %1494 = vmatpush1.xpose.msra.mxu0 0.0
  %1495 = vmatprep.subr.mxu0 0.0
  %1496 = vmatpush1.xpose.msra.mxu0 0.0
  %1497 = vmatprep.subr.mxu0 0.0
  %1498 = vmatpush1.xpose.msra.mxu0 0.0
  %1499 = vmatprep.subr.mxu0 0.0
  %1500 = vmatpush1.xpose.msra.mxu0 0.0
  %1501 = vmatprep.subr.mxu0 0.0
  %1502 = vmatpush1.xpose.msra.mxu0 0.0
  %1503 = vmatprep.subr.mxu0 0.0
  %1504 = vmatpush1.xpose.msra.mxu0 0.0
  %1505 = vmatprep.subr.mxu0 0.0
  %1506 = vmatpush1.xpose.msra.mxu0 0.0
  %1507 = vmatprep.subr.mxu0 0.0
  %1508 = vmatpush1.xpose.msra.mxu0 0.0
  %1509 = vmatprep.subr.mxu0 0.0
  %1510 = vmatpush1.xpose.msra.mxu0 0.0
  %1511 = vmatprep.subr.mxu0 0.0
  %1512 = vmatpush1.xpose.msra.mxu0 0.0
  %1513 = vmatprep.subr.mxu0 0.0
  %1514 = vmatpush1.xpose.msra.mxu0 0.0
  %1515 = vmatprep.subr.mxu0 0.0
  %1516 = vmatpush1.xpose.msra.mxu0 0.0
  %1517 = vmatprep.subr.mxu0 0.0
  %1518 = vmatpush1.xpose.msra.mxu0 0.0
  %1519 = vmatprep.mubr.f32.mxu0 0.0
  %1520 = vmatmul.mubr.f32.gmra.mrb[0].mxu0 %v1432
  %v1521 = vpop.f32.mrb[0].mxu0
  %v1522 = vadd.f32 0.0, %v1521
  %v1523 = vpop.f32.mrb[0].mxu0
  %1524 = vmatprep.mubr.f32.mxu0 0.0
  %1525 = vmatmul.mubr.f32.gmra.mrb[0].mxu0 %v1435
  %v1526 = vpop.f32.mrb[0].mxu0
  %v1527 = vadd.f32 0.0, %v1526
  %v1528 = vpop.f32.mrb[0].mxu0
  %1529 = vmatprep.mubr.f32.mxu0 0.0
  %1530 = vmatmul.mubr.f32.gmra.mrb[0].mxu0 %v1438
  %v1531 = vpop.f32.mrb[0].mxu0
  %v1532 = vadd.f32 0.0, %v1531
  %v1533 = vpop.f32.mrb[0].mxu0
  %1534 = vmatprep.mubr.f32.mxu0 0.0
  %1535 = vmatmul.mubr.f32.gmra.mrb[0].mxu0 %v1441
  %v1536 = vpop.f32.mrb[0].mxu0
  %v1537 = vadd.f32 0.0, %v1536
  %v1538 = vpop.f32.mrb[0].mxu0
  %1539 = vdwg.mxu0
  %v1540 = vmul.f32 %v1522, 0.25
  %v1541 = vmul.f32 %v1527, 0.25
  %v1542 = vmul.f32 %v1532, 0.25
  %v1543 = vmul.f32 %v1537, 0.25
  %v1544 = vadd.f32 %v1540, %v572
  %v1545 = vadd.f32 %v1541, %v573
  %v1546 = vadd.f32 %v1542, %v574
  %v1547 = vadd.f32 %v1543, %v575
  %v1548 = vsel %vm251, %v1544, -inf
  %1549 = vmax.xlane.f32.xlu0 %v1548
  %v1550 = vpop.xlane.xlu0 %1549
  %v1551 = vsel %vm251, %v1545, -inf
  %1552 = vmax.xlane.f32.xlu0 %v1551
  %v1553 = vpop.xlane.xlu0 %1552
  %v1554 = vsel %vm251, %v1546, -inf
  %1555 = vmax.xlane.f32.xlu0 %v1554
  %v1556 = vpop.xlane.xlu0 %1555
  %v1557 = vsel %vm251, %v1547, -inf
  %1558 = vmax.xlane.f32.xlu0 %v1557
  %v1559 = vpop.xlane.xlu0 %1558
  %v1560 = vsub.f32 %v1544, %v1550
  %v1561 = vsub.f32 %v1545, %v1553
  %v1562 = vsub.f32 %v1546, %v1556
  %v1563 = vsub.f32 %v1547, %v1559
  %v1564 = vmul.f32 %v1560, 1.442695
  %v1565 = vpow.pop %v1564
  %v1566 = vmul.f32 %v1561, 1.442695
  %v1567 = vpow.pop %v1566
  %v1568 = vmul.f32 %v1562, 1.442695
  %v1569 = vpow.pop %v1568
  %v1570 = vmul.f32 %v1563, 1.442695
  %v1571 = vpow.pop %v1570
  %v1572 = vsel %vm251, %v1565, 0.0
  %1573 = vadd.xlane.f32.xlu0 %v1572
  %v1574 = vpop.xlane.xlu0 %1573
  %v1575 = vsel %vm251, %v1567, 0.0
  %1576 = vadd.xlane.f32.xlu0 %v1575
  %v1577 = vpop.xlane.xlu0 %1576
  %v1578 = vsel %vm251, %v1569, 0.0
  %1579 = vadd.xlane.f32.xlu0 %v1578
  %v1580 = vpop.xlane.xlu0 %1579
  %v1581 = vsel %vm251, %v1571, 0.0
  %1582 = vadd.xlane.f32.xlu0 %v1581
  %v1583 = vpop.xlane.xlu0 %1582
  %v1584 = vrcp.pop %v1574
  %v1585 = vrcp.pop %v1577
  %v1586 = vrcp.pop %v1580
  %v1587 = vrcp.pop %v1583
  %v1588 = vmul.f32 %v1565, %v1584
  %v1589 = vmul.f32 %v1567, %v1585
  %v1590 = vmul.f32 %v1569, %v1586
  %v1591 = vmul.f32 %v1571, %v1587
  %v1593 = vsel %vm251, %v1588, 0
  %v1596 = vsel %vm251, %v1589, 0
  %v1599 = vsel %vm251, %v1590, 0
  %v1602 = vsel %vm251, %v1591, 0
  %1604 = vmatprep.subr.mxu0 0.0
  %1605 = vmatpush1.msra.mxu0 %v1413
  %1606 = vmatprep.subr.mxu0 0.0
  %1607 = vmatpush1.msra.mxu0 %v1418
  %1608 = vmatprep.subr.mxu0 0.0
  %1609 = vmatpush1.msra.mxu0 %v1423
  %1610 = vmatprep.subr.mxu0 0.0
  %1611 = vmatpush1.msra.mxu0 %v1428
  %1612 = vmatprep.subr.mxu0 0.0
  %1613 = vmatpush1.msra.mxu0 0.0
  %1614 = vmatprep.subr.mxu0 0.0
  %1615 = vmatpush1.msra.mxu0 0.0
  %1616 = vmatprep.subr.mxu0 0.0
  %1617 = vmatpush1.msra.mxu0 0.0
  %1618 = vmatprep.subr.mxu0 0.0
  %1619 = vmatpush1.msra.mxu0 0.0
  %1620 = vmatprep.subr.mxu0 0.0
  %1621 = vmatpush1.msra.mxu0 0.0
  %1622 = vmatprep.subr.mxu0 0.0
  %1623 = vmatpush1.msra.mxu0 0.0
  %1624 = vmatprep.subr.mxu0 0.0
  %1625 = vmatpush1.msra.mxu0 0.0
  %1626 = vmatprep.subr.mxu0 0.0
  %1627 = vmatpush1.msra.mxu0 0.0
  %1628 = vmatprep.subr.mxu0 0.0
  %1629 = vmatpush1.msra.mxu0 0.0
  %1630 = vmatprep.subr.mxu0 0.0
  %1631 = vmatpush1.msra.mxu0 0.0
  %1632 = vmatprep.subr.mxu0 0.0
  %1633 = vmatpush1.msra.mxu0 0.0
  %1634 = vmatprep.subr.mxu0 0.0
  %1635 = vmatpush1.msra.mxu0 0.0
  %1636 = vmatprep.subr.mxu0 0.0
  %1637 = vmatpush1.msra.mxu0 0.0
  %1638 = vmatprep.subr.mxu0 0.0
  %1639 = vmatpush1.msra.mxu0 0.0
  %1640 = vmatprep.subr.mxu0 0.0
  %1641 = vmatpush1.msra.mxu0 0.0
  %1642 = vmatprep.subr.mxu0 0.0
  %1643 = vmatpush1.msra.mxu0 0.0
  %1644 = vmatprep.subr.mxu0 0.0
  %1645 = vmatpush1.msra.mxu0 0.0
  %1646 = vmatprep.subr.mxu0 0.0
  %1647 = vmatpush1.msra.mxu0 0.0
  %1648 = vmatprep.subr.mxu0 0.0
  %1649 = vmatpush1.msra.mxu0 0.0
  %1650 = vmatprep.subr.mxu0 0.0
  %1651 = vmatpush1.msra.mxu0 0.0
  %1652 = vmatprep.subr.mxu0 0.0
  %1653 = vmatpush1.msra.mxu0 0.0
  %1654 = vmatprep.subr.mxu0 0.0
  %1655 = vmatpush1.msra.mxu0 0.0
  %1656 = vmatprep.subr.mxu0 0.0
  %1657 = vmatpush1.msra.mxu0 0.0
  %1658 = vmatprep.subr.mxu0 0.0
  %1659 = vmatpush1.msra.mxu0 0.0
  %1660 = vmatprep.subr.mxu0 0.0
  %1661 = vmatpush1.msra.mxu0 0.0
  %1662 = vmatprep.subr.mxu0 0.0
  %1663 = vmatpush1.msra.mxu0 0.0
  %1664 = vmatprep.subr.mxu0 0.0
  %1665 = vmatpush1.msra.mxu0 0.0
  %1666 = vmatprep.subr.mxu0 0.0
  %1667 = vmatpush1.msra.mxu0 0.0
  %1668 = vmatprep.mubr.f32.mxu0 0.0
  %1669 = vmatmul.mubr.f32.gmra.mrb[0].mxu0 %v1593
  %v1670 = vpop.f32.mrb[0].mxu0
  %v1671 = vadd.f32 0.0, %v1670
  %v1672 = vpop.f32.mrb[0].mxu0
  %1673 = vmatprep.mubr.f32.mxu0 0.0
  %1674 = vmatmul.mubr.f32.gmra.mrb[0].mxu0 %v1596
  %v1675 = vpop.f32.mrb[0].mxu0
  %v1676 = vadd.f32 0.0, %v1675
  %v1677 = vpop.f32.mrb[0].mxu0
  %1678 = vmatprep.mubr.f32.mxu0 0.0
  %1679 = vmatmul.mubr.f32.gmra.mrb[0].mxu0 %v1599
  %v1680 = vpop.f32.mrb[0].mxu0
  %v1681 = vadd.f32 0.0, %v1680
  %v1682 = vpop.f32.mrb[0].mxu0
  %1683 = vmatprep.mubr.f32.mxu0 0.0
  %1684 = vmatmul.mubr.f32.gmra.mrb[0].mxu0 %v1602
  %v1685 = vpop.f32.mrb[0].mxu0
  %v1686 = vadd.f32 0.0, %v1685
  %v1687 = vpop.f32.mrb[0].mxu0
  %1688 = vdwg.mxu0
  %s1689 = scalar_lea.vmem %s37, 16
  %v1690 = vld [vmem:[%s1689] sm:$0xff]
  %v1691 = vld [vmem:[%s1689 + $0x8] sm:$0xff]
  %v1693 = vsel %vm876, %v1671, 0
  %v1696 = vsel %vm876, %v1676, 0
  %v1699 = vsel %vm876, %v1681, 0
  %v1702 = vsel %vm876, %v1686, 0
  %1704 = vmatprep.subr.mxu0 0.0
  %1705 = vmatpush1.msra.mxu0 %v1690
  %1706 = vmatprep.subr.mxu0 0.0
  %1707 = vmatpush1.msra.mxu0 %v1691
  %1708 = vmatprep.subr.mxu0 0.0
  %1709 = vmatpush1.msra.mxu0 0.0
  %1710 = vmatprep.subr.mxu0 0.0
  %1711 = vmatpush1.msra.mxu0 0.0
  %1712 = vmatprep.subr.mxu0 0.0
  %1713 = vmatpush1.msra.mxu0 0.0
  %1714 = vmatprep.subr.mxu0 0.0
  %1715 = vmatpush1.msra.mxu0 0.0
  %1716 = vmatprep.subr.mxu0 0.0
  %1717 = vmatpush1.msra.mxu0 0.0
  %1718 = vmatprep.subr.mxu0 0.0
  %1719 = vmatpush1.msra.mxu0 0.0
  %1720 = vmatprep.subr.mxu0 0.0
  %1721 = vmatpush1.msra.mxu0 0.0
  %1722 = vmatprep.subr.mxu0 0.0
  %1723 = vmatpush1.msra.mxu0 0.0
  %1724 = vmatprep.subr.mxu0 0.0
  %1725 = vmatpush1.msra.mxu0 0.0
  %1726 = vmatprep.subr.mxu0 0.0
  %1727 = vmatpush1.msra.mxu0 0.0
  %1728 = vmatprep.subr.mxu0 0.0
  %1729 = vmatpush1.msra.mxu0 0.0
  %1730 = vmatprep.subr.mxu0 0.0
  %1731 = vmatpush1.msra.mxu0 0.0
  %1732 = vmatprep.subr.mxu0 0.0
  %1733 = vmatpush1.msra.mxu0 0.0
  %1734 = vmatprep.subr.mxu0 0.0
  %1735 = vmatpush1.msra.mxu0 0.0
  %1736 = vmatprep.subr.mxu0 0.0
  %1737 = vmatpush1.msra.mxu0 0.0
  %1738 = vmatprep.subr.mxu0 0.0
  %1739 = vmatpush1.msra.mxu0 0.0
  %1740 = vmatprep.subr.mxu0 0.0
  %1741 = vmatpush1.msra.mxu0 0.0
  %1742 = vmatprep.subr.mxu0 0.0
  %1743 = vmatpush1.msra.mxu0 0.0
  %1744 = vmatprep.subr.mxu0 0.0
  %1745 = vmatpush1.msra.mxu0 0.0
  %1746 = vmatprep.subr.mxu0 0.0
  %1747 = vmatpush1.msra.mxu0 0.0
  %1748 = vmatprep.subr.mxu0 0.0
  %1749 = vmatpush1.msra.mxu0 0.0
  %1750 = vmatprep.subr.mxu0 0.0
  %1751 = vmatpush1.msra.mxu0 0.0
  %1752 = vmatprep.subr.mxu0 0.0
  %1753 = vmatpush1.msra.mxu0 0.0
  %1754 = vmatprep.subr.mxu0 0.0
  %1755 = vmatpush1.msra.mxu0 0.0
  %1756 = vmatprep.subr.mxu0 0.0
  %1757 = vmatpush1.msra.mxu0 0.0
  %1758 = vmatprep.subr.mxu0 0.0
  %1759 = vmatpush1.msra.mxu0 0.0
  %1760 = vmatprep.subr.mxu0 0.0
  %1761 = vmatpush1.msra.mxu0 0.0
  %1762 = vmatprep.subr.mxu0 0.0
  %1763 = vmatpush1.msra.mxu0 0.0
  %1764 = vmatprep.subr.mxu0 0.0
  %1765 = vmatpush1.msra.mxu0 0.0
  %1766 = vmatprep.subr.mxu0 0.0
  %1767 = vmatpush1.msra.mxu0 0.0
  %1768 = vmatprep.mubr.f32.mxu0 0.0
  %1769 = vmatmul.mubr.f32.gmra.mrb[0].mxu0 %v1693
  %v1770 = vpop.f32.mrb[0].mxu0
  %v1771 = vadd.f32 0.0, %v1770
  %v1772 = vpop.f32.mrb[0].mxu0
  %1773 = vmatprep.mubr.f32.mxu0 0.0
  %1774 = vmatmul.mubr.f32.gmra.mrb[0].mxu0 %v1696
  %v1775 = vpop.f32.mrb[0].mxu0
  %v1776 = vadd.f32 0.0, %v1775
  %v1777 = vpop.f32.mrb[0].mxu0
  %1778 = vmatprep.mubr.f32.mxu0 0.0
  %1779 = vmatmul.mubr.f32.gmra.mrb[0].mxu0 %v1699
  %v1780 = vpop.f32.mrb[0].mxu0
  %v1781 = vadd.f32 0.0, %v1780
  %v1782 = vpop.f32.mrb[0].mxu0
  %1783 = vmatprep.mubr.f32.mxu0 0.0
  %1784 = vmatmul.mubr.f32.gmra.mrb[0].mxu0 %v1702
  %v1785 = vpop.f32.mrb[0].mxu0
  %v1786 = vadd.f32 0.0, %v1785
  %v1787 = vpop.f32.mrb[0].mxu0
  %1788 = vdwg.mxu0
  %v1790 = vsel %vm876, %v1117, 0
  %v1793 = vsel %vm876, %v1122, 0
  %v1796 = vsel %vm876, %v1127, 0
  %v1799 = vsel %vm876, %v1132, 0
  %1801 = vmatprep.subr.mxu0 0.0
  %1802 = vmatpush1.msra.mxu0 %v1135
  %1803 = vmatprep.subr.mxu0 0.0
  %1804 = vmatpush1.msra.mxu0 %v1136
  %1805 = vmatprep.subr.mxu0 0.0
  %1806 = vmatpush1.msra.mxu0 0.0
  %1807 = vmatprep.subr.mxu0 0.0
  %1808 = vmatpush1.msra.mxu0 0.0
  %1809 = vmatprep.subr.mxu0 0.0
  %1810 = vmatpush1.msra.mxu0 0.0
  %1811 = vmatprep.subr.mxu0 0.0
  %1812 = vmatpush1.msra.mxu0 0.0
  %1813 = vmatprep.subr.mxu0 0.0
  %1814 = vmatpush1.msra.mxu0 0.0
  %1815 = vmatprep.subr.mxu0 0.0
  %1816 = vmatpush1.msra.mxu0 0.0
  %1817 = vmatprep.subr.mxu0 0.0
  %1818 = vmatpush1.msra.mxu0 0.0
  %1819 = vmatprep.subr.mxu0 0.0
  %1820 = vmatpush1.msra.mxu0 0.0
  %1821 = vmatprep.subr.mxu0 0.0
  %1822 = vmatpush1.msra.mxu0 0.0
  %1823 = vmatprep.subr.mxu0 0.0
  %1824 = vmatpush1.msra.mxu0 0.0
  %1825 = vmatprep.subr.mxu0 0.0
  %1826 = vmatpush1.msra.mxu0 0.0
  %1827 = vmatprep.subr.mxu0 0.0
  %1828 = vmatpush1.msra.mxu0 0.0
  %1829 = vmatprep.subr.mxu0 0.0
  %1830 = vmatpush1.msra.mxu0 0.0
  %1831 = vmatprep.subr.mxu0 0.0
  %1832 = vmatpush1.msra.mxu0 0.0
  %1833 = vmatprep.subr.mxu0 0.0
  %1834 = vmatpush1.msra.mxu0 0.0
  %1835 = vmatprep.subr.mxu0 0.0
  %1836 = vmatpush1.msra.mxu0 0.0
  %1837 = vmatprep.subr.mxu0 0.0
  %1838 = vmatpush1.msra.mxu0 0.0
  %1839 = vmatprep.subr.mxu0 0.0
  %1840 = vmatpush1.msra.mxu0 0.0
  %1841 = vmatprep.subr.mxu0 0.0
  %1842 = vmatpush1.msra.mxu0 0.0
  %1843 = vmatprep.subr.mxu0 0.0
  %1844 = vmatpush1.msra.mxu0 0.0
  %1845 = vmatprep.subr.mxu0 0.0
  %1846 = vmatpush1.msra.mxu0 0.0
  %1847 = vmatprep.subr.mxu0 0.0
  %1848 = vmatpush1.msra.mxu0 0.0
  %1849 = vmatprep.subr.mxu0 0.0
  %1850 = vmatpush1.msra.mxu0 0.0
  %1851 = vmatprep.subr.mxu0 0.0
  %1852 = vmatpush1.msra.mxu0 0.0
  %1853 = vmatprep.subr.mxu0 0.0
  %1854 = vmatpush1.msra.mxu0 0.0
  %1855 = vmatprep.subr.mxu0 0.0
  %1856 = vmatpush1.msra.mxu0 0.0
  %1857 = vmatprep.subr.mxu0 0.0
  %1858 = vmatpush1.msra.mxu0 0.0
  %1859 = vmatprep.subr.mxu0 0.0
  %1860 = vmatpush1.msra.mxu0 0.0
  %1861 = vmatprep.subr.mxu0 0.0
  %1862 = vmatpush1.msra.mxu0 0.0
  %1863 = vmatprep.subr.mxu0 0.0
  %1864 = vmatpush1.msra.mxu0 0.0
  %1865 = vmatprep.mubr.f32.mxu0 0.0
  %1866 = vmatmul.mubr.f32.gmra.mrb[0].mxu0 %v1790
  %v1867 = vpop.f32.mrb[0].mxu0
  %v1868 = vadd.f32 %v1771, %v1867
  %v1869 = vpop.f32.mrb[0].mxu0
  %1870 = vmatprep.mubr.f32.mxu0 0.0
  %1871 = vmatmul.mubr.f32.gmra.mrb[0].mxu0 %v1793
  %v1872 = vpop.f32.mrb[0].mxu0
  %v1873 = vadd.f32 %v1776, %v1872
  %v1874 = vpop.f32.mrb[0].mxu0
  %1875 = vmatprep.mubr.f32.mxu0 0.0
  %1876 = vmatmul.mubr.f32.gmra.mrb[0].mxu0 %v1796
  %v1877 = vpop.f32.mrb[0].mxu0
  %v1878 = vadd.f32 %v1781, %v1877
  %v1879 = vpop.f32.mrb[0].mxu0
  %1880 = vmatprep.mubr.f32.mxu0 0.0
  %1881 = vmatmul.mubr.f32.gmra.mrb[0].mxu0 %v1799
  %v1882 = vpop.f32.mrb[0].mxu0
  %v1883 = vadd.f32 %v1786, %v1882
  %v1884 = vpop.f32.mrb[0].mxu0
  %1885 = vdwg.mxu0
  %v1886 = vld [vmem:[%s39] sm:$0x1]
  %v1888 = vlaneseq
  %v1889 = vshrl.u32 %v1888, 7
  %v1890 = vsub.s32 0, %v1889
  %v1891 = vrot.slane %v1886, %v1890
  %v1893 = vadd.f32 %v1868, %v1891
  %v1894 = vadd.f32 %v1873, %v1891
  %v1895 = vadd.f32 %v1878, %v1891
  %v1896 = vadd.f32 %v1883, %v1891
  %v1897 = vadd.f32 %v1893, %v293
  %v1898 = vadd.f32 %v1894, %v294
  %v1899 = vadd.f32 %v1895, %v570
  %v1900 = vadd.f32 %v1896, %v571
  %v1901 = vld [vmem:[%s41] sm:$0x1]
  %v1902 = vld [vmem:[%s43] sm:$0x1]
  %v1903 = vsel %vm251, %v1897, 0.0
  %1904 = vadd.xlane.f32.xlu0 %v1903
  %v1905 = vpop.xlane.xlu0 %1904
  %v1906 = vsel %vm251, %v1898, 0.0
  %1907 = vadd.xlane.f32.xlu0 %v1906
  %v1908 = vpop.xlane.xlu0 %1907
  %v1909 = vsel %vm251, %v1899, 0.0
  %1910 = vadd.xlane.f32.xlu0 %v1909
  %v1911 = vpop.xlane.xlu0 %1910
  %v1912 = vsel %vm251, %v1900, 0.0
  %1913 = vadd.xlane.f32.xlu0 %v1912
  %v1914 = vpop.xlane.xlu0 %1913
  %v1915 = vmul.f32 %v1905, %v258
  %v1916 = vmul.f32 %v1908, %v258
  %v1917 = vmul.f32 %v1911, %v258
  %v1918 = vmul.f32 %v1914, %v258
  %v1919 = vsub.f32 %v1897, %v1915
  %v1920 = vsub.f32 %v1898, %v1916
  %v1921 = vsub.f32 %v1899, %v1917
  %v1922 = vsub.f32 %v1900, %v1918
  %v1923 = vmul.f32 %v1919, %v1919
  %v1924 = vmul.f32 %v1920, %v1920
  %v1925 = vmul.f32 %v1921, %v1921
  %v1926 = vmul.f32 %v1922, %v1922
  %v1927 = vsel %vm251, %v1923, 0.0
  %1928 = vadd.xlane.f32.xlu0 %v1927
  %v1929 = vpop.xlane.xlu0 %1928
  %v1930 = vsel %vm251, %v1924, 0.0
  %1931 = vadd.xlane.f32.xlu0 %v1930
  %v1932 = vpop.xlane.xlu0 %1931
  %v1933 = vsel %vm251, %v1925, 0.0
  %1934 = vadd.xlane.f32.xlu0 %v1933
  %v1935 = vpop.xlane.xlu0 %1934
  %v1936 = vsel %vm251, %v1926, 0.0
  %1937 = vadd.xlane.f32.xlu0 %v1936
  %v1938 = vpop.xlane.xlu0 %1937
  %v1939 = vmul.f32 %v1929, %v258
  %v1940 = vmul.f32 %v1932, %v258
  %v1941 = vmul.f32 %v1935, %v258
  %v1942 = vmul.f32 %v1938, %v258
  %v1943 = vadd.f32 %v1939, 1e-12
  %v1944 = vadd.f32 %v1940, 1e-12
  %v1945 = vadd.f32 %v1941, 1e-12
  %v1946 = vadd.f32 %v1942, 1e-12
  %v1947 = vrsqrt.pop %v1943
  %v1948 = vrsqrt.pop %v1944
  %v1949 = vrsqrt.pop %v1945
  %v1950 = vrsqrt.pop %v1946
  %v1951 = vmul.f32 %v1919, %v1947
  %v1952 = vmul.f32 %v1920, %v1948
  %v1953 = vmul.f32 %v1921, %v1949
  %v1954 = vmul.f32 %v1922, %v1950
  %v1956 = vlaneseq
  %v1957 = vshrl.u32 %v1956, 7
  %v1958 = vsub.s32 0, %v1957
  %v1959 = vrot.slane %v1901, %v1958
  %v1961 = vmul.f32 %v1951, %v1959
  %v1962 = vmul.f32 %v1952, %v1959
  %v1963 = vmul.f32 %v1953, %v1959
  %v1964 = vmul.f32 %v1954, %v1959
  %v1966 = vlaneseq
  %v1967 = vshrl.u32 %v1966, 7
  %v1968 = vsub.s32 0, %v1967
  %v1969 = vrot.slane %v1902, %v1968
  %v1971 = vadd.f32 %v1961, %v1969
  %v1972 = vadd.f32 %v1962, %v1969
  %v1973 = vadd.f32 %v1963, %v1969
  %v1974 = vadd.f32 %v1964, %v1969
  %v1975 = vld [vmem:[%s45] sm:$0xff]
  %v1976 = vld [vmem:[%s45 + $0x8] sm:$0xff]
  %v1977 = vld [vmem:[%s45 + $0x10] sm:$0xff]
  %v1978 = vld [vmem:[%s45 + $0x18] sm:$0xff]
  %v1979 = vld [vmem:[%s47] sm:$0x1]
  %v1981 = vlaneseq
  %v1982 = vshrl.u32 %v1981, 7
  %v1983 = vsub.s32 0, %v1982
  %v1984 = vrot.slane %v1979, %v1983
  %v1987 = vsel %vm251, %v1971, 0
  %v1990 = vsel %vm251, %v1972, 0
  %v1993 = vsel %vm251, %v1973, 0
  %v1996 = vsel %vm251, %v1974, 0
  %1998 = vmatprep.subr.mxu0 0.0
  %1999 = vmatpush1.msra.mxu0 %v1975
  %2000 = vmatprep.subr.mxu0 0.0
  %2001 = vmatpush1.msra.mxu0 %v1976
  %2002 = vmatprep.subr.mxu0 0.0
  %2003 = vmatpush1.msra.mxu0 %v1977
  %2004 = vmatprep.subr.mxu0 0.0
  %2005 = vmatpush1.msra.mxu0 %v1978
  %2006 = vmatprep.subr.mxu0 0.0
  %2007 = vmatpush1.msra.mxu0 0.0
  %2008 = vmatprep.subr.mxu0 0.0
  %2009 = vmatpush1.msra.mxu0 0.0
  %2010 = vmatprep.subr.mxu0 0.0
  %2011 = vmatpush1.msra.mxu0 0.0
  %2012 = vmatprep.subr.mxu0 0.0
  %2013 = vmatpush1.msra.mxu0 0.0
  %2014 = vmatprep.subr.mxu0 0.0
  %2015 = vmatpush1.msra.mxu0 0.0
  %2016 = vmatprep.subr.mxu0 0.0
  %2017 = vmatpush1.msra.mxu0 0.0
  %2018 = vmatprep.subr.mxu0 0.0
  %2019 = vmatpush1.msra.mxu0 0.0
  %2020 = vmatprep.subr.mxu0 0.0
  %2021 = vmatpush1.msra.mxu0 0.0
  %2022 = vmatprep.subr.mxu0 0.0
  %2023 = vmatpush1.msra.mxu0 0.0
  %2024 = vmatprep.subr.mxu0 0.0
  %2025 = vmatpush1.msra.mxu0 0.0
  %2026 = vmatprep.subr.mxu0 0.0
  %2027 = vmatpush1.msra.mxu0 0.0
  %2028 = vmatprep.subr.mxu0 0.0
  %2029 = vmatpush1.msra.mxu0 0.0
  %2030 = vmatprep.subr.mxu0 0.0
  %2031 = vmatpush1.msra.mxu0 0.0
  %2032 = vmatprep.subr.mxu0 0.0
  %2033 = vmatpush1.msra.mxu0 0.0
  %2034 = vmatprep.subr.mxu0 0.0
  %2035 = vmatpush1.msra.mxu0 0.0
  %2036 = vmatprep.subr.mxu0 0.0
  %2037 = vmatpush1.msra.mxu0 0.0
  %2038 = vmatprep.subr.mxu0 0.0
  %2039 = vmatpush1.msra.mxu0 0.0
  %2040 = vmatprep.subr.mxu0 0.0
  %2041 = vmatpush1.msra.mxu0 0.0
  %2042 = vmatprep.subr.mxu0 0.0
  %2043 = vmatpush1.msra.mxu0 0.0
  %2044 = vmatprep.subr.mxu0 0.0
  %2045 = vmatpush1.msra.mxu0 0.0
  %2046 = vmatprep.subr.mxu0 0.0
  %2047 = vmatpush1.msra.mxu0 0.0
  %2048 = vmatprep.subr.mxu0 0.0
  %2049 = vmatpush1.msra.mxu0 0.0
  %2050 = vmatprep.subr.mxu0 0.0
  %2051 = vmatpush1.msra.mxu0 0.0
  %2052 = vmatprep.subr.mxu0 0.0
  %2053 = vmatpush1.msra.mxu0 0.0
  %2054 = vmatprep.subr.mxu0 0.0
  %2055 = vmatpush1.msra.mxu0 0.0
  %2056 = vmatprep.subr.mxu0 0.0
  %2057 = vmatpush1.msra.mxu0 0.0
  %2058 = vmatprep.subr.mxu0 0.0
  %2059 = vmatpush1.msra.mxu0 0.0
  %2060 = vmatprep.subr.mxu0 0.0
  %2061 = vmatpush1.msra.mxu0 0.0
  %2062 = vmatprep.mubr.f32.mxu0 0.0
  %2063 = vmatmul.mubr.f32.gmra.mrb[0].mxu0 %v1987
  %v2064 = vpop.f32.mrb[0].mxu0
  %v2065 = vadd.f32 %v1984, %v2064
  %v2066 = vpop.f32.mrb[0].mxu0
  %2067 = vmatprep.mubr.f32.mxu0 0.0
  %2068 = vmatmul.mubr.f32.gmra.mrb[0].mxu0 %v1990
  %v2069 = vpop.f32.mrb[0].mxu0
  %v2070 = vadd.f32 %v1984, %v2069
  %v2071 = vpop.f32.mrb[0].mxu0
  %2072 = vmatprep.mubr.f32.mxu0 0.0
  %2073 = vmatmul.mubr.f32.gmra.mrb[0].mxu0 %v1993
  %v2074 = vpop.f32.mrb[0].mxu0
  %v2075 = vadd.f32 %v1984, %v2074
  %v2076 = vpop.f32.mrb[0].mxu0
  %2077 = vmatprep.mubr.f32.mxu0 0.0
  %2078 = vmatmul.mubr.f32.gmra.mrb[0].mxu0 %v1996
  %v2079 = vpop.f32.mrb[0].mxu0
  %v2080 = vadd.f32 %v1984, %v2079
  %v2081 = vpop.f32.mrb[0].mxu0
  %2082 = vdwg.mxu0
  %v2083 = vmul.f32 %v2065, 0.5
  %v2084 = vmul.f32 %v2070, 0.5
  %v2085 = vmul.f32 %v2075, 0.5
  %v2086 = vmul.f32 %v2080, 0.5
  %v2087 = vmul.f32 %v2065, 0.044715
  %v2088 = vmul.f32 %v2070, 0.044715
  %v2089 = vmul.f32 %v2075, 0.044715
  %v2090 = vmul.f32 %v2080, 0.044715
  %v2091 = vmul.f32 %v2087, %v2065
  %v2092 = vmul.f32 %v2088, %v2070
  %v2093 = vmul.f32 %v2089, %v2075
  %v2094 = vmul.f32 %v2090, %v2080
  %v2095 = vmul.f32 %v2091, %v2065
  %v2096 = vmul.f32 %v2092, %v2070
  %v2097 = vmul.f32 %v2093, %v2075
  %v2098 = vmul.f32 %v2094, %v2080
  %v2099 = vadd.f32 %v2065, %v2095
  %v2100 = vadd.f32 %v2070, %v2096
  %v2101 = vadd.f32 %v2075, %v2097
  %v2102 = vadd.f32 %v2080, %v2098
  %v2103 = vmul.f32 %v2099, 0.7978846
  %v2104 = vmul.f32 %v2100, 0.7978846
  %v2105 = vmul.f32 %v2101, 0.7978846
  %v2106 = vmul.f32 %v2102, 0.7978846
  %v2107 = vtanh.pop %v2103
  %v2108 = vtanh.pop %v2104
  %v2109 = vtanh.pop %v2105
  %v2110 = vtanh.pop %v2106
  %v2111 = vadd.f32 %v2107, 1.0
  %v2112 = vadd.f32 %v2108, 1.0
  %v2113 = vadd.f32 %v2109, 1.0
  %v2114 = vadd.f32 %v2110, 1.0
  %v2115 = vmul.f32 %v2083, %v2111
  %v2116 = vmul.f32 %v2084, %v2112
  %v2117 = vmul.f32 %v2085, %v2113
  %v2118 = vmul.f32 %v2086, %v2114
  %v2119 = vld [vmem:[%s49] sm:$0xff]
  %v2120 = vld [vmem:[%s49 + $0x8] sm:$0xff]
  %v2121 = vld [vmem:[%s49 + $0x10] sm:$0xff]
  %v2122 = vld [vmem:[%s49 + $0x18] sm:$0xff]
  %v2123 = vld [vmem:[%s49 + $0x20] sm:$0xff]
  %v2124 = vld [vmem:[%s49 + $0x28] sm:$0xff]
  %v2125 = vld [vmem:[%s49 + $0x30] sm:$0xff]
  %v2126 = vld [vmem:[%s49 + $0x38] sm:$0xff]
  %v2127 = vld [vmem:[%s51] sm:$0x1]
  %v2129 = vlaneseq
  %v2130 = vshrl.u32 %v2129, 7
  %v2131 = vsub.s32 0, %v2130
  %v2132 = vrot.slane %v2127, %v2131
  %vm2134 = vcmask 523264
  %v2136 = vsel %vm2134, %v2115, 0
  %v2139 = vsel %vm2134, %v2116, 0
  %v2142 = vsel %vm2134, %v2117, 0
  %v2145 = vsel %vm2134, %v2118, 0
  %2147 = vmatprep.subr.mxu0 0.0
  %2148 = vmatpush1.msra.mxu0 %v2119
  %2149 = vmatprep.subr.mxu0 0.0
  %2150 = vmatpush1.msra.mxu0 %v2120
  %2151 = vmatprep.subr.mxu0 0.0
  %2152 = vmatpush1.msra.mxu0 %v2121
  %2153 = vmatprep.subr.mxu0 0.0
  %2154 = vmatpush1.msra.mxu0 %v2122
  %2155 = vmatprep.subr.mxu0 0.0
  %2156 = vmatpush1.msra.mxu0 %v2123
  %2157 = vmatprep.subr.mxu0 0.0
  %2158 = vmatpush1.msra.mxu0 %v2124
  %2159 = vmatprep.subr.mxu0 0.0
  %2160 = vmatpush1.msra.mxu0 %v2125
  %2161 = vmatprep.subr.mxu0 0.0
  %2162 = vmatpush1.msra.mxu0 %v2126
  %2163 = vmatprep.subr.mxu0 0.0
  %2164 = vmatpush1.msra.mxu0 0.0
  %2165 = vmatprep.subr.mxu0 0.0
  %2166 = vmatpush1.msra.mxu0 0.0
  %2167 = vmatprep.subr.mxu0 0.0
  %2168 = vmatpush1.msra.mxu0 0.0
  %2169 = vmatprep.subr.mxu0 0.0
  %2170 = vmatpush1.msra.mxu0 0.0
  %2171 = vmatprep.subr.mxu0 0.0
  %2172 = vmatpush1.msra.mxu0 0.0
  %2173 = vmatprep.subr.mxu0 0.0
  %2174 = vmatpush1.msra.mxu0 0.0
  %2175 = vmatprep.subr.mxu0 0.0
  %2176 = vmatpush1.msra.mxu0 0.0
  %2177 = vmatprep.subr.mxu0 0.0
  %2178 = vmatpush1.msra.mxu0 0.0
  %2179 = vmatprep.subr.mxu0 0.0
  %2180 = vmatpush1.msra.mxu0 0.0
  %2181 = vmatprep.subr.mxu0 0.0
  %2182 = vmatpush1.msra.mxu0 0.0
  %2183 = vmatprep.subr.mxu0 0.0
  %2184 = vmatpush1.msra.mxu0 0.0
  %2185 = vmatprep.subr.mxu0 0.0
  %2186 = vmatpush1.msra.mxu0 0.0
  %2187 = vmatprep.subr.mxu0 0.0
  %2188 = vmatpush1.msra.mxu0 0.0
  %2189 = vmatprep.subr.mxu0 0.0
  %2190 = vmatpush1.msra.mxu0 0.0
  %2191 = vmatprep.subr.mxu0 0.0
  %2192 = vmatpush1.msra.mxu0 0.0
  %2193 = vmatprep.subr.mxu0 0.0
  %2194 = vmatpush1.msra.mxu0 0.0
  %2195 = vmatprep.subr.mxu0 0.0
  %2196 = vmatpush1.msra.mxu0 0.0
  %2197 = vmatprep.subr.mxu0 0.0
  %2198 = vmatpush1.msra.mxu0 0.0
  %2199 = vmatprep.subr.mxu0 0.0
  %2200 = vmatpush1.msra.mxu0 0.0
  %2201 = vmatprep.subr.mxu0 0.0
  %2202 = vmatpush1.msra.mxu0 0.0
  %2203 = vmatprep.subr.mxu0 0.0
  %2204 = vmatpush1.msra.mxu0 0.0
  %2205 = vmatprep.subr.mxu0 0.0
  %2206 = vmatpush1.msra.mxu0 0.0
  %2207 = vmatprep.subr.mxu0 0.0
  %2208 = vmatpush1.msra.mxu0 0.0
  %2209 = vmatprep.subr.mxu0 0.0
  %2210 = vmatpush1.msra.mxu0 0.0
  %2211 = vmatprep.mubr.f32.mxu0 0.0
  %2212 = vmatmul.mubr.f32.gmra.mrb[0].mxu0 %v2136
  %v2213 = vpop.f32.mrb[0].mxu0
  %v2214 = vadd.f32 %v2132, %v2213
  %v2215 = vpop.f32.mrb[0].mxu0
  %2216 = vmatprep.mubr.f32.mxu0 0.0
  %2217 = vmatmul.mubr.f32.gmra.mrb[0].mxu0 %v2139
  %v2218 = vpop.f32.mrb[0].mxu0
  %v2219 = vadd.f32 %v2132, %v2218
  %v2220 = vpop.f32.mrb[0].mxu0
  %2221 = vmatprep.mubr.f32.mxu0 0.0
  %2222 = vmatmul.mubr.f32.gmra.mrb[0].mxu0 %v2142
  %v2223 = vpop.f32.mrb[0].mxu0
  %v2224 = vadd.f32 %v2132, %v2223
  %v2225 = vpop.f32.mrb[0].mxu0
  %2226 = vmatprep.mubr.f32.mxu0 0.0
  %2227 = vmatmul.mubr.f32.gmra.mrb[0].mxu0 %v2145
  %v2228 = vpop.f32.mrb[0].mxu0
  %v2229 = vadd.f32 %v2132, %v2228
  %v2230 = vpop.f32.mrb[0].mxu0
  %2231 = vdwg.mxu0
  %v2232 = vadd.f32 %v2214, %v1971
  %v2233 = vadd.f32 %v2219, %v1972
  %v2234 = vadd.f32 %v2224, %v1973
  %v2235 = vadd.f32 %v2229, %v1974
  %v2236 = vld [vmem:[%s53] sm:$0x1]
  %v2237 = vld [vmem:[%s55] sm:$0x1]
  %v2238 = vsel %vm251, %v2232, 0.0
  %2239 = vadd.xlane.f32.xlu0 %v2238
  %v2240 = vpop.xlane.xlu0 %2239
  %v2241 = vsel %vm251, %v2233, 0.0
  %2242 = vadd.xlane.f32.xlu0 %v2241
  %v2243 = vpop.xlane.xlu0 %2242
  %v2244 = vsel %vm251, %v2234, 0.0
  %2245 = vadd.xlane.f32.xlu0 %v2244
  %v2246 = vpop.xlane.xlu0 %2245
  %v2247 = vsel %vm251, %v2235, 0.0
  %2248 = vadd.xlane.f32.xlu0 %v2247
  %v2249 = vpop.xlane.xlu0 %2248
  %v2250 = vmul.f32 %v2240, %v258
  %v2251 = vmul.f32 %v2243, %v258
  %v2252 = vmul.f32 %v2246, %v258
  %v2253 = vmul.f32 %v2249, %v258
  %v2254 = vsub.f32 %v2232, %v2250
  %v2255 = vsub.f32 %v2233, %v2251
  %v2256 = vsub.f32 %v2234, %v2252
  %v2257 = vsub.f32 %v2235, %v2253
  %v2258 = vmul.f32 %v2254, %v2254
  %v2259 = vmul.f32 %v2255, %v2255
  %v2260 = vmul.f32 %v2256, %v2256
  %v2261 = vmul.f32 %v2257, %v2257
  %v2262 = vsel %vm251, %v2258, 0.0
  %2263 = vadd.xlane.f32.xlu0 %v2262
  %v2264 = vpop.xlane.xlu0 %2263
  %v2265 = vsel %vm251, %v2259, 0.0
  %2266 = vadd.xlane.f32.xlu0 %v2265
  %v2267 = vpop.xlane.xlu0 %2266
  %v2268 = vsel %vm251, %v2260, 0.0
  %2269 = vadd.xlane.f32.xlu0 %v2268
  %v2270 = vpop.xlane.xlu0 %2269
  %v2271 = vsel %vm251, %v2261, 0.0
  %2272 = vadd.xlane.f32.xlu0 %v2271
  %v2273 = vpop.xlane.xlu0 %2272
  %v2274 = vmul.f32 %v2264, %v258
  %v2275 = vmul.f32 %v2267, %v258
  %v2276 = vmul.f32 %v2270, %v258
  %v2277 = vmul.f32 %v2273, %v258
  %v2278 = vadd.f32 %v2274, 1e-12
  %v2279 = vadd.f32 %v2275, 1e-12
  %v2280 = vadd.f32 %v2276, 1e-12
  %v2281 = vadd.f32 %v2277, 1e-12
  %v2282 = vrsqrt.pop %v2278
  %v2283 = vrsqrt.pop %v2279
  %v2284 = vrsqrt.pop %v2280
  %v2285 = vrsqrt.pop %v2281
  %v2286 = vmul.f32 %v2254, %v2282
  %v2287 = vmul.f32 %v2255, %v2283
  %v2288 = vmul.f32 %v2256, %v2284
  %v2289 = vmul.f32 %v2257, %v2285
  %v2291 = vlaneseq
  %v2292 = vshrl.u32 %v2291, 7
  %v2293 = vsub.s32 0, %v2292
  %v2294 = vrot.slane %v2236, %v2293
  %v2296 = vmul.f32 %v2286, %v2294
  %v2297 = vmul.f32 %v2287, %v2294
  %v2298 = vmul.f32 %v2288, %v2294
  %v2299 = vmul.f32 %v2289, %v2294
  %v2301 = vlaneseq
  %v2302 = vshrl.u32 %v2301, 7
  %v2303 = vsub.s32 0, %v2302
  %v2304 = vrot.slane %v2237, %v2303
  %v2306 = vadd.f32 %v2296, %v2304
  %v2307 = vadd.f32 %v2297, %v2304
  %v2308 = vadd.f32 %v2298, %v2304
  %v2309 = vadd.f32 %v2299, %v2304
  %s2310 = scalar_lea.vmem %s25, 64
  %v2311 = vld [vmem:[%s2310] sm:$0xff]
  %v2312 = vld [vmem:[%s2310 + $0x8] sm:$0xff]
  %v2313 = vld [vmem:[%s2310 + $0x10] sm:$0xff]
  %v2314 = vld [vmem:[%s2310 + $0x18] sm:$0xff]
  %s2315 = scalar_lea.vmem %s31, 2
  %v2316 = vld [vmem:[%s2315] sm:$0x1]
  %v2318 = vlaneseq
  %v2319 = vshrl.u32 %v2318, 7
  %v2320 = vsub.s32 0, %v2319
  %v2321 = vrot.slane %v2316, %v2320
  %v2324 = vsel %vm251, %v2306, 0
  %v2327 = vsel %vm251, %v2307, 0
  %v2330 = vsel %vm251, %v2308, 0
  %v2333 = vsel %vm251, %v2309, 0
  %2335 = vmatprep.subr.mxu0 0.0
  %2336 = vmatpush1.msra.mxu0 %v2311
  %2337 = vmatprep.subr.mxu0 0.0
  %2338 = vmatpush1.msra.mxu0 %v2312
  %2339 = vmatprep.subr.mxu0 0.0
  %2340 = vmatpush1.msra.mxu0 %v2313
  %2341 = vmatprep.subr.mxu0 0.0
  %2342 = vmatpush1.msra.mxu0 %v2314
  %2343 = vmatprep.subr.mxu0 0.0
  %2344 = vmatpush1.msra.mxu0 0.0
  %2345 = vmatprep.subr.mxu0 0.0
  %2346 = vmatpush1.msra.mxu0 0.0
  %2347 = vmatprep.subr.mxu0 0.0
  %2348 = vmatpush1.msra.mxu0 0.0
  %2349 = vmatprep.subr.mxu0 0.0
  %2350 = vmatpush1.msra.mxu0 0.0
  %2351 = vmatprep.subr.mxu0 0.0
  %2352 = vmatpush1.msra.mxu0 0.0
  %2353 = vmatprep.subr.mxu0 0.0
  %2354 = vmatpush1.msra.mxu0 0.0
  %2355 = vmatprep.subr.mxu0 0.0
  %2356 = vmatpush1.msra.mxu0 0.0
  %2357 = vmatprep.subr.mxu0 0.0
  %2358 = vmatpush1.msra.mxu0 0.0
  %2359 = vmatprep.subr.mxu0 0.0
  %2360 = vmatpush1.msra.mxu0 0.0
  %2361 = vmatprep.subr.mxu0 0.0
  %2362 = vmatpush1.msra.mxu0 0.0
  %2363 = vmatprep.subr.mxu0 0.0
  %2364 = vmatpush1.msra.mxu0 0.0
  %2365 = vmatprep.subr.mxu0 0.0
  %2366 = vmatpush1.msra.mxu0 0.0
  %2367 = vmatprep.subr.mxu0 0.0
  %2368 = vmatpush1.msra.mxu0 0.0
  %2369 = vmatprep.subr.mxu0 0.0
  %2370 = vmatpush1.msra.mxu0 0.0
  %2371 = vmatprep.subr.mxu0 0.0
  %2372 = vmatpush1.msra.mxu0 0.0
  %2373 = vmatprep.subr.mxu0 0.0
  %2374 = vmatpush1.msra.mxu0 0.0
  %2375 = vmatprep.subr.mxu0 0.0
  %2376 = vmatpush1.msra.mxu0 0.0
  %2377 = vmatprep.subr.mxu0 0.0
  %2378 = vmatpush1.msra.mxu0 0.0
  %2379 = vmatprep.subr.mxu0 0.0
  %2380 = vmatpush1.msra.mxu0 0.0
  %2381 = vmatprep.subr.mxu0 0.0
  %2382 = vmatpush1.msra.mxu0 0.0
  %2383 = vmatprep.subr.mxu0 0.0
  %2384 = vmatpush1.msra.mxu0 0.0
  %2385 = vmatprep.subr.mxu0 0.0
  %2386 = vmatpush1.msra.mxu0 0.0
  %2387 = vmatprep.subr.mxu0 0.0
  %2388 = vmatpush1.msra.mxu0 0.0
  %2389 = vmatprep.subr.mxu0 0.0
  %2390 = vmatpush1.msra.mxu0 0.0
  %2391 = vmatprep.subr.mxu0 0.0
  %2392 = vmatpush1.msra.mxu0 0.0
  %2393 = vmatprep.subr.mxu0 0.0
  %2394 = vmatpush1.msra.mxu0 0.0
  %2395 = vmatprep.subr.mxu0 0.0
  %2396 = vmatpush1.msra.mxu0 0.0
  %2397 = vmatprep.subr.mxu0 0.0
  %2398 = vmatpush1.msra.mxu0 0.0
  %2399 = vmatprep.mubr.f32.mxu0 0.0
  %2400 = vmatmul.mubr.f32.gmra.mrb[0].mxu0 %v2324
  %v2401 = vpop.f32.mrb[0].mxu0
  %v2402 = vadd.f32 %v2321, %v2401
  %v2403 = vpop.f32.mrb[0].mxu0
  %2404 = vmatprep.mubr.f32.mxu0 0.0
  %2405 = vmatmul.mubr.f32.gmra.mrb[0].mxu0 %v2327
  %v2406 = vpop.f32.mrb[0].mxu0
  %v2407 = vadd.f32 %v2321, %v2406
  %v2408 = vpop.f32.mrb[0].mxu0
  %2409 = vmatprep.mubr.f32.mxu0 0.0
  %2410 = vmatmul.mubr.f32.gmra.mrb[0].mxu0 %v2330
  %v2411 = vpop.f32.mrb[0].mxu0
  %v2412 = vadd.f32 %v2321, %v2411
  %v2413 = vpop.f32.mrb[0].mxu0
  %2414 = vmatprep.mubr.f32.mxu0 0.0
  %2415 = vmatmul.mubr.f32.gmra.mrb[0].mxu0 %v2333
  %v2416 = vpop.f32.mrb[0].mxu0
  %v2417 = vadd.f32 %v2321, %v2416
  %v2418 = vpop.f32.mrb[0].mxu0
  %2419 = vdwg.mxu0
  %s2420 = scalar_lea.vmem %s27, 64
  %v2421 = vld [vmem:[%s2420] sm:$0xff]
  %v2422 = vld [vmem:[%s2420 + $0x8] sm:$0xff]
  %v2423 = vld [vmem:[%s2420 + $0x10] sm:$0xff]
  %v2424 = vld [vmem:[%s2420 + $0x18] sm:$0xff]
  %s2425 = scalar_lea.vmem %s33, 2
  %v2426 = vld [vmem:[%s2425] sm:$0x1]
  %v2428 = vlaneseq
  %v2429 = vshrl.u32 %v2428, 7
  %v2430 = vsub.s32 0, %v2429
  %v2431 = vrot.slane %v2426, %v2430
  %2433 = vmatprep.subr.mxu0 0.0
  %2434 = vmatpush1.msra.mxu0 %v2421
  %2435 = vmatprep.subr.mxu0 0.0
  %2436 = vmatpush1.msra.mxu0 %v2422
  %2437 = vmatprep.subr.mxu0 0.0
  %2438 = vmatpush1.msra.mxu0 %v2423
  %2439 = vmatprep.subr.mxu0 0.0
  %2440 = vmatpush1.msra.mxu0 %v2424
  %2441 = vmatprep.subr.mxu0 0.0
  %2442 = vmatpush1.msra.mxu0 0.0
  %2443 = vmatprep.subr.mxu0 0.0
  %2444 = vmatpush1.msra.mxu0 0.0
  %2445 = vmatprep.subr.mxu0 0.0
  %2446 = vmatpush1.msra.mxu0 0.0
  %2447 = vmatprep.subr.mxu0 0.0
  %2448 = vmatpush1.msra.mxu0 0.0
  %2449 = vmatprep.subr.mxu0 0.0
  %2450 = vmatpush1.msra.mxu0 0.0
  %2451 = vmatprep.subr.mxu0 0.0
  %2452 = vmatpush1.msra.mxu0 0.0
  %2453 = vmatprep.subr.mxu0 0.0
  %2454 = vmatpush1.msra.mxu0 0.0
  %2455 = vmatprep.subr.mxu0 0.0
  %2456 = vmatpush1.msra.mxu0 0.0
  %2457 = vmatprep.subr.mxu0 0.0
  %2458 = vmatpush1.msra.mxu0 0.0
  %2459 = vmatprep.subr.mxu0 0.0
  %2460 = vmatpush1.msra.mxu0 0.0
  %2461 = vmatprep.subr.mxu0 0.0
  %2462 = vmatpush1.msra.mxu0 0.0
  %2463 = vmatprep.subr.mxu0 0.0
  %2464 = vmatpush1.msra.mxu0 0.0
  %2465 = vmatprep.subr.mxu0 0.0
  %2466 = vmatpush1.msra.mxu0 0.0
  %2467 = vmatprep.subr.mxu0 0.0
  %2468 = vmatpush1.msra.mxu0 0.0
  %2469 = vmatprep.subr.mxu0 0.0
  %2470 = vmatpush1.msra.mxu0 0.0
  %2471 = vmatprep.subr.mxu0 0.0
  %2472 = vmatpush1.msra.mxu0 0.0
  %2473 = vmatprep.subr.mxu0 0.0
  %2474 = vmatpush1.msra.mxu0 0.0
  %2475 = vmatprep.subr.mxu0 0.0
  %2476 = vmatpush1.msra.mxu0 0.0
  %2477 = vmatprep.subr.mxu0 0.0
  %2478 = vmatpush1.msra.mxu0 0.0
  %2479 = vmatprep.subr.mxu0 0.0
  %2480 = vmatpush1.msra.mxu0 0.0
  %2481 = vmatprep.subr.mxu0 0.0
  %2482 = vmatpush1.msra.mxu0 0.0
  %2483 = vmatprep.subr.mxu0 0.0
  %2484 = vmatpush1.msra.mxu0 0.0
  %2485 = vmatprep.subr.mxu0 0.0
  %2486 = vmatpush1.msra.mxu0 0.0
  %2487 = vmatprep.subr.mxu0 0.0
  %2488 = vmatpush1.msra.mxu0 0.0
  %2489 = vmatprep.subr.mxu0 0.0
  %2490 = vmatpush1.msra.mxu0 0.0
  %2491 = vmatprep.subr.mxu0 0.0
  %2492 = vmatpush1.msra.mxu0 0.0
  %2493 = vmatprep.subr.mxu0 0.0
  %2494 = vmatpush1.msra.mxu0 0.0
  %2495 = vmatprep.subr.mxu0 0.0
  %2496 = vmatpush1.msra.mxu0 0.0
  %2497 = vmatprep.mubr.f32.mxu0 0.0
  %2498 = vmatmul.mubr.f32.gmra.mrb[0].mxu0 %v2324
  %v2499 = vpop.f32.mrb[0].mxu0
  %v2500 = vadd.f32 %v2431, %v2499
  %v2501 = vpop.f32.mrb[0].mxu0
  %2502 = vmatprep.mubr.f32.mxu0 0.0
  %2503 = vmatmul.mubr.f32.gmra.mrb[0].mxu0 %v2327
  %v2504 = vpop.f32.mrb[0].mxu0
  %v2505 = vadd.f32 %v2431, %v2504
  %v2506 = vpop.f32.mrb[0].mxu0
  %2507 = vmatprep.mubr.f32.mxu0 0.0
  %2508 = vmatmul.mubr.f32.gmra.mrb[0].mxu0 %v2330
  %v2509 = vpop.f32.mrb[0].mxu0
  %v2510 = vadd.f32 %v2431, %v2509
  %v2511 = vpop.f32.mrb[0].mxu0
  %2512 = vmatprep.mubr.f32.mxu0 0.0
  %2513 = vmatmul.mubr.f32.gmra.mrb[0].mxu0 %v2333
  %v2514 = vpop.f32.mrb[0].mxu0
  %v2515 = vadd.f32 %v2431, %v2514
  %v2516 = vpop.f32.mrb[0].mxu0
  %2517 = vdwg.mxu0
  %s2518 = scalar_lea.vmem %s29, 64
  %v2519 = vld [vmem:[%s2518] sm:$0xff]
  %v2520 = vld [vmem:[%s2518 + $0x8] sm:$0xff]
  %v2521 = vld [vmem:[%s2518 + $0x10] sm:$0xff]
  %v2522 = vld [vmem:[%s2518 + $0x18] sm:$0xff]
  %s2523 = scalar_lea.vmem %s35, 2
  %v2524 = vld [vmem:[%s2523] sm:$0x1]
  %v2526 = vlaneseq
  %v2527 = vshrl.u32 %v2526, 7
  %v2528 = vsub.s32 0, %v2527
  %v2529 = vrot.slane %v2524, %v2528
  %2531 = vmatprep.subr.mxu0 0.0
  %2532 = vmatpush1.msra.mxu0 %v2519
  %2533 = vmatprep.subr.mxu0 0.0
  %2534 = vmatpush1.msra.mxu0 %v2520
  %2535 = vmatprep.subr.mxu0 0.0
  %2536 = vmatpush1.msra.mxu0 %v2521
  %2537 = vmatprep.subr.mxu0 0.0
  %2538 = vmatpush1.msra.mxu0 %v2522
  %2539 = vmatprep.subr.mxu0 0.0
  %2540 = vmatpush1.msra.mxu0 0.0
  %2541 = vmatprep.subr.mxu0 0.0
  %2542 = vmatpush1.msra.mxu0 0.0
  %2543 = vmatprep.subr.mxu0 0.0
  %2544 = vmatpush1.msra.mxu0 0.0
  %2545 = vmatprep.subr.mxu0 0.0
  %2546 = vmatpush1.msra.mxu0 0.0
  %2547 = vmatprep.subr.mxu0 0.0
  %2548 = vmatpush1.msra.mxu0 0.0
  %2549 = vmatprep.subr.mxu0 0.0
  %2550 = vmatpush1.msra.mxu0 0.0
  %2551 = vmatprep.subr.mxu0 0.0
  %2552 = vmatpush1.msra.mxu0 0.0
  %2553 = vmatprep.subr.mxu0 0.0
  %2554 = vmatpush1.msra.mxu0 0.0
  %2555 = vmatprep.subr.mxu0 0.0
  %2556 = vmatpush1.msra.mxu0 0.0
  %2557 = vmatprep.subr.mxu0 0.0
  %2558 = vmatpush1.msra.mxu0 0.0
  %2559 = vmatprep.subr.mxu0 0.0
  %2560 = vmatpush1.msra.mxu0 0.0
  %2561 = vmatprep.subr.mxu0 0.0
  %2562 = vmatpush1.msra.mxu0 0.0
  %2563 = vmatprep.subr.mxu0 0.0
  %2564 = vmatpush1.msra.mxu0 0.0
  %2565 = vmatprep.subr.mxu0 0.0
  %2566 = vmatpush1.msra.mxu0 0.0
  %2567 = vmatprep.subr.mxu0 0.0
  %2568 = vmatpush1.msra.mxu0 0.0
  %2569 = vmatprep.subr.mxu0 0.0
  %2570 = vmatpush1.msra.mxu0 0.0
  %2571 = vmatprep.subr.mxu0 0.0
  %2572 = vmatpush1.msra.mxu0 0.0
  %2573 = vmatprep.subr.mxu0 0.0
  %2574 = vmatpush1.msra.mxu0 0.0
  %2575 = vmatprep.subr.mxu0 0.0
  %2576 = vmatpush1.msra.mxu0 0.0
  %2577 = vmatprep.subr.mxu0 0.0
  %2578 = vmatpush1.msra.mxu0 0.0
  %2579 = vmatprep.subr.mxu0 0.0
  %2580 = vmatpush1.msra.mxu0 0.0
  %2581 = vmatprep.subr.mxu0 0.0
  %2582 = vmatpush1.msra.mxu0 0.0
  %2583 = vmatprep.subr.mxu0 0.0
  %2584 = vmatpush1.msra.mxu0 0.0
  %2585 = vmatprep.subr.mxu0 0.0
  %2586 = vmatpush1.msra.mxu0 0.0
  %2587 = vmatprep.subr.mxu0 0.0
  %2588 = vmatpush1.msra.mxu0 0.0
  %2589 = vmatprep.subr.mxu0 0.0
  %2590 = vmatpush1.msra.mxu0 0.0
  %2591 = vmatprep.subr.mxu0 0.0
  %2592 = vmatpush1.msra.mxu0 0.0
  %2593 = vmatprep.subr.mxu0 0.0
  %2594 = vmatpush1.msra.mxu0 0.0
  %2595 = vmatprep.mubr.f32.mxu0 0.0
  %2596 = vmatmul.mubr.f32.gmra.mrb[0].mxu0 %v2324
  %v2597 = vpop.f32.mrb[0].mxu0
  %v2598 = vadd.f32 %v2529, %v2597
  %v2599 = vpop.f32.mrb[0].mxu0
  %2600 = vmatprep.mubr.f32.mxu0 0.0
  %2601 = vmatmul.mubr.f32.gmra.mrb[0].mxu0 %v2327
  %v2602 = vpop.f32.mrb[0].mxu0
  %v2603 = vadd.f32 %v2529, %v2602
  %v2604 = vpop.f32.mrb[0].mxu0
  %2605 = vmatprep.mubr.f32.mxu0 0.0
  %2606 = vmatmul.mubr.f32.gmra.mrb[0].mxu0 %v2330
  %v2607 = vpop.f32.mrb[0].mxu0
  %v2608 = vadd.f32 %v2529, %v2607
  %v2609 = vpop.f32.mrb[0].mxu0
  %2610 = vmatprep.mubr.f32.mxu0 0.0
  %2611 = vmatmul.mubr.f32.gmra.mrb[0].mxu0 %v2333
  %v2612 = vpop.f32.mrb[0].mxu0
  %v2613 = vadd.f32 %v2529, %v2612
  %v2614 = vpop.f32.mrb[0].mxu0
  %2615 = vdwg.mxu0
  %v2617 = vsel %vm876, %v2402, 0
  %v2620 = vsel %vm876, %v2407, 0
  %v2623 = vsel %vm876, %v2412, 0
  %v2626 = vsel %vm876, %v2417, 0
  %v2629 = vsel %vm876, %v2500, 0
  %v2632 = vsel %vm876, %v2505, 0
  %v2635 = vsel %vm876, %v2510, 0
  %v2638 = vsel %vm876, %v2515, 0
  %2640 = vmatprep.subr.mxu0 0.0
  %2641 = vmatpush1.xpose.msra.mxu0 %v2629
  %2642 = vmatprep.subr.mxu0 0.0
  %2643 = vmatpush1.xpose.msra.mxu0 %v2632
  %2644 = vmatprep.subr.mxu0 0.0
  %2645 = vmatpush1.xpose.msra.mxu0 %v2635
  %2646 = vmatprep.subr.mxu0 0.0
  %2647 = vmatpush1.xpose.msra.mxu0 %v2638
  %2648 = vmatprep.subr.mxu0 0.0
  %2649 = vmatpush1.xpose.msra.mxu0 0.0
  %2650 = vmatprep.subr.mxu0 0.0
  %2651 = vmatpush1.xpose.msra.mxu0 0.0
  %2652 = vmatprep.subr.mxu0 0.0
  %2653 = vmatpush1.xpose.msra.mxu0 0.0
  %2654 = vmatprep.subr.mxu0 0.0
  %2655 = vmatpush1.xpose.msra.mxu0 0.0
  %2656 = vmatprep.subr.mxu0 0.0
  %2657 = vmatpush1.xpose.msra.mxu0 0.0
  %2658 = vmatprep.subr.mxu0 0.0
  %2659 = vmatpush1.xpose.msra.mxu0 0.0
  %2660 = vmatprep.subr.mxu0 0.0
  %2661 = vmatpush1.xpose.msra.mxu0 0.0
  %2662 = vmatprep.subr.mxu0 0.0
  %2663 = vmatpush1.xpose.msra.mxu0 0.0
  %2664 = vmatprep.subr.mxu0 0.0
  %2665 = vmatpush1.xpose.msra.mxu0 0.0
  %2666 = vmatprep.subr.mxu0 0.0
  %2667 = vmatpush1.xpose.msra.mxu0 0.0
  %2668 = vmatprep.subr.mxu0 0.0
  %2669 = vmatpush1.xpose.msra.mxu0 0.0
  %2670 = vmatprep.subr.mxu0 0.0
  %2671 = vmatpush1.xpose.msra.mxu0 0.0
  %2672 = vmatprep.subr.mxu0 0.0
  %2673 = vmatpush1.xpose.msra.mxu0 0.0
  %2674 = vmatprep.subr.mxu0 0.0
  %2675 = vmatpush1.xpose.msra.mxu0 0.0
  %2676 = vmatprep.subr.mxu0 0.0
  %2677 = vmatpush1.xpose.msra.mxu0 0.0
  %2678 = vmatprep.subr.mxu0 0.0
  %2679 = vmatpush1.xpose.msra.mxu0 0.0
  %2680 = vmatprep.subr.mxu0 0.0
  %2681 = vmatpush1.xpose.msra.mxu0 0.0
  %2682 = vmatprep.subr.mxu0 0.0
  %2683 = vmatpush1.xpose.msra.mxu0 0.0
  %2684 = vmatprep.subr.mxu0 0.0
  %2685 = vmatpush1.xpose.msra.mxu0 0.0
  %2686 = vmatprep.subr.mxu0 0.0
  %2687 = vmatpush1.xpose.msra.mxu0 0.0
  %2688 = vmatprep.subr.mxu0 0.0
  %2689 = vmatpush1.xpose.msra.mxu0 0.0
  %2690 = vmatprep.subr.mxu0 0.0
  %2691 = vmatpush1.xpose.msra.mxu0 0.0
  %2692 = vmatprep.subr.mxu0 0.0
  %2693 = vmatpush1.xpose.msra.mxu0 0.0
  %2694 = vmatprep.subr.mxu0 0.0
  %2695 = vmatpush1.xpose.msra.mxu0 0.0
  %2696 = vmatprep.subr.mxu0 0.0
  %2697 = vmatpush1.xpose.msra.mxu0 0.0
  %2698 = vmatprep.subr.mxu0 0.0
  %2699 = vmatpush1.xpose.msra.mxu0 0.0
  %2700 = vmatprep.subr.mxu0 0.0
  %2701 = vmatpush1.xpose.msra.mxu0 0.0
  %2702 = vmatprep.subr.mxu0 0.0
  %2703 = vmatpush1.xpose.msra.mxu0 0.0
  %2704 = vmatprep.mubr.f32.mxu0 0.0
  %2705 = vmatmul.mubr.f32.gmra.mrb[0].mxu0 %v2617
  %v2706 = vpop.f32.mrb[0].mxu0
  %v2707 = vadd.f32 0.0, %v2706
  %v2708 = vpop.f32.mrb[0].mxu0
  %2709 = vmatprep.mubr.f32.mxu0 0.0
  %2710 = vmatmul.mubr.f32.gmra.mrb[0].mxu0 %v2620
  %v2711 = vpop.f32.mrb[0].mxu0
  %v2712 = vadd.f32 0.0, %v2711
  %v2713 = vpop.f32.mrb[0].mxu0
  %2714 = vmatprep.mubr.f32.mxu0 0.0
  %2715 = vmatmul.mubr.f32.gmra.mrb[0].mxu0 %v2623
  %v2716 = vpop.f32.mrb[0].mxu0
  %v2717 = vadd.f32 0.0, %v2716
  %v2718 = vpop.f32.mrb[0].mxu0
  %2719 = vmatprep.mubr.f32.mxu0 0.0
  %2720 = vmatmul.mubr.f32.gmra.mrb[0].mxu0 %v2626
  %v2721 = vpop.f32.mrb[0].mxu0
  %v2722 = vadd.f32 0.0, %v2721
  %v2723 = vpop.f32.mrb[0].mxu0
  %2724 = vdwg.mxu0
  %v2725 = vmul.f32 %v2707, 0.25
  %v2726 = vmul.f32 %v2712, 0.25
  %v2727 = vmul.f32 %v2717, 0.25
  %v2728 = vmul.f32 %v2722, 0.25
  %v2729 = vadd.f32 %v2725, %v572
  %v2730 = vadd.f32 %v2726, %v573
  %v2731 = vadd.f32 %v2727, %v574
  %v2732 = vadd.f32 %v2728, %v575
  %v2733 = vsel %vm251, %v2729, -inf
  %2734 = vmax.xlane.f32.xlu0 %v2733
  %v2735 = vpop.xlane.xlu0 %2734
  %v2736 = vsel %vm251, %v2730, -inf
  %2737 = vmax.xlane.f32.xlu0 %v2736
  %v2738 = vpop.xlane.xlu0 %2737
  %v2739 = vsel %vm251, %v2731, -inf
  %2740 = vmax.xlane.f32.xlu0 %v2739
  %v2741 = vpop.xlane.xlu0 %2740
  %v2742 = vsel %vm251, %v2732, -inf
  %2743 = vmax.xlane.f32.xlu0 %v2742
  %v2744 = vpop.xlane.xlu0 %2743
  %v2745 = vsub.f32 %v2729, %v2735
  %v2746 = vsub.f32 %v2730, %v2738
  %v2747 = vsub.f32 %v2731, %v2741
  %v2748 = vsub.f32 %v2732, %v2744
  %v2749 = vmul.f32 %v2745, 1.442695
  %v2750 = vpow.pop %v2749
  %v2751 = vmul.f32 %v2746, 1.442695
  %v2752 = vpow.pop %v2751
  %v2753 = vmul.f32 %v2747, 1.442695
  %v2754 = vpow.pop %v2753
  %v2755 = vmul.f32 %v2748, 1.442695
  %v2756 = vpow.pop %v2755
  %v2757 = vsel %vm251, %v2750, 0.0
  %2758 = vadd.xlane.f32.xlu0 %v2757
  %v2759 = vpop.xlane.xlu0 %2758
  %v2760 = vsel %vm251, %v2752, 0.0
  %2761 = vadd.xlane.f32.xlu0 %v2760
  %v2762 = vpop.xlane.xlu0 %2761
  %v2763 = vsel %vm251, %v2754, 0.0
  %2764 = vadd.xlane.f32.xlu0 %v2763
  %v2765 = vpop.xlane.xlu0 %2764
  %v2766 = vsel %vm251, %v2756, 0.0
  %2767 = vadd.xlane.f32.xlu0 %v2766
  %v2768 = vpop.xlane.xlu0 %2767
  %v2769 = vrcp.pop %v2759
  %v2770 = vrcp.pop %v2762
  %v2771 = vrcp.pop %v2765
  %v2772 = vrcp.pop %v2768
  %v2773 = vmul.f32 %v2750, %v2769
  %v2774 = vmul.f32 %v2752, %v2770
  %v2775 = vmul.f32 %v2754, %v2771
  %v2776 = vmul.f32 %v2756, %v2772
  %v2778 = vsel %vm251, %v2773, 0
  %v2781 = vsel %vm251, %v2774, 0
  %v2784 = vsel %vm251, %v2775, 0
  %v2787 = vsel %vm251, %v2776, 0
  %2789 = vmatprep.subr.mxu0 0.0
  %2790 = vmatpush1.msra.mxu0 %v2598
  %2791 = vmatprep.subr.mxu0 0.0
  %2792 = vmatpush1.msra.mxu0 %v2603
  %2793 = vmatprep.subr.mxu0 0.0
  %2794 = vmatpush1.msra.mxu0 %v2608
  %2795 = vmatprep.subr.mxu0 0.0
  %2796 = vmatpush1.msra.mxu0 %v2613
  %2797 = vmatprep.subr.mxu0 0.0
  %2798 = vmatpush1.msra.mxu0 0.0
  %2799 = vmatprep.subr.mxu0 0.0
  %2800 = vmatpush1.msra.mxu0 0.0
  %2801 = vmatprep.subr.mxu0 0.0
  %2802 = vmatpush1.msra.mxu0 0.0
  %2803 = vmatprep.subr.mxu0 0.0
  %2804 = vmatpush1.msra.mxu0 0.0
  %2805 = vmatprep.subr.mxu0 0.0
  %2806 = vmatpush1.msra.mxu0 0.0
  %2807 = vmatprep.subr.mxu0 0.0
  %2808 = vmatpush1.msra.mxu0 0.0
  %2809 = vmatprep.subr.mxu0 0.0
  %2810 = vmatpush1.msra.mxu0 0.0
  %2811 = vmatprep.subr.mxu0 0.0
  %2812 = vmatpush1.msra.mxu0 0.0
  %2813 = vmatprep.subr.mxu0 0.0
  %2814 = vmatpush1.msra.mxu0 0.0
  %2815 = vmatprep.subr.mxu0 0.0
  %2816 = vmatpush1.msra.mxu0 0.0
  %2817 = vmatprep.subr.mxu0 0.0
  %2818 = vmatpush1.msra.mxu0 0.0
  %2819 = vmatprep.subr.mxu0 0.0
  %2820 = vmatpush1.msra.mxu0 0.0
  %2821 = vmatprep.subr.mxu0 0.0
  %2822 = vmatpush1.msra.mxu0 0.0
  %2823 = vmatprep.subr.mxu0 0.0
  %2824 = vmatpush1.msra.mxu0 0.0
  %2825 = vmatprep.subr.mxu0 0.0
  %2826 = vmatpush1.msra.mxu0 0.0
  %2827 = vmatprep.subr.mxu0 0.0
  %2828 = vmatpush1.msra.mxu0 0.0
  %2829 = vmatprep.subr.mxu0 0.0
  %2830 = vmatpush1.msra.mxu0 0.0
  %2831 = vmatprep.subr.mxu0 0.0
  %2832 = vmatpush1.msra.mxu0 0.0
  %2833 = vmatprep.subr.mxu0 0.0
  %2834 = vmatpush1.msra.mxu0 0.0
  %2835 = vmatprep.subr.mxu0 0.0
  %2836 = vmatpush1.msra.mxu0 0.0
  %2837 = vmatprep.subr.mxu0 0.0
  %2838 = vmatpush1.msra.mxu0 0.0
  %2839 = vmatprep.subr.mxu0 0.0
  %2840 = vmatpush1.msra.mxu0 0.0
  %2841 = vmatprep.subr.mxu0 0.0
  %2842 = vmatpush1.msra.mxu0 0.0
  %2843 = vmatprep.subr.mxu0 0.0
  %2844 = vmatpush1.msra.mxu0 0.0
  %2845 = vmatprep.subr.mxu0 0.0
  %2846 = vmatpush1.msra.mxu0 0.0
  %2847 = vmatprep.subr.mxu0 0.0
  %2848 = vmatpush1.msra.mxu0 0.0
  %2849 = vmatprep.subr.mxu0 0.0
  %2850 = vmatpush1.msra.mxu0 0.0
  %2851 = vmatprep.subr.mxu0 0.0
  %2852 = vmatpush1.msra.mxu0 0.0
  %2853 = vmatprep.mubr.f32.mxu0 0.0
  %2854 = vmatmul.mubr.f32.gmra.mrb[0].mxu0 %v2778
  %v2855 = vpop.f32.mrb[0].mxu0
  %v2856 = vadd.f32 0.0, %v2855
  %v2857 = vpop.f32.mrb[0].mxu0
  %2858 = vmatprep.mubr.f32.mxu0 0.0
  %2859 = vmatmul.mubr.f32.gmra.mrb[0].mxu0 %v2781
  %v2860 = vpop.f32.mrb[0].mxu0
  %v2861 = vadd.f32 0.0, %v2860
  %v2862 = vpop.f32.mrb[0].mxu0
  %2863 = vmatprep.mubr.f32.mxu0 0.0
  %2864 = vmatmul.mubr.f32.gmra.mrb[0].mxu0 %v2784
  %v2865 = vpop.f32.mrb[0].mxu0
  %v2866 = vadd.f32 0.0, %v2865
  %v2867 = vpop.f32.mrb[0].mxu0
  %2868 = vmatprep.mubr.f32.mxu0 0.0
  %2869 = vmatmul.mubr.f32.gmra.mrb[0].mxu0 %v2787
  %v2870 = vpop.f32.mrb[0].mxu0
  %v2871 = vadd.f32 0.0, %v2870
  %v2872 = vpop.f32.mrb[0].mxu0
  %2873 = vdwg.mxu0
  %s2874 = scalar_lea.vmem %s37, 32
  %v2875 = vld [vmem:[%s2874] sm:$0xff]
  %v2876 = vld [vmem:[%s2874 + $0x8] sm:$0xff]
  %s2877 = scalar_lea.vmem %s25, 96
  %v2878 = vld [vmem:[%s2877] sm:$0xff]
  %v2879 = vld [vmem:[%s2877 + $0x8] sm:$0xff]
  %v2880 = vld [vmem:[%s2877 + $0x10] sm:$0xff]
  %v2881 = vld [vmem:[%s2877 + $0x18] sm:$0xff]
  %s2882 = scalar_lea.vmem %s31, 3
  %v2883 = vld [vmem:[%s2882] sm:$0x1]
  %v2885 = vlaneseq
  %v2886 = vshrl.u32 %v2885, 7
  %v2887 = vsub.s32 0, %v2886
  %v2888 = vrot.slane %v2883, %v2887
  %2890 = vmatprep.subr.mxu0 0.0
  %2891 = vmatpush1.msra.mxu0 %v2878
  %2892 = vmatprep.subr.mxu0 0.0
  %2893 = vmatpush1.msra.mxu0 %v2879
  %2894 = vmatprep.subr.mxu0 0.0
  %2895 = vmatpush1.msra.mxu0 %v2880
  %2896 = vmatprep.subr.mxu0 0.0
  %2897 = vmatpush1.msra.mxu0 %v2881
  %2898 = vmatprep.subr.mxu0 0.0
  %2899 = vmatpush1.msra.mxu0 0.0
  %2900 = vmatprep.subr.mxu0 0.0
  %2901 = vmatpush1.msra.mxu0 0.0
  %2902 = vmatprep.subr.mxu0 0.0
  %2903 = vmatpush1.msra.mxu0 0.0
  %2904 = vmatprep.subr.mxu0 0.0
  %2905 = vmatpush1.msra.mxu0 0.0
  %2906 = vmatprep.subr.mxu0 0.0
  %2907 = vmatpush1.msra.mxu0 0.0
  %2908 = vmatprep.subr.mxu0 0.0
  %2909 = vmatpush1.msra.mxu0 0.0
  %2910 = vmatprep.subr.mxu0 0.0
  %2911 = vmatpush1.msra.mxu0 0.0
  %2912 = vmatprep.subr.mxu0 0.0
  %2913 = vmatpush1.msra.mxu0 0.0
  %2914 = vmatprep.subr.mxu0 0.0
  %2915 = vmatpush1.msra.mxu0 0.0
  %2916 = vmatprep.subr.mxu0 0.0
  %2917 = vmatpush1.msra.mxu0 0.0
  %2918 = vmatprep.subr.mxu0 0.0
  %2919 = vmatpush1.msra.mxu0 0.0
  %2920 = vmatprep.subr.mxu0 0.0
  %2921 = vmatpush1.msra.mxu0 0.0
  %2922 = vmatprep.subr.mxu0 0.0
  %2923 = vmatpush1.msra.mxu0 0.0
  %2924 = vmatprep.subr.mxu0 0.0
  %2925 = vmatpush1.msra.mxu0 0.0
  %2926 = vmatprep.subr.mxu0 0.0
  %2927 = vmatpush1.msra.mxu0 0.0
  %2928 = vmatprep.subr.mxu0 0.0
  %2929 = vmatpush1.msra.mxu0 0.0
  %2930 = vmatprep.subr.mxu0 0.0
  %2931 = vmatpush1.msra.mxu0 0.0
  %2932 = vmatprep.subr.mxu0 0.0
  %2933 = vmatpush1.msra.mxu0 0.0
  %2934 = vmatprep.subr.mxu0 0.0
  %2935 = vmatpush1.msra.mxu0 0.0
  %2936 = vmatprep.subr.mxu0 0.0
  %2937 = vmatpush1.msra.mxu0 0.0
  %2938 = vmatprep.subr.mxu0 0.0
  %2939 = vmatpush1.msra.mxu0 0.0
  %2940 = vmatprep.subr.mxu0 0.0
  %2941 = vmatpush1.msra.mxu0 0.0
  %2942 = vmatprep.subr.mxu0 0.0
  %2943 = vmatpush1.msra.mxu0 0.0
  %2944 = vmatprep.subr.mxu0 0.0
  %2945 = vmatpush1.msra.mxu0 0.0
  %2946 = vmatprep.subr.mxu0 0.0
  %2947 = vmatpush1.msra.mxu0 0.0
  %2948 = vmatprep.subr.mxu0 0.0
  %2949 = vmatpush1.msra.mxu0 0.0
  %2950 = vmatprep.subr.mxu0 0.0
  %2951 = vmatpush1.msra.mxu0 0.0
  %2952 = vmatprep.subr.mxu0 0.0
  %2953 = vmatpush1.msra.mxu0 0.0
  %2954 = vmatprep.mubr.f32.mxu0 0.0
  %2955 = vmatmul.mubr.f32.gmra.mrb[0].mxu0 %v2324
  %v2956 = vpop.f32.mrb[0].mxu0
  %v2957 = vadd.f32 %v2888, %v2956
  %v2958 = vpop.f32.mrb[0].mxu0
  %2959 = vmatprep.mubr.f32.mxu0 0.0
  %2960 = vmatmul.mubr.f32.gmra.mrb[0].mxu0 %v2327
  %v2961 = vpop.f32.mrb[0].mxu0
  %v2962 = vadd.f32 %v2888, %v2961
  %v2963 = vpop.f32.mrb[0].mxu0
  %2964 = vmatprep.mubr.f32.mxu0 0.0
  %2965 = vmatmul.mubr.f32.gmra.mrb[0].mxu0 %v2330
  %v2966 = vpop.f32.mrb[0].mxu0
  %v2967 = vadd.f32 %v2888, %v2966
  %v2968 = vpop.f32.mrb[0].mxu0
  %2969 = vmatprep.mubr.f32.mxu0 0.0
  %2970 = vmatmul.mubr.f32.gmra.mrb[0].mxu0 %v2333
  %v2971 = vpop.f32.mrb[0].mxu0
  %v2972 = vadd.f32 %v2888, %v2971
  %v2973 = vpop.f32.mrb[0].mxu0
  %2974 = vdwg.mxu0
  %s2975 = scalar_lea.vmem %s27, 96
  %v2976 = vld [vmem:[%s2975] sm:$0xff]
  %v2977 = vld [vmem:[%s2975 + $0x8] sm:$0xff]
  %v2978 = vld [vmem:[%s2975 + $0x10] sm:$0xff]
  %v2979 = vld [vmem:[%s2975 + $0x18] sm:$0xff]
  %s2980 = scalar_lea.vmem %s33, 3
  %v2981 = vld [vmem:[%s2980] sm:$0x1]
  %v2983 = vlaneseq
  %v2984 = vshrl.u32 %v2983, 7
  %v2985 = vsub.s32 0, %v2984
  %v2986 = vrot.slane %v2981, %v2985
  %2988 = vmatprep.subr.mxu0 0.0
  %2989 = vmatpush1.msra.mxu0 %v2976
  %2990 = vmatprep.subr.mxu0 0.0
  %2991 = vmatpush1.msra.mxu0 %v2977
  %2992 = vmatprep.subr.mxu0 0.0
  %2993 = vmatpush1.msra.mxu0 %v2978
  %2994 = vmatprep.subr.mxu0 0.0
  %2995 = vmatpush1.msra.mxu0 %v2979
  %2996 = vmatprep.subr.mxu0 0.0
  %2997 = vmatpush1.msra.mxu0 0.0
  %2998 = vmatprep.subr.mxu0 0.0
  %2999 = vmatpush1.msra.mxu0 0.0
  %3000 = vmatprep.subr.mxu0 0.0
  %3001 = vmatpush1.msra.mxu0 0.0
  %3002 = vmatprep.subr.mxu0 0.0
  %3003 = vmatpush1.msra.mxu0 0.0
  %3004 = vmatprep.subr.mxu0 0.0
  %3005 = vmatpush1.msra.mxu0 0.0
  %3006 = vmatprep.subr.mxu0 0.0
  %3007 = vmatpush1.msra.mxu0 0.0
  %3008 = vmatprep.subr.mxu0 0.0
  %3009 = vmatpush1.msra.mxu0 0.0
  %3010 = vmatprep.subr.mxu0 0.0
  %3011 = vmatpush1.msra.mxu0 0.0
  %3012 = vmatprep.subr.mxu0 0.0
  %3013 = vmatpush1.msra.mxu0 0.0
  %3014 = vmatprep.subr.mxu0 0.0
  %3015 = vmatpush1.msra.mxu0 0.0
  %3016 = vmatprep.subr.mxu0 0.0
  %3017 = vmatpush1.msra.mxu0 0.0
  %3018 = vmatprep.subr.mxu0 0.0
  %3019 = vmatpush1.msra.mxu0 0.0
  %3020 = vmatprep.subr.mxu0 0.0
  %3021 = vmatpush1.msra.mxu0 0.0
  %3022 = vmatprep.subr.mxu0 0.0
  %3023 = vmatpush1.msra.mxu0 0.0
  %3024 = vmatprep.subr.mxu0 0.0
  %3025 = vmatpush1.msra.mxu0 0.0
  %3026 = vmatprep.subr.mxu0 0.0
  %3027 = vmatpush1.msra.mxu0 0.0
  %3028 = vmatprep.subr.mxu0 0.0
  %3029 = vmatpush1.msra.mxu0 0.0
  %3030 = vmatprep.subr.mxu0 0.0
  %3031 = vmatpush1.msra.mxu0 0.0
  %3032 = vmatprep.subr.mxu0 0.0
  %3033 = vmatpush1.msra.mxu0 0.0
  %3034 = vmatprep.subr.mxu0 0.0
  %3035 = vmatpush1.msra.mxu0 0.0
  %3036 = vmatprep.subr.mxu0 0.0
  %3037 = vmatpush1.msra.mxu0 0.0
  %3038 = vmatprep.subr.mxu0 0.0
  %3039 = vmatpush1.msra.mxu0 0.0
  %3040 = vmatprep.subr.mxu0 0.0
  %3041 = vmatpush1.msra.mxu0 0.0
  %3042 = vmatprep.subr.mxu0 0.0
  %3043 = vmatpush1.msra.mxu0 0.0
  %3044 = vmatprep.subr.mxu0 0.0
  %3045 = vmatpush1.msra.mxu0 0.0
  %3046 = vmatprep.subr.mxu0 0.0
  %3047 = vmatpush1.msra.mxu0 0.0
  %3048 = vmatprep.subr.mxu0 0.0
  %3049 = vmatpush1.msra.mxu0 0.0
  %3050 = vmatprep.subr.mxu0 0.0
  %3051 = vmatpush1.msra.mxu0 0.0
  %3052 = vmatprep.mubr.f32.mxu0 0.0
  %3053 = vmatmul.mubr.f32.gmra.mrb[0].mxu0 %v2324
  %v3054 = vpop.f32.mrb[0].mxu0
  %v3055 = vadd.f32 %v2986, %v3054
  %v3056 = vpop.f32.mrb[0].mxu0
  %3057 = vmatprep.mubr.f32.mxu0 0.0
  %3058 = vmatmul.mubr.f32.gmra.mrb[0].mxu0 %v2327
  %v3059 = vpop.f32.mrb[0].mxu0
  %v3060 = vadd.f32 %v2986, %v3059
  %v3061 = vpop.f32.mrb[0].mxu0
  %3062 = vmatprep.mubr.f32.mxu0 0.0
  %3063 = vmatmul.mubr.f32.gmra.mrb[0].mxu0 %v2330
  %v3064 = vpop.f32.mrb[0].mxu0
  %v3065 = vadd.f32 %v2986, %v3064
  %v3066 = vpop.f32.mrb[0].mxu0
  %3067 = vmatprep.mubr.f32.mxu0 0.0
  %3068 = vmatmul.mubr.f32.gmra.mrb[0].mxu0 %v2333
  %v3069 = vpop.f32.mrb[0].mxu0
  %v3070 = vadd.f32 %v2986, %v3069
  %v3071 = vpop.f32.mrb[0].mxu0
  %3072 = vdwg.mxu0
  %s3073 = scalar_lea.vmem %s29, 96
  %v3074 = vld [vmem:[%s3073] sm:$0xff]
  %v3075 = vld [vmem:[%s3073 + $0x8] sm:$0xff]
  %v3076 = vld [vmem:[%s3073 + $0x10] sm:$0xff]
  %v3077 = vld [vmem:[%s3073 + $0x18] sm:$0xff]
  %s3078 = scalar_lea.vmem %s35, 3
  %v3079 = vld [vmem:[%s3078] sm:$0x1]
  %v3081 = vlaneseq
  %v3082 = vshrl.u32 %v3081, 7
  %v3083 = vsub.s32 0, %v3082
  %v3084 = vrot.slane %v3079, %v3083
  %3086 = vmatprep.subr.mxu0 0.0
  %3087 = vmatpush1.msra.mxu0 %v3074
  %3088 = vmatprep.subr.mxu0 0.0
  %3089 = vmatpush1.msra.mxu0 %v3075
  %3090 = vmatprep.subr.mxu0 0.0
  %3091 = vmatpush1.msra.mxu0 %v3076
  %3092 = vmatprep.subr.mxu0 0.0
  %3093 = vmatpush1.msra.mxu0 %v3077
  %3094 = vmatprep.subr.mxu0 0.0
  %3095 = vmatpush1.msra.mxu0 0.0
  %3096 = vmatprep.subr.mxu0 0.0
  %3097 = vmatpush1.msra.mxu0 0.0
  %3098 = vmatprep.subr.mxu0 0.0
  %3099 = vmatpush1.msra.mxu0 0.0
  %3100 = vmatprep.subr.mxu0 0.0
  %3101 = vmatpush1.msra.mxu0 0.0
  %3102 = vmatprep.subr.mxu0 0.0
  %3103 = vmatpush1.msra.mxu0 0.0
  %3104 = vmatprep.subr.mxu0 0.0
  %3105 = vmatpush1.msra.mxu0 0.0
  %3106 = vmatprep.subr.mxu0 0.0
  %3107 = vmatpush1.msra.mxu0 0.0
  %3108 = vmatprep.subr.mxu0 0.0
  %3109 = vmatpush1.msra.mxu0 0.0
  %3110 = vmatprep.subr.mxu0 0.0
  %3111 = vmatpush1.msra.mxu0 0.0
  %3112 = vmatprep.subr.mxu0 0.0
  %3113 = vmatpush1.msra.mxu0 0.0
  %3114 = vmatprep.subr.mxu0 0.0
  %3115 = vmatpush1.msra.mxu0 0.0
  %3116 = vmatprep.subr.mxu0 0.0
  %3117 = vmatpush1.msra.mxu0 0.0
  %3118 = vmatprep.subr.mxu0 0.0
  %3119 = vmatpush1.msra.mxu0 0.0
  %3120 = vmatprep.subr.mxu0 0.0
  %3121 = vmatpush1.msra.mxu0 0.0
  %3122 = vmatprep.subr.mxu0 0.0
  %3123 = vmatpush1.msra.mxu0 0.0
  %3124 = vmatprep.subr.mxu0 0.0
  %3125 = vmatpush1.msra.mxu0 0.0
  %3126 = vmatprep.subr.mxu0 0.0
  %3127 = vmatpush1.msra.mxu0 0.0
  %3128 = vmatprep.subr.mxu0 0.0
  %3129 = vmatpush1.msra.mxu0 0.0
  %3130 = vmatprep.subr.mxu0 0.0
  %3131 = vmatpush1.msra.mxu0 0.0
  %3132 = vmatprep.subr.mxu0 0.0
  %3133 = vmatpush1.msra.mxu0 0.0
  %3134 = vmatprep.subr.mxu0 0.0
  %3135 = vmatpush1.msra.mxu0 0.0
  %3136 = vmatprep.subr.mxu0 0.0
  %3137 = vmatpush1.msra.mxu0 0.0
  %3138 = vmatprep.subr.mxu0 0.0
  %3139 = vmatpush1.msra.mxu0 0.0
  %3140 = vmatprep.subr.mxu0 0.0
  %3141 = vmatpush1.msra.mxu0 0.0
  %3142 = vmatprep.subr.mxu0 0.0
  %3143 = vmatpush1.msra.mxu0 0.0
  %3144 = vmatprep.subr.mxu0 0.0
  %3145 = vmatpush1.msra.mxu0 0.0
  %3146 = vmatprep.subr.mxu0 0.0
  %3147 = vmatpush1.msra.mxu0 0.0
  %3148 = vmatprep.subr.mxu0 0.0
  %3149 = vmatpush1.msra.mxu0 0.0
  %3150 = vmatprep.mubr.f32.mxu0 0.0
  %3151 = vmatmul.mubr.f32.gmra.mrb[0].mxu0 %v2324
  %v3152 = vpop.f32.mrb[0].mxu0
  %v3153 = vadd.f32 %v3084, %v3152
  %v3154 = vpop.f32.mrb[0].mxu0
  %3155 = vmatprep.mubr.f32.mxu0 0.0
  %3156 = vmatmul.mubr.f32.gmra.mrb[0].mxu0 %v2327
  %v3157 = vpop.f32.mrb[0].mxu0
  %v3158 = vadd.f32 %v3084, %v3157
  %v3159 = vpop.f32.mrb[0].mxu0
  %3160 = vmatprep.mubr.f32.mxu0 0.0
  %3161 = vmatmul.mubr.f32.gmra.mrb[0].mxu0 %v2330
  %v3162 = vpop.f32.mrb[0].mxu0
  %v3163 = vadd.f32 %v3084, %v3162
  %v3164 = vpop.f32.mrb[0].mxu0
  %3165 = vmatprep.mubr.f32.mxu0 0.0
  %3166 = vmatmul.mubr.f32.gmra.mrb[0].mxu0 %v2333
  %v3167 = vpop.f32.mrb[0].mxu0
  %v3168 = vadd.f32 %v3084, %v3167
  %v3169 = vpop.f32.mrb[0].mxu0
  %3170 = vdwg.mxu0
  %v3172 = vsel %vm876, %v2957, 0
  %v3175 = vsel %vm876, %v2962, 0
  %v3178 = vsel %vm876, %v2967, 0
  %v3181 = vsel %vm876, %v2972, 0
  %v3184 = vsel %vm876, %v3055, 0
  %v3187 = vsel %vm876, %v3060, 0
  %v3190 = vsel %vm876, %v3065, 0
  %v3193 = vsel %vm876, %v3070, 0
  %3195 = vmatprep.subr.mxu0 0.0
  %3196 = vmatpush1.xpose.msra.mxu0 %v3184
  %3197 = vmatprep.subr.mxu0 0.0
  %3198 = vmatpush1.xpose.msra.mxu0 %v3187
  %3199 = vmatprep.subr.mxu0 0.0
  %3200 = vmatpush1.xpose.msra.mxu0 %v3190
  %3201 = vmatprep.subr.mxu0 0.0
  %3202 = vmatpush1.xpose.msra.mxu0 %v3193
  %3203 = vmatprep.subr.mxu0 0.0
  %3204 = vmatpush1.xpose.msra.mxu0 0.0
  %3205 = vmatprep.subr.mxu0 0.0
  %3206 = vmatpush1.xpose.msra.mxu0 0.0
  %3207 = vmatprep.subr.mxu0 0.0
  %3208 = vmatpush1.xpose.msra.mxu0 0.0
  %3209 = vmatprep.subr.mxu0 0.0
  %3210 = vmatpush1.xpose.msra.mxu0 0.0
  %3211 = vmatprep.subr.mxu0 0.0
  %3212 = vmatpush1.xpose.msra.mxu0 0.0
  %3213 = vmatprep.subr.mxu0 0.0
  %3214 = vmatpush1.xpose.msra.mxu0 0.0
  %3215 = vmatprep.subr.mxu0 0.0
  %3216 = vmatpush1.xpose.msra.mxu0 0.0
  %3217 = vmatprep.subr.mxu0 0.0
  %3218 = vmatpush1.xpose.msra.mxu0 0.0
  %3219 = vmatprep.subr.mxu0 0.0
  %3220 = vmatpush1.xpose.msra.mxu0 0.0
  %3221 = vmatprep.subr.mxu0 0.0
  %3222 = vmatpush1.xpose.msra.mxu0 0.0
  %3223 = vmatprep.subr.mxu0 0.0
  %3224 = vmatpush1.xpose.msra.mxu0 0.0
  %3225 = vmatprep.subr.mxu0 0.0
  %3226 = vmatpush1.xpose.msra.mxu0 0.0
  %3227 = vmatprep.subr.mxu0 0.0
  %3228 = vmatpush1.xpose.msra.mxu0 0.0
  %3229 = vmatprep.subr.mxu0 0.0
  %3230 = vmatpush1.xpose.msra.mxu0 0.0
  %3231 = vmatprep.subr.mxu0 0.0
  %3232 = vmatpush1.xpose.msra.mxu0 0.0
  %3233 = vmatprep.subr.mxu0 0.0
  %3234 = vmatpush1.xpose.msra.mxu0 0.0
  %3235 = vmatprep.subr.mxu0 0.0
  %3236 = vmatpush1.xpose.msra.mxu0 0.0
  %3237 = vmatprep.subr.mxu0 0.0
  %3238 = vmatpush1.xpose.msra.mxu0 0.0
  %3239 = vmatprep.subr.mxu0 0.0
  %3240 = vmatpush1.xpose.msra.mxu0 0.0
  %3241 = vmatprep.subr.mxu0 0.0
  %3242 = vmatpush1.xpose.msra.mxu0 0.0
  %3243 = vmatprep.subr.mxu0 0.0
  %3244 = vmatpush1.xpose.msra.mxu0 0.0
  %3245 = vmatprep.subr.mxu0 0.0
  %3246 = vmatpush1.xpose.msra.mxu0 0.0
  %3247 = vmatprep.subr.mxu0 0.0
  %3248 = vmatpush1.xpose.msra.mxu0 0.0
  %3249 = vmatprep.subr.mxu0 0.0
  %3250 = vmatpush1.xpose.msra.mxu0 0.0
  %3251 = vmatprep.subr.mxu0 0.0
  %3252 = vmatpush1.xpose.msra.mxu0 0.0
  %3253 = vmatprep.subr.mxu0 0.0
  %3254 = vmatpush1.xpose.msra.mxu0 0.0
  %3255 = vmatprep.subr.mxu0 0.0
  %3256 = vmatpush1.xpose.msra.mxu0 0.0
  %3257 = vmatprep.subr.mxu0 0.0
  %3258 = vmatpush1.xpose.msra.mxu0 0.0
  %3259 = vmatprep.mubr.f32.mxu0 0.0
  %3260 = vmatmul.mubr.f32.gmra.mrb[0].mxu0 %v3172
  %v3261 = vpop.f32.mrb[0].mxu0
  %v3262 = vadd.f32 0.0, %v3261
  %v3263 = vpop.f32.mrb[0].mxu0
  %3264 = vmatprep.mubr.f32.mxu0 0.0
  %3265 = vmatmul.mubr.f32.gmra.mrb[0].mxu0 %v3175
  %v3266 = vpop.f32.mrb[0].mxu0
  %v3267 = vadd.f32 0.0, %v3266
  %v3268 = vpop.f32.mrb[0].mxu0
  %3269 = vmatprep.mubr.f32.mxu0 0.0
  %3270 = vmatmul.mubr.f32.gmra.mrb[0].mxu0 %v3178
  %v3271 = vpop.f32.mrb[0].mxu0
  %v3272 = vadd.f32 0.0, %v3271
  %v3273 = vpop.f32.mrb[0].mxu0
  %3274 = vmatprep.mubr.f32.mxu0 0.0
  %3275 = vmatmul.mubr.f32.gmra.mrb[0].mxu0 %v3181
  %v3276 = vpop.f32.mrb[0].mxu0
  %v3277 = vadd.f32 0.0, %v3276
  %v3278 = vpop.f32.mrb[0].mxu0
  %3279 = vdwg.mxu0
  %v3280 = vmul.f32 %v3262, 0.25
  %v3281 = vmul.f32 %v3267, 0.25
  %v3282 = vmul.f32 %v3272, 0.25
  %v3283 = vmul.f32 %v3277, 0.25
  %v3284 = vadd.f32 %v3280, %v572
  %v3285 = vadd.f32 %v3281, %v573
  %v3286 = vadd.f32 %v3282, %v574
  %v3287 = vadd.f32 %v3283, %v575
  %v3288 = vsel %vm251, %v3284, -inf
  %3289 = vmax.xlane.f32.xlu0 %v3288
  %v3290 = vpop.xlane.xlu0 %3289
  %v3291 = vsel %vm251, %v3285, -inf
  %3292 = vmax.xlane.f32.xlu0 %v3291
  %v3293 = vpop.xlane.xlu0 %3292
  %v3294 = vsel %vm251, %v3286, -inf
  %3295 = vmax.xlane.f32.xlu0 %v3294
  %v3296 = vpop.xlane.xlu0 %3295
  %v3297 = vsel %vm251, %v3287, -inf
  %3298 = vmax.xlane.f32.xlu0 %v3297
  %v3299 = vpop.xlane.xlu0 %3298
  %v3300 = vsub.f32 %v3284, %v3290
  %v3301 = vsub.f32 %v3285, %v3293
  %v3302 = vsub.f32 %v3286, %v3296
  %v3303 = vsub.f32 %v3287, %v3299
  %v3304 = vmul.f32 %v3300, 1.442695
  %v3305 = vpow.pop %v3304
  %v3306 = vmul.f32 %v3301, 1.442695
  %v3307 = vpow.pop %v3306
  %v3308 = vmul.f32 %v3302, 1.442695
  %v3309 = vpow.pop %v3308
  %v3310 = vmul.f32 %v3303, 1.442695
  %v3311 = vpow.pop %v3310
  %v3312 = vsel %vm251, %v3305, 0.0
  %3313 = vadd.xlane.f32.xlu0 %v3312
  %v3314 = vpop.xlane.xlu0 %3313
  %v3315 = vsel %vm251, %v3307, 0.0
  %3316 = vadd.xlane.f32.xlu0 %v3315
  %v3317 = vpop.xlane.xlu0 %3316
  %v3318 = vsel %vm251, %v3309, 0.0
  %3319 = vadd.xlane.f32.xlu0 %v3318
  %v3320 = vpop.xlane.xlu0 %3319
  %v3321 = vsel %vm251, %v3311, 0.0
  %3322 = vadd.xlane.f32.xlu0 %v3321
  %v3323 = vpop.xlane.xlu0 %3322
  %v3324 = vrcp.pop %v3314
  %v3325 = vrcp.pop %v3317
  %v3326 = vrcp.pop %v3320
  %v3327 = vrcp.pop %v3323
  %v3328 = vmul.f32 %v3305, %v3324
  %v3329 = vmul.f32 %v3307, %v3325
  %v3330 = vmul.f32 %v3309, %v3326
  %v3331 = vmul.f32 %v3311, %v3327
  %v3333 = vsel %vm251, %v3328, 0
  %v3336 = vsel %vm251, %v3329, 0
  %v3339 = vsel %vm251, %v3330, 0
  %v3342 = vsel %vm251, %v3331, 0
  %3344 = vmatprep.subr.mxu0 0.0
  %3345 = vmatpush1.msra.mxu0 %v3153
  %3346 = vmatprep.subr.mxu0 0.0
  %3347 = vmatpush1.msra.mxu0 %v3158
  %3348 = vmatprep.subr.mxu0 0.0
  %3349 = vmatpush1.msra.mxu0 %v3163
  %3350 = vmatprep.subr.mxu0 0.0
  %3351 = vmatpush1.msra.mxu0 %v3168
  %3352 = vmatprep.subr.mxu0 0.0
  %3353 = vmatpush1.msra.mxu0 0.0
  %3354 = vmatprep.subr.mxu0 0.0
  %3355 = vmatpush1.msra.mxu0 0.0
  %3356 = vmatprep.subr.mxu0 0.0
  %3357 = vmatpush1.msra.mxu0 0.0
  %3358 = vmatprep.subr.mxu0 0.0
  %3359 = vmatpush1.msra.mxu0 0.0
  %3360 = vmatprep.subr.mxu0 0.0
  %3361 = vmatpush1.msra.mxu0 0.0
  %3362 = vmatprep.subr.mxu0 0.0
  %3363 = vmatpush1.msra.mxu0 0.0
  %3364 = vmatprep.subr.mxu0 0.0
  %3365 = vmatpush1.msra.mxu0 0.0
  %3366 = vmatprep.subr.mxu0 0.0
  %3367 = vmatpush1.msra.mxu0 0.0
  %3368 = vmatprep.subr.mxu0 0.0
  %3369 = vmatpush1.msra.mxu0 0.0
  %3370 = vmatprep.subr.mxu0 0.0
  %3371 = vmatpush1.msra.mxu0 0.0
  %3372 = vmatprep.subr.mxu0 0.0
  %3373 = vmatpush1.msra.mxu0 0.0
  %3374 = vmatprep.subr.mxu0 0.0
  %3375 = vmatpush1.msra.mxu0 0.0
  %3376 = vmatprep.subr.mxu0 0.0
  %3377 = vmatpush1.msra.mxu0 0.0
  %3378 = vmatprep.subr.mxu0 0.0
  %3379 = vmatpush1.msra.mxu0 0.0
  %3380 = vmatprep.subr.mxu0 0.0
  %3381 = vmatpush1.msra.mxu0 0.0
  %3382 = vmatprep.subr.mxu0 0.0
  %3383 = vmatpush1.msra.mxu0 0.0
  %3384 = vmatprep.subr.mxu0 0.0
  %3385 = vmatpush1.msra.mxu0 0.0
  %3386 = vmatprep.subr.mxu0 0.0
  %3387 = vmatpush1.msra.mxu0 0.0
  %3388 = vmatprep.subr.mxu0 0.0
  %3389 = vmatpush1.msra.mxu0 0.0
  %3390 = vmatprep.subr.mxu0 0.0
  %3391 = vmatpush1.msra.mxu0 0.0
  %3392 = vmatprep.subr.mxu0 0.0
  %3393 = vmatpush1.msra.mxu0 0.0
  %3394 = vmatprep.subr.mxu0 0.0
  %3395 = vmatpush1.msra.mxu0 0.0
  %3396 = vmatprep.subr.mxu0 0.0
  %3397 = vmatpush1.msra.mxu0 0.0
  %3398 = vmatprep.subr.mxu0 0.0
  %3399 = vmatpush1.msra.mxu0 0.0
  %3400 = vmatprep.subr.mxu0 0.0
  %3401 = vmatpush1.msra.mxu0 0.0
  %3402 = vmatprep.subr.mxu0 0.0
  %3403 = vmatpush1.msra.mxu0 0.0
  %3404 = vmatprep.subr.mxu0 0.0
  %3405 = vmatpush1.msra.mxu0 0.0
  %3406 = vmatprep.subr.mxu0 0.0
  %3407 = vmatpush1.msra.mxu0 0.0
  %3408 = vmatprep.mubr.f32.mxu0 0.0
  %3409 = vmatmul.mubr.f32.gmra.mrb[0].mxu0 %v3333
  %v3410 = vpop.f32.mrb[0].mxu0
  %v3411 = vadd.f32 0.0, %v3410
  %v3412 = vpop.f32.mrb[0].mxu0
  %3413 = vmatprep.mubr.f32.mxu0 0.0
  %3414 = vmatmul.mubr.f32.gmra.mrb[0].mxu0 %v3336
  %v3415 = vpop.f32.mrb[0].mxu0
  %v3416 = vadd.f32 0.0, %v3415
  %v3417 = vpop.f32.mrb[0].mxu0
  %3418 = vmatprep.mubr.f32.mxu0 0.0
  %3419 = vmatmul.mubr.f32.gmra.mrb[0].mxu0 %v3339
  %v3420 = vpop.f32.mrb[0].mxu0
  %v3421 = vadd.f32 0.0, %v3420
  %v3422 = vpop.f32.mrb[0].mxu0
  %3423 = vmatprep.mubr.f32.mxu0 0.0
  %3424 = vmatmul.mubr.f32.gmra.mrb[0].mxu0 %v3342
  %v3425 = vpop.f32.mrb[0].mxu0
  %v3426 = vadd.f32 0.0, %v3425
  %v3427 = vpop.f32.mrb[0].mxu0
  %3428 = vdwg.mxu0
  %s3429 = scalar_lea.vmem %s37, 48
  %v3430 = vld [vmem:[%s3429] sm:$0xff]
  %v3431 = vld [vmem:[%s3429 + $0x8] sm:$0xff]
  %v3433 = vsel %vm876, %v3411, 0
  %v3436 = vsel %vm876, %v3416, 0
  %v3439 = vsel %vm876, %v3421, 0
  %v3442 = vsel %vm876, %v3426, 0
  %3444 = vmatprep.subr.mxu0 0.0
  %3445 = vmatpush1.msra.mxu0 %v3430
  %3446 = vmatprep.subr.mxu0 0.0
  %3447 = vmatpush1.msra.mxu0 %v3431
  %3448 = vmatprep.subr.mxu0 0.0
  %3449 = vmatpush1.msra.mxu0 0.0
  %3450 = vmatprep.subr.mxu0 0.0
  %3451 = vmatpush1.msra.mxu0 0.0
  %3452 = vmatprep.subr.mxu0 0.0
  %3453 = vmatpush1.msra.mxu0 0.0
  %3454 = vmatprep.subr.mxu0 0.0
  %3455 = vmatpush1.msra.mxu0 0.0
  %3456 = vmatprep.subr.mxu0 0.0
  %3457 = vmatpush1.msra.mxu0 0.0
  %3458 = vmatprep.subr.mxu0 0.0
  %3459 = vmatpush1.msra.mxu0 0.0
  %3460 = vmatprep.subr.mxu0 0.0
  %3461 = vmatpush1.msra.mxu0 0.0
  %3462 = vmatprep.subr.mxu0 0.0
  %3463 = vmatpush1.msra.mxu0 0.0
  %3464 = vmatprep.subr.mxu0 0.0
  %3465 = vmatpush1.msra.mxu0 0.0
  %3466 = vmatprep.subr.mxu0 0.0
  %3467 = vmatpush1.msra.mxu0 0.0
  %3468 = vmatprep.subr.mxu0 0.0
  %3469 = vmatpush1.msra.mxu0 0.0
  %3470 = vmatprep.subr.mxu0 0.0
  %3471 = vmatpush1.msra.mxu0 0.0
  %3472 = vmatprep.subr.mxu0 0.0
  %3473 = vmatpush1.msra.mxu0 0.0
  %3474 = vmatprep.subr.mxu0 0.0
  %3475 = vmatpush1.msra.mxu0 0.0
  %3476 = vmatprep.subr.mxu0 0.0
  %3477 = vmatpush1.msra.mxu0 0.0
  %3478 = vmatprep.subr.mxu0 0.0
  %3479 = vmatpush1.msra.mxu0 0.0
  %3480 = vmatprep.subr.mxu0 0.0
  %3481 = vmatpush1.msra.mxu0 0.0
  %3482 = vmatprep.subr.mxu0 0.0
  %3483 = vmatpush1.msra.mxu0 0.0
  %3484 = vmatprep.subr.mxu0 0.0
  %3485 = vmatpush1.msra.mxu0 0.0
  %3486 = vmatprep.subr.mxu0 0.0
  %3487 = vmatpush1.msra.mxu0 0.0
  %3488 = vmatprep.subr.mxu0 0.0
  %3489 = vmatpush1.msra.mxu0 0.0
  %3490 = vmatprep.subr.mxu0 0.0
  %3491 = vmatpush1.msra.mxu0 0.0
  %3492 = vmatprep.subr.mxu0 0.0
  %3493 = vmatpush1.msra.mxu0 0.0
  %3494 = vmatprep.subr.mxu0 0.0
  %3495 = vmatpush1.msra.mxu0 0.0
  %3496 = vmatprep.subr.mxu0 0.0
  %3497 = vmatpush1.msra.mxu0 0.0
  %3498 = vmatprep.subr.mxu0 0.0
  %3499 = vmatpush1.msra.mxu0 0.0
  %3500 = vmatprep.subr.mxu0 0.0
  %3501 = vmatpush1.msra.mxu0 0.0
  %3502 = vmatprep.subr.mxu0 0.0
  %3503 = vmatpush1.msra.mxu0 0.0
  %3504 = vmatprep.subr.mxu0 0.0
  %3505 = vmatpush1.msra.mxu0 0.0
  %3506 = vmatprep.subr.mxu0 0.0
  %3507 = vmatpush1.msra.mxu0 0.0
  %3508 = vmatprep.mubr.f32.mxu0 0.0
  %3509 = vmatmul.mubr.f32.gmra.mrb[0].mxu0 %v3433
  %v3510 = vpop.f32.mrb[0].mxu0
  %v3511 = vadd.f32 0.0, %v3510
  %v3512 = vpop.f32.mrb[0].mxu0
  %3513 = vmatprep.mubr.f32.mxu0 0.0
  %3514 = vmatmul.mubr.f32.gmra.mrb[0].mxu0 %v3436
  %v3515 = vpop.f32.mrb[0].mxu0
  %v3516 = vadd.f32 0.0, %v3515
  %v3517 = vpop.f32.mrb[0].mxu0
  %3518 = vmatprep.mubr.f32.mxu0 0.0
  %3519 = vmatmul.mubr.f32.gmra.mrb[0].mxu0 %v3439
  %v3520 = vpop.f32.mrb[0].mxu0
  %v3521 = vadd.f32 0.0, %v3520
  %v3522 = vpop.f32.mrb[0].mxu0
  %3523 = vmatprep.mubr.f32.mxu0 0.0
  %3524 = vmatmul.mubr.f32.gmra.mrb[0].mxu0 %v3442
  %v3525 = vpop.f32.mrb[0].mxu0
  %v3526 = vadd.f32 0.0, %v3525
  %v3527 = vpop.f32.mrb[0].mxu0
  %3528 = vdwg.mxu0
  %v3530 = vsel %vm876, %v2856, 0
  %v3533 = vsel %vm876, %v2861, 0
  %v3536 = vsel %vm876, %v2866, 0
  %v3539 = vsel %vm876, %v2871, 0
  %3541 = vmatprep.subr.mxu0 0.0
  %3542 = vmatpush1.msra.mxu0 %v2875
  %3543 = vmatprep.subr.mxu0 0.0
  %3544 = vmatpush1.msra.mxu0 %v2876
  %3545 = vmatprep.subr.mxu0 0.0
  %3546 = vmatpush1.msra.mxu0 0.0
  %3547 = vmatprep.subr.mxu0 0.0
  %3548 = vmatpush1.msra.mxu0 0.0
  %3549 = vmatprep.subr.mxu0 0.0
  %3550 = vmatpush1.msra.mxu0 0.0
  %3551 = vmatprep.subr.mxu0 0.0
  %3552 = vmatpush1.msra.mxu0 0.0
  %3553 = vmatprep.subr.mxu0 0.0
  %3554 = vmatpush1.msra.mxu0 0.0
  %3555 = vmatprep.subr.mxu0 0.0
  %3556 = vmatpush1.msra.mxu0 0.0
  %3557 = vmatprep.subr.mxu0 0.0
  %3558 = vmatpush1.msra.mxu0 0.0
  %3559 = vmatprep.subr.mxu0 0.0
  %3560 = vmatpush1.msra.mxu0 0.0
  %3561 = vmatprep.subr.mxu0 0.0
  %3562 = vmatpush1.msra.mxu0 0.0
  %3563 = vmatprep.subr.mxu0 0.0
  %3564 = vmatpush1.msra.mxu0 0.0
  %3565 = vmatprep.subr.mxu0 0.0
  %3566 = vmatpush1.msra.mxu0 0.0
  %3567 = vmatprep.subr.mxu0 0.0
  %3568 = vmatpush1.msra.mxu0 0.0
  %3569 = vmatprep.subr.mxu0 0.0
  %3570 = vmatpush1.msra.mxu0 0.0
  %3571 = vmatprep.subr.mxu0 0.0
  %3572 = vmatpush1.msra.mxu0 0.0
  %3573 = vmatprep.subr.mxu0 0.0
  %3574 = vmatpush1.msra.mxu0 0.0
  %3575 = vmatprep.subr.mxu0 0.0
  %3576 = vmatpush1.msra.mxu0 0.0
  %3577 = vmatprep.subr.mxu0 0.0
  %3578 = vmatpush1.msra.mxu0 0.0
  %3579 = vmatprep.subr.mxu0 0.0
  %3580 = vmatpush1.msra.mxu0 0.0
  %3581 = vmatprep.subr.mxu0 0.0
  %3582 = vmatpush1.msra.mxu0 0.0
  %3583 = vmatprep.subr.mxu0 0.0
  %3584 = vmatpush1.msra.mxu0 0.0
  %3585 = vmatprep.subr.mxu0 0.0
  %3586 = vmatpush1.msra.mxu0 0.0
  %3587 = vmatprep.subr.mxu0 0.0
  %3588 = vmatpush1.msra.mxu0 0.0
  %3589 = vmatprep.subr.mxu0 0.0
  %3590 = vmatpush1.msra.mxu0 0.0
  %3591 = vmatprep.subr.mxu0 0.0
  %3592 = vmatpush1.msra.mxu0 0.0
  %3593 = vmatprep.subr.mxu0 0.0
  %3594 = vmatpush1.msra.mxu0 0.0
  %3595 = vmatprep.subr.mxu0 0.0
  %3596 = vmatpush1.msra.mxu0 0.0
  %3597 = vmatprep.subr.mxu0 0.0
  %3598 = vmatpush1.msra.mxu0 0.0
  %3599 = vmatprep.subr.mxu0 0.0
  %3600 = vmatpush1.msra.mxu0 0.0
  %3601 = vmatprep.subr.mxu0 0.0
  %3602 = vmatpush1.msra.mxu0 0.0
  %3603 = vmatprep.subr.mxu0 0.0
  %3604 = vmatpush1.msra.mxu0 0.0
  %3605 = vmatprep.mubr.f32.mxu0 0.0
  %3606 = vmatmul.mubr.f32.gmra.mrb[0].mxu0 %v3530
  %v3607 = vpop.f32.mrb[0].mxu0
  %v3608 = vadd.f32 %v3511, %v3607
  %v3609 = vpop.f32.mrb[0].mxu0
  %3610 = vmatprep.mubr.f32.mxu0 0.0
  %3611 = vmatmul.mubr.f32.gmra.mrb[0].mxu0 %v3533
  %v3612 = vpop.f32.mrb[0].mxu0
  %v3613 = vadd.f32 %v3516, %v3612
  %v3614 = vpop.f32.mrb[0].mxu0
  %3615 = vmatprep.mubr.f32.mxu0 0.0
  %3616 = vmatmul.mubr.f32.gmra.mrb[0].mxu0 %v3536
  %v3617 = vpop.f32.mrb[0].mxu0
  %v3618 = vadd.f32 %v3521, %v3617
  %v3619 = vpop.f32.mrb[0].mxu0
  %3620 = vmatprep.mubr.f32.mxu0 0.0
  %3621 = vmatmul.mubr.f32.gmra.mrb[0].mxu0 %v3539
  %v3622 = vpop.f32.mrb[0].mxu0
  %v3623 = vadd.f32 %v3526, %v3622
  %v3624 = vpop.f32.mrb[0].mxu0
  %3625 = vdwg.mxu0
  %s3626 = scalar_lea.vmem %s39, 1
  %v3627 = vld [vmem:[%s3626] sm:$0x1]
  %v3629 = vlaneseq
  %v3630 = vshrl.u32 %v3629, 7
  %v3631 = vsub.s32 0, %v3630
  %v3632 = vrot.slane %v3627, %v3631
  %v3634 = vadd.f32 %v3608, %v3632
  %v3635 = vadd.f32 %v3613, %v3632
  %v3636 = vadd.f32 %v3618, %v3632
  %v3637 = vadd.f32 %v3623, %v3632
  %v3638 = vadd.f32 %v3634, %v2306
  %v3639 = vadd.f32 %v3635, %v2307
  %v3640 = vadd.f32 %v3636, %v2308
  %v3641 = vadd.f32 %v3637, %v2309
  %s3642 = scalar_lea.vmem %s41, 1
  %v3643 = vld [vmem:[%s3642] sm:$0x1]
  %s3644 = scalar_lea.vmem %s43, 1
  %v3645 = vld [vmem:[%s3644] sm:$0x1]
  %v3646 = vsel %vm251, %v3638, 0.0
  %3647 = vadd.xlane.f32.xlu0 %v3646
  %v3648 = vpop.xlane.xlu0 %3647
  %v3649 = vsel %vm251, %v3639, 0.0
  %3650 = vadd.xlane.f32.xlu0 %v3649
  %v3651 = vpop.xlane.xlu0 %3650
  %v3652 = vsel %vm251, %v3640, 0.0
  %3653 = vadd.xlane.f32.xlu0 %v3652
  %v3654 = vpop.xlane.xlu0 %3653
  %v3655 = vsel %vm251, %v3641, 0.0
  %3656 = vadd.xlane.f32.xlu0 %v3655
  %v3657 = vpop.xlane.xlu0 %3656
  %v3658 = vmul.f32 %v3648, %v258
  %v3659 = vmul.f32 %v3651, %v258
  %v3660 = vmul.f32 %v3654, %v258
  %v3661 = vmul.f32 %v3657, %v258
  %v3662 = vsub.f32 %v3638, %v3658
  %v3663 = vsub.f32 %v3639, %v3659
  %v3664 = vsub.f32 %v3640, %v3660
  %v3665 = vsub.f32 %v3641, %v3661
  %v3666 = vmul.f32 %v3662, %v3662
  %v3667 = vmul.f32 %v3663, %v3663
  %v3668 = vmul.f32 %v3664, %v3664
  %v3669 = vmul.f32 %v3665, %v3665
  %v3670 = vsel %vm251, %v3666, 0.0
  %3671 = vadd.xlane.f32.xlu0 %v3670
  %v3672 = vpop.xlane.xlu0 %3671
  %v3673 = vsel %vm251, %v3667, 0.0
  %3674 = vadd.xlane.f32.xlu0 %v3673
  %v3675 = vpop.xlane.xlu0 %3674
  %v3676 = vsel %vm251, %v3668, 0.0
  %3677 = vadd.xlane.f32.xlu0 %v3676
  %v3678 = vpop.xlane.xlu0 %3677
  %v3679 = vsel %vm251, %v3669, 0.0
  %3680 = vadd.xlane.f32.xlu0 %v3679
  %v3681 = vpop.xlane.xlu0 %3680
  %v3682 = vmul.f32 %v3672, %v258
  %v3683 = vmul.f32 %v3675, %v258
  %v3684 = vmul.f32 %v3678, %v258
  %v3685 = vmul.f32 %v3681, %v258
  %v3686 = vadd.f32 %v3682, 1e-12
  %v3687 = vadd.f32 %v3683, 1e-12
  %v3688 = vadd.f32 %v3684, 1e-12
  %v3689 = vadd.f32 %v3685, 1e-12
  %v3690 = vrsqrt.pop %v3686
  %v3691 = vrsqrt.pop %v3687
  %v3692 = vrsqrt.pop %v3688
  %v3693 = vrsqrt.pop %v3689
  %v3694 = vmul.f32 %v3662, %v3690
  %v3695 = vmul.f32 %v3663, %v3691
  %v3696 = vmul.f32 %v3664, %v3692
  %v3697 = vmul.f32 %v3665, %v3693
  %v3699 = vlaneseq
  %v3700 = vshrl.u32 %v3699, 7
  %v3701 = vsub.s32 0, %v3700
  %v3702 = vrot.slane %v3643, %v3701
  %v3704 = vmul.f32 %v3694, %v3702
  %v3705 = vmul.f32 %v3695, %v3702
  %v3706 = vmul.f32 %v3696, %v3702
  %v3707 = vmul.f32 %v3697, %v3702
  %v3709 = vlaneseq
  %v3710 = vshrl.u32 %v3709, 7
  %v3711 = vsub.s32 0, %v3710
  %v3712 = vrot.slane %v3645, %v3711
  %v3714 = vadd.f32 %v3704, %v3712
  %v3715 = vadd.f32 %v3705, %v3712
  %v3716 = vadd.f32 %v3706, %v3712
  %v3717 = vadd.f32 %v3707, %v3712
  %s3718 = scalar_lea.vmem %s45, 32
  %v3719 = vld [vmem:[%s3718] sm:$0xff]
  %v3720 = vld [vmem:[%s3718 + $0x8] sm:$0xff]
  %v3721 = vld [vmem:[%s3718 + $0x10] sm:$0xff]
  %v3722 = vld [vmem:[%s3718 + $0x18] sm:$0xff]
  %s3723 = scalar_lea.vmem %s47, 1
  %v3724 = vld [vmem:[%s3723] sm:$0x1]
  %v3726 = vlaneseq
  %v3727 = vshrl.u32 %v3726, 7
  %v3728 = vsub.s32 0, %v3727
  %v3729 = vrot.slane %v3724, %v3728
  %v3732 = vsel %vm251, %v3714, 0
  %v3735 = vsel %vm251, %v3715, 0
  %v3738 = vsel %vm251, %v3716, 0
  %v3741 = vsel %vm251, %v3717, 0
  %3743 = vmatprep.subr.mxu0 0.0
  %3744 = vmatpush1.msra.mxu0 %v3719
  %3745 = vmatprep.subr.mxu0 0.0
  %3746 = vmatpush1.msra.mxu0 %v3720
  %3747 = vmatprep.subr.mxu0 0.0
  %3748 = vmatpush1.msra.mxu0 %v3721
  %3749 = vmatprep.subr.mxu0 0.0
  %3750 = vmatpush1.msra.mxu0 %v3722
  %3751 = vmatprep.subr.mxu0 0.0
  %3752 = vmatpush1.msra.mxu0 0.0
  %3753 = vmatprep.subr.mxu0 0.0
  %3754 = vmatpush1.msra.mxu0 0.0
  %3755 = vmatprep.subr.mxu0 0.0
  %3756 = vmatpush1.msra.mxu0 0.0
  %3757 = vmatprep.subr.mxu0 0.0
  %3758 = vmatpush1.msra.mxu0 0.0
  %3759 = vmatprep.subr.mxu0 0.0
  %3760 = vmatpush1.msra.mxu0 0.0
  %3761 = vmatprep.subr.mxu0 0.0
  %3762 = vmatpush1.msra.mxu0 0.0
  %3763 = vmatprep.subr.mxu0 0.0
  %3764 = vmatpush1.msra.mxu0 0.0
  %3765 = vmatprep.subr.mxu0 0.0
  %3766 = vmatpush1.msra.mxu0 0.0
  %3767 = vmatprep.subr.mxu0 0.0
  %3768 = vmatpush1.msra.mxu0 0.0
  %3769 = vmatprep.subr.mxu0 0.0
  %3770 = vmatpush1.msra.mxu0 0.0
  %3771 = vmatprep.subr.mxu0 0.0
  %3772 = vmatpush1.msra.mxu0 0.0
  %3773 = vmatprep.subr.mxu0 0.0
  %3774 = vmatpush1.msra.mxu0 0.0
  %3775 = vmatprep.subr.mxu0 0.0
  %3776 = vmatpush1.msra.mxu0 0.0
  %3777 = vmatprep.subr.mxu0 0.0
  %3778 = vmatpush1.msra.mxu0 0.0
  %3779 = vmatprep.subr.mxu0 0.0
  %3780 = vmatpush1.msra.mxu0 0.0
  %3781 = vmatprep.subr.mxu0 0.0
  %3782 = vmatpush1.msra.mxu0 0.0
  %3783 = vmatprep.subr.mxu0 0.0
  %3784 = vmatpush1.msra.mxu0 0.0
  %3785 = vmatprep.subr.mxu0 0.0
  %3786 = vmatpush1.msra.mxu0 0.0
  %3787 = vmatprep.subr.mxu0 0.0
  %3788 = vmatpush1.msra.mxu0 0.0
  %3789 = vmatprep.subr.mxu0 0.0
  %3790 = vmatpush1.msra.mxu0 0.0
  %3791 = vmatprep.subr.mxu0 0.0
  %3792 = vmatpush1.msra.mxu0 0.0
  %3793 = vmatprep.subr.mxu0 0.0
  %3794 = vmatpush1.msra.mxu0 0.0
  %3795 = vmatprep.subr.mxu0 0.0
  %3796 = vmatpush1.msra.mxu0 0.0
  %3797 = vmatprep.subr.mxu0 0.0
  %3798 = vmatpush1.msra.mxu0 0.0
  %3799 = vmatprep.subr.mxu0 0.0
  %3800 = vmatpush1.msra.mxu0 0.0
  %3801 = vmatprep.subr.mxu0 0.0
  %3802 = vmatpush1.msra.mxu0 0.0
  %3803 = vmatprep.subr.mxu0 0.0
  %3804 = vmatpush1.msra.mxu0 0.0
  %3805 = vmatprep.subr.mxu0 0.0
  %3806 = vmatpush1.msra.mxu0 0.0
  %3807 = vmatprep.mubr.f32.mxu0 0.0
  %3808 = vmatmul.mubr.f32.gmra.mrb[0].mxu0 %v3732
  %v3809 = vpop.f32.mrb[0].mxu0
  %v3810 = vadd.f32 %v3729, %v3809
  %v3811 = vpop.f32.mrb[0].mxu0
  %3812 = vmatprep.mubr.f32.mxu0 0.0
  %3813 = vmatmul.mubr.f32.gmra.mrb[0].mxu0 %v3735
  %v3814 = vpop.f32.mrb[0].mxu0
  %v3815 = vadd.f32 %v3729, %v3814
  %v3816 = vpop.f32.mrb[0].mxu0
  %3817 = vmatprep.mubr.f32.mxu0 0.0
  %3818 = vmatmul.mubr.f32.gmra.mrb[0].mxu0 %v3738
  %v3819 = vpop.f32.mrb[0].mxu0
  %v3820 = vadd.f32 %v3729, %v3819
  %v3821 = vpop.f32.mrb[0].mxu0
  %3822 = vmatprep.mubr.f32.mxu0 0.0
  %3823 = vmatmul.mubr.f32.gmra.mrb[0].mxu0 %v3741
  %v3824 = vpop.f32.mrb[0].mxu0
  %v3825 = vadd.f32 %v3729, %v3824
  %v3826 = vpop.f32.mrb[0].mxu0
  %3827 = vdwg.mxu0
  %v3828 = vmul.f32 %v3810, 0.5
  %v3829 = vmul.f32 %v3815, 0.5
  %v3830 = vmul.f32 %v3820, 0.5
  %v3831 = vmul.f32 %v3825, 0.5
  %v3832 = vmul.f32 %v3810, 0.044715
  %v3833 = vmul.f32 %v3815, 0.044715
  %v3834 = vmul.f32 %v3820, 0.044715
  %v3835 = vmul.f32 %v3825, 0.044715
  %v3836 = vmul.f32 %v3832, %v3810
  %v3837 = vmul.f32 %v3833, %v3815
  %v3838 = vmul.f32 %v3834, %v3820
  %v3839 = vmul.f32 %v3835, %v3825
  %v3840 = vmul.f32 %v3836, %v3810
  %v3841 = vmul.f32 %v3837, %v3815
  %v3842 = vmul.f32 %v3838, %v3820
  %v3843 = vmul.f32 %v3839, %v3825
  %v3844 = vadd.f32 %v3810, %v3840
  %v3845 = vadd.f32 %v3815, %v3841
  %v3846 = vadd.f32 %v3820, %v3842
  %v3847 = vadd.f32 %v3825, %v3843
  %v3848 = vmul.f32 %v3844, 0.7978846
  %v3849 = vmul.f32 %v3845, 0.7978846
  %v3850 = vmul.f32 %v3846, 0.7978846
  %v3851 = vmul.f32 %v3847, 0.7978846
  %v3852 = vtanh.pop %v3848
  %v3853 = vtanh.pop %v3849
  %v3854 = vtanh.pop %v3850
  %v3855 = vtanh.pop %v3851
  %v3856 = vadd.f32 %v3852, 1.0
  %v3857 = vadd.f32 %v3853, 1.0
  %v3858 = vadd.f32 %v3854, 1.0
  %v3859 = vadd.f32 %v3855, 1.0
  %v3860 = vmul.f32 %v3828, %v3856
  %v3861 = vmul.f32 %v3829, %v3857
  %v3862 = vmul.f32 %v3830, %v3858
  %v3863 = vmul.f32 %v3831, %v3859
  %s3864 = scalar_lea.vmem %s49, 64
  %v3865 = vld [vmem:[%s3864] sm:$0xff]
  %v3866 = vld [vmem:[%s3864 + $0x8] sm:$0xff]
  %v3867 = vld [vmem:[%s3864 + $0x10] sm:$0xff]
  %v3868 = vld [vmem:[%s3864 + $0x18] sm:$0xff]
  %v3869 = vld [vmem:[%s3864 + $0x20] sm:$0xff]
  %v3870 = vld [vmem:[%s3864 + $0x28] sm:$0xff]
  %v3871 = vld [vmem:[%s3864 + $0x30] sm:$0xff]
  %v3872 = vld [vmem:[%s3864 + $0x38] sm:$0xff]
  %s3873 = scalar_lea.vmem %s51, 1
  %v3874 = vld [vmem:[%s3873] sm:$0x1]
  %v3876 = vlaneseq
  %v3877 = vshrl.u32 %v3876, 7
  %v3878 = vsub.s32 0, %v3877
  %v3879 = vrot.slane %v3874, %v3878
  %v3882 = vsel %vm2134, %v3860, 0
  %v3885 = vsel %vm2134, %v3861, 0
  %v3888 = vsel %vm2134, %v3862, 0
  %v3891 = vsel %vm2134, %v3863, 0
  %3893 = vmatprep.subr.mxu0 0.0
  %3894 = vmatpush1.msra.mxu0 %v3865
  %3895 = vmatprep.subr.mxu0 0.0
  %3896 = vmatpush1.msra.mxu0 %v3866
  %3897 = vmatprep.subr.mxu0 0.0
  %3898 = vmatpush1.msra.mxu0 %v3867
  %3899 = vmatprep.subr.mxu0 0.0
  %3900 = vmatpush1.msra.mxu0 %v3868
  %3901 = vmatprep.subr.mxu0 0.0
  %3902 = vmatpush1.msra.mxu0 %v3869
  %3903 = vmatprep.subr.mxu0 0.0
  %3904 = vmatpush1.msra.mxu0 %v3870
  %3905 = vmatprep.subr.mxu0 0.0
  %3906 = vmatpush1.msra.mxu0 %v3871
  %3907 = vmatprep.subr.mxu0 0.0
  %3908 = vmatpush1.msra.mxu0 %v3872
  %3909 = vmatprep.subr.mxu0 0.0
  %3910 = vmatpush1.msra.mxu0 0.0
  %3911 = vmatprep.subr.mxu0 0.0
  %3912 = vmatpush1.msra.mxu0 0.0
  %3913 = vmatprep.subr.mxu0 0.0
  %3914 = vmatpush1.msra.mxu0 0.0
  %3915 = vmatprep.subr.mxu0 0.0
  %3916 = vmatpush1.msra.mxu0 0.0
  %3917 = vmatprep.subr.mxu0 0.0
  %3918 = vmatpush1.msra.mxu0 0.0
  %3919 = vmatprep.subr.mxu0 0.0
  %3920 = vmatpush1.msra.mxu0 0.0
  %3921 = vmatprep.subr.mxu0 0.0
  %3922 = vmatpush1.msra.mxu0 0.0
  %3923 = vmatprep.subr.mxu0 0.0
  %3924 = vmatpush1.msra.mxu0 0.0
  %3925 = vmatprep.subr.mxu0 0.0
  %3926 = vmatpush1.msra.mxu0 0.0
  %3927 = vmatprep.subr.mxu0 0.0
  %3928 = vmatpush1.msra.mxu0 0.0
  %3929 = vmatprep.subr.mxu0 0.0
  %3930 = vmatpush1.msra.mxu0 0.0
  %3931 = vmatprep.subr.mxu0 0.0
  %3932 = vmatpush1.msra.mxu0 0.0
  %3933 = vmatprep.subr.mxu0 0.0
  %3934 = vmatpush1.msra.mxu0 0.0
  %3935 = vmatprep.subr.mxu0 0.0
  %3936 = vmatpush1.msra.mxu0 0.0
  %3937 = vmatprep.subr.mxu0 0.0
  %3938 = vmatpush1.msra.mxu0 0.0
  %3939 = vmatprep.subr.mxu0 0.0
  %3940 = vmatpush1.msra.mxu0 0.0
  %3941 = vmatprep.subr.mxu0 0.0
  %3942 = vmatpush1.msra.mxu0 0.0
  %3943 = vmatprep.subr.mxu0 0.0
  %3944 = vmatpush1.msra.mxu0 0.0
  %3945 = vmatprep.subr.mxu0 0.0
  %3946 = vmatpush1.msra.mxu0 0.0
  %3947 = vmatprep.subr.mxu0 0.0
  %3948 = vmatpush1.msra.mxu0 0.0
  %3949 = vmatprep.subr.mxu0 0.0
  %3950 = vmatpush1.msra.mxu0 0.0
  %3951 = vmatprep.subr.mxu0 0.0
  %3952 = vmatpush1.msra.mxu0 0.0
  %3953 = vmatprep.subr.mxu0 0.0
  %3954 = vmatpush1.msra.mxu0 0.0
  %3955 = vmatprep.subr.mxu0 0.0
  %3956 = vmatpush1.msra.mxu0 0.0
  %3957 = vmatprep.mubr.f32.mxu0 0.0
  %3958 = vmatmul.mubr.f32.gmra.mrb[0].mxu0 %v3882
  %v3959 = vpop.f32.mrb[0].mxu0
  %v3960 = vadd.f32 %v3879, %v3959
  %v3961 = vpop.f32.mrb[0].mxu0
  %3962 = vmatprep.mubr.f32.mxu0 0.0
  %3963 = vmatmul.mubr.f32.gmra.mrb[0].mxu0 %v3885
  %v3964 = vpop.f32.mrb[0].mxu0
  %v3965 = vadd.f32 %v3879, %v3964
  %v3966 = vpop.f32.mrb[0].mxu0
  %3967 = vmatprep.mubr.f32.mxu0 0.0
  %3968 = vmatmul.mubr.f32.gmra.mrb[0].mxu0 %v3888
  %v3969 = vpop.f32.mrb[0].mxu0
  %v3970 = vadd.f32 %v3879, %v3969
  %v3971 = vpop.f32.mrb[0].mxu0
  %3972 = vmatprep.mubr.f32.mxu0 0.0
  %3973 = vmatmul.mubr.f32.gmra.mrb[0].mxu0 %v3891
  %v3974 = vpop.f32.mrb[0].mxu0
  %v3975 = vadd.f32 %v3879, %v3974
  %v3976 = vpop.f32.mrb[0].mxu0
  %3977 = vdwg.mxu0
  %v3978 = vadd.f32 %v3960, %v3714
  %v3979 = vadd.f32 %v3965, %v3715
  %v3980 = vadd.f32 %v3970, %v3716
  %v3981 = vadd.f32 %v3975, %v3717
  %s3982 = scalar_lea.vmem %s53, 1
  %v3983 = vld [vmem:[%s3982] sm:$0x1]
  %s3984 = scalar_lea.vmem %s55, 1
  %v3985 = vld [vmem:[%s3984] sm:$0x1]
  %v3986 = vsel %vm251, %v3978, 0.0
  %3987 = vadd.xlane.f32.xlu0 %v3986
  %v3988 = vpop.xlane.xlu0 %3987
  %v3989 = vsel %vm251, %v3979, 0.0
  %3990 = vadd.xlane.f32.xlu0 %v3989
  %v3991 = vpop.xlane.xlu0 %3990
  %v3992 = vsel %vm251, %v3980, 0.0
  %3993 = vadd.xlane.f32.xlu0 %v3992
  %v3994 = vpop.xlane.xlu0 %3993
  %v3995 = vsel %vm251, %v3981, 0.0
  %3996 = vadd.xlane.f32.xlu0 %v3995
  %v3997 = vpop.xlane.xlu0 %3996
  %v3998 = vmul.f32 %v3988, %v258
  %v3999 = vmul.f32 %v3991, %v258
  %v4000 = vmul.f32 %v3994, %v258
  %v4001 = vmul.f32 %v3997, %v258
  %v4002 = vsub.f32 %v3978, %v3998
  %v4003 = vsub.f32 %v3979, %v3999
  %v4004 = vsub.f32 %v3980, %v4000
  %v4005 = vsub.f32 %v3981, %v4001
  %v4006 = vmul.f32 %v4002, %v4002
  %v4007 = vmul.f32 %v4003, %v4003
  %v4008 = vmul.f32 %v4004, %v4004
  %v4009 = vmul.f32 %v4005, %v4005
  %v4010 = vsel %vm251, %v4006, 0.0
  %4011 = vadd.xlane.f32.xlu0 %v4010
  %v4012 = vpop.xlane.xlu0 %4011
  %v4013 = vsel %vm251, %v4007, 0.0
  %4014 = vadd.xlane.f32.xlu0 %v4013
  %v4015 = vpop.xlane.xlu0 %4014
  %v4016 = vsel %vm251, %v4008, 0.0
  %4017 = vadd.xlane.f32.xlu0 %v4016
  %v4018 = vpop.xlane.xlu0 %4017
  %v4019 = vsel %vm251, %v4009, 0.0
  %4020 = vadd.xlane.f32.xlu0 %v4019
  %v4021 = vpop.xlane.xlu0 %4020
  %v4022 = vmul.f32 %v4012, %v258
  %v4023 = vmul.f32 %v4015, %v258
  %v4024 = vmul.f32 %v4018, %v258
  %v4025 = vmul.f32 %v4021, %v258
  %v4026 = vadd.f32 %v4022, 1e-12
  %v4027 = vadd.f32 %v4023, 1e-12
  %v4028 = vadd.f32 %v4024, 1e-12
  %v4029 = vadd.f32 %v4025, 1e-12
  %v4030 = vrsqrt.pop %v4026
  %v4031 = vrsqrt.pop %v4027
  %v4032 = vrsqrt.pop %v4028
  %v4033 = vrsqrt.pop %v4029
  %v4034 = vmul.f32 %v4002, %v4030
  %v4035 = vmul.f32 %v4003, %v4031
  %v4036 = vmul.f32 %v4004, %v4032
  %v4037 = vmul.f32 %v4005, %v4033
  %v4039 = vlaneseq
  %v4040 = vshrl.u32 %v4039, 7
  %v4041 = vsub.s32 0, %v4040
  %v4042 = vrot.slane %v3983, %v4041
  %v4044 = vmul.f32 %v4034, %v4042
  %v4045 = vmul.f32 %v4035, %v4042
  %v4046 = vmul.f32 %v4036, %v4042
  %v4047 = vmul.f32 %v4037, %v4042
  %v4049 = vlaneseq
  %v4050 = vshrl.u32 %v4049, 7
  %v4051 = vsub.s32 0, %v4050
  %v4052 = vrot.slane %v3985, %v4051
  %v4054 = vadd.f32 %v4044, %v4052
  %v4055 = vadd.f32 %v4045, %v4052
  %v4056 = vadd.f32 %v4046, %v4052
  %v4057 = vadd.f32 %v4047, %v4052
  %v4058 = vld [vmem:[%s57] sm:$0xf]
  %v4060 = vsel %vm251, %v4058, 0
  %4062 = vmatprep.subr.mxu0 0.0
  %4063 = vmatpush1.msra.mxu0 %v4054
  %4064 = vmatprep.subr.mxu0 0.0
  %4065 = vmatpush1.msra.mxu0 %v4055
  %4066 = vmatprep.subr.mxu0 0.0
  %4067 = vmatpush1.msra.mxu0 %v4056
  %4068 = vmatprep.subr.mxu0 0.0
  %4069 = vmatpush1.msra.mxu0 %v4057
  %4070 = vmatprep.subr.mxu0 0.0
  %4071 = vmatpush1.msra.mxu0 0.0
  %4072 = vmatprep.subr.mxu0 0.0
  %4073 = vmatpush1.msra.mxu0 0.0
  %4074 = vmatprep.subr.mxu0 0.0
  %4075 = vmatpush1.msra.mxu0 0.0
  %4076 = vmatprep.subr.mxu0 0.0
  %4077 = vmatpush1.msra.mxu0 0.0
  %4078 = vmatprep.subr.mxu0 0.0
  %4079 = vmatpush1.msra.mxu0 0.0
  %4080 = vmatprep.subr.mxu0 0.0
  %4081 = vmatpush1.msra.mxu0 0.0
  %4082 = vmatprep.subr.mxu0 0.0
  %4083 = vmatpush1.msra.mxu0 0.0
  %4084 = vmatprep.subr.mxu0 0.0
  %4085 = vmatpush1.msra.mxu0 0.0
  %4086 = vmatprep.subr.mxu0 0.0
  %4087 = vmatpush1.msra.mxu0 0.0
  %4088 = vmatprep.subr.mxu0 0.0
  %4089 = vmatpush1.msra.mxu0 0.0
  %4090 = vmatprep.subr.mxu0 0.0
  %4091 = vmatpush1.msra.mxu0 0.0
  %4092 = vmatprep.subr.mxu0 0.0
  %4093 = vmatpush1.msra.mxu0 0.0
  %4094 = vmatprep.subr.mxu0 0.0
  %4095 = vmatpush1.msra.mxu0 0.0
  %4096 = vmatprep.subr.mxu0 0.0
  %4097 = vmatpush1.msra.mxu0 0.0
  %4098 = vmatprep.subr.mxu0 0.0
  %4099 = vmatpush1.msra.mxu0 0.0
  %4100 = vmatprep.subr.mxu0 0.0
  %4101 = vmatpush1.msra.mxu0 0.0
  %4102 = vmatprep.subr.mxu0 0.0
  %4103 = vmatpush1.msra.mxu0 0.0
  %4104 = vmatprep.subr.mxu0 0.0
  %4105 = vmatpush1.msra.mxu0 0.0
  %4106 = vmatprep.subr.mxu0 0.0
  %4107 = vmatpush1.msra.mxu0 0.0
  %4108 = vmatprep.subr.mxu0 0.0
  %4109 = vmatpush1.msra.mxu0 0.0
  %4110 = vmatprep.subr.mxu0 0.0
  %4111 = vmatpush1.msra.mxu0 0.0
  %4112 = vmatprep.subr.mxu0 0.0
  %4113 = vmatpush1.msra.mxu0 0.0
  %4114 = vmatprep.subr.mxu0 0.0
  %4115 = vmatpush1.msra.mxu0 0.0
  %4116 = vmatprep.subr.mxu0 0.0
  %4117 = vmatpush1.msra.mxu0 0.0
  %4118 = vmatprep.subr.mxu0 0.0
  %4119 = vmatpush1.msra.mxu0 0.0
  %4120 = vmatprep.subr.mxu0 0.0
  %4121 = vmatpush1.msra.mxu0 0.0
  %4122 = vmatprep.subr.mxu0 0.0
  %4123 = vmatpush1.msra.mxu0 0.0
  %4124 = vmatprep.subr.mxu0 0.0
  %4125 = vmatpush1.msra.mxu0 0.0
  %4126 = vmatprep.mubr.f32.mxu0 0.0
  %4127 = vmatmul.mubr.f32.gmra.mrb[0].mxu0 %v4060
  %v4128 = vpop.f32.mrb[0].mxu0
  %v4129 = vadd.f32 0.0, %v4128
  %v4130 = vpop.f32.mrb[0].mxu0
  %4131 = vdwg.mxu0
  %v4132 = vld [vmem:[%s59] sm:$0xff]
  %v4133 = vld [vmem:[%s59 + $0x8] sm:$0xff]
  %v4134 = vld [vmem:[%s59 + $0x10] sm:$0xff]
  %v4135 = vld [vmem:[%s59 + $0x18] sm:$0xff]
  %v4136 = vld [vmem:[%s59 + $0x20] sm:$0xff]
  %v4137 = vld [vmem:[%s59 + $0x28] sm:$0xff]
  %v4138 = vld [vmem:[%s59 + $0x30] sm:$0xff]
  %v4139 = vld [vmem:[%s59 + $0x38] sm:$0xff]
  %v4140 = vld [vmem:[%s61] sm:$0x3]
  %v4142 = vlaneseq
  %v4143 = vshrl.u32 %v4142, 7
  %v4144 = vsub.s32 0, %v4143
  %v4145 = vrot.slane %v4140, %v4144
  %v4146 = vlaneseq
  %v4147 = vshrl.u32 %v4146, 7
  %v4148 = vsub.s32 1, %v4147
  %v4149 = vrot.slane %v4140, %v4148
  %v4153 = vsel %vm251, %v4129, 0
  %4155 = vmatprep.subr.mxu0 %v4133
  %4156 = vmatpush1.msra.mxu0 %v4132
  %4157 = vmatprep.subr.mxu0 %v4135
  %4158 = vmatpush1.msra.mxu0 %v4134
  %4159 = vmatprep.subr.mxu0 %v4137
  %4160 = vmatpush1.msra.mxu0 %v4136
  %4161 = vmatprep.subr.mxu0 %v4139
  %4162 = vmatpush1.msra.mxu0 %v4138
  %4163 = vmatprep.subr.mxu0 0.0
  %4164 = vmatpush1.msra.mxu0 0.0
  %4165 = vmatprep.subr.mxu0 0.0
  %4166 = vmatpush1.msra.mxu0 0.0
  %4167 = vmatprep.subr.mxu0 0.0
  %4168 = vmatpush1.msra.mxu0 0.0
  %4169 = vmatprep.subr.mxu0 0.0
  %4170 = vmatpush1.msra.mxu0 0.0
  %4171 = vmatprep.subr.mxu0 0.0
  %4172 = vmatpush1.msra.mxu0 0.0
  %4173 = vmatprep.subr.mxu0 0.0
  %4174 = vmatpush1.msra.mxu0 0.0
  %4175 = vmatprep.subr.mxu0 0.0
  %4176 = vmatpush1.msra.mxu0 0.0
  %4177 = vmatprep.subr.mxu0 0.0
  %4178 = vmatpush1.msra.mxu0 0.0
  %4179 = vmatprep.subr.mxu0 0.0
  %4180 = vmatpush1.msra.mxu0 0.0
  %4181 = vmatprep.subr.mxu0 0.0
  %4182 = vmatpush1.msra.mxu0 0.0
  %4183 = vmatprep.subr.mxu0 0.0
  %4184 = vmatpush1.msra.mxu0 0.0
  %4185 = vmatprep.subr.mxu0 0.0
  %4186 = vmatpush1.msra.mxu0 0.0
  %4187 = vmatprep.subr.mxu0 0.0
  %4188 = vmatpush1.msra.mxu0 0.0
  %4189 = vmatprep.subr.mxu0 0.0
  %4190 = vmatpush1.msra.mxu0 0.0
  %4191 = vmatprep.subr.mxu0 0.0
  %4192 = vmatpush1.msra.mxu0 0.0
  %4193 = vmatprep.subr.mxu0 0.0
  %4194 = vmatpush1.msra.mxu0 0.0
  %4195 = vmatprep.subr.mxu0 0.0
  %4196 = vmatpush1.msra.mxu0 0.0
  %4197 = vmatprep.subr.mxu0 0.0
  %4198 = vmatpush1.msra.mxu0 0.0
  %4199 = vmatprep.subr.mxu0 0.0
  %4200 = vmatpush1.msra.mxu0 0.0
  %4201 = vmatprep.subr.mxu0 0.0
  %4202 = vmatpush1.msra.mxu0 0.0
  %4203 = vmatprep.subr.mxu0 0.0
  %4204 = vmatpush1.msra.mxu0 0.0
  %4205 = vmatprep.subr.mxu0 0.0
  %4206 = vmatpush1.msra.mxu0 0.0
  %4207 = vmatprep.subr.mxu0 0.0
  %4208 = vmatpush1.msra.mxu0 0.0
  %4209 = vmatprep.subr.mxu0 0.0
  %4210 = vmatpush1.msra.mxu0 0.0
  %4211 = vmatprep.subr.mxu0 0.0
  %4212 = vmatpush1.msra.mxu0 0.0
  %4213 = vmatprep.subr.mxu0 0.0
  %4214 = vmatpush1.msra.mxu0 0.0
  %4215 = vmatprep.subr.mxu0 0.0
  %4216 = vmatpush1.msra.mxu0 0.0
  %4217 = vmatprep.subr.mxu0 0.0
  %4218 = vmatpush1.msra.mxu0 0.0
  %4219 = vmatprep.mubr.f32.mxu0 0.0
  %4220 = vmatmul.mubr.f32.gmra.mrb[0].mxu0 %v4153
  %v4221 = vpop.f32.mrb[0].mxu0
  %v4222 = vadd.f32 %v4145, %v4221
  %v4223 = vpop.f32.mrb[0].mxu0
  %v4224 = vadd.f32 %v4149, %v4223
  %4225 = vdwg.mxu0
  %v4226 = vmax.f32 %v4222, 0.0
  %v4227 = vmax.f32 %v4224, 0.0
  %v4228 = vld [vmem:[%s63] sm:$0xff]
  %v4229 = vld [vmem:[%s63 + $0x8] sm:$0xff]
  %v4230 = vld [vmem:[%s63 + $0x10] sm:$0xff]
  %v4231 = vld [vmem:[%s63 + $0x18] sm:$0xff]
  %v4232 = vld [vmem:[%s63 + $0x20] sm:$0xff]
  %v4233 = vld [vmem:[%s63 + $0x28] sm:$0xff]
  %v4234 = vld [vmem:[%s63 + $0x30] sm:$0xff]
  %v4235 = vld [vmem:[%s63 + $0x38] sm:$0xff]
  %v4236 = vld [vmem:[%s63 + $0x40] sm:$0xff]
  %v4237 = vld [vmem:[%s63 + $0x48] sm:$0xff]
  %v4238 = vld [vmem:[%s63 + $0x50] sm:$0xff]
  %v4239 = vld [vmem:[%s63 + $0x58] sm:$0xff]
  %v4240 = vld [vmem:[%s63 + $0x60] sm:$0xff]
  %v4241 = vld [vmem:[%s63 + $0x68] sm:$0xff]
  %v4242 = vld [vmem:[%s63 + $0x70] sm:$0xff]
  %v4243 = vld [vmem:[%s63 + $0x78] sm:$0xff]
  %v4244 = vld [vmem:[%s63 + $0x80] sm:$0xff]
  %v4245 = vld [vmem:[%s63 + $0x88] sm:$0xff]
  %v4246 = vld [vmem:[%s63 + $0x90] sm:$0xff]
  %v4247 = vld [vmem:[%s63 + $0x98] sm:$0xff]
  %v4248 = vld [vmem:[%s63 + $0xa0] sm:$0xff]
  %v4249 = vld [vmem:[%s63 + $0xa8] sm:$0xff]
  %v4250 = vld [vmem:[%s63 + $0xb0] sm:$0xff]
  %v4251 = vld [vmem:[%s63 + $0xb8] sm:$0xff]
  %v4252 = vld [vmem:[%s63 + $0xc0] sm:$0xff]
  %v4253 = vld [vmem:[%s63 + $0xc8] sm:$0xff]
  %v4254 = vld [vmem:[%s63 + $0xd0] sm:$0xff]
  %v4255 = vld [vmem:[%s63 + $0xd8] sm:$0xff]
  %v4256 = vld [vmem:[%s63 + $0xe0] sm:$0xff]
  %v4257 = vld [vmem:[%s63 + $0xe8] sm:$0xff]
  %v4258 = vld [vmem:[%s63 + $0xf0] sm:$0xff]
  %v4259 = vld [vmem:[%s63 + $0xf8] sm:$0xff]
  %v4260 = vld [vmem:[%s63 + $0x100] sm:$0xff]
  %v4261 = vld [vmem:[%s63 + $0x108] sm:$0xff]
  %v4262 = vld [vmem:[%s63 + $0x110] sm:$0xff]
  %v4263 = vld [vmem:[%s63 + $0x118] sm:$0xff]
  %v4264 = vld [vmem:[%s63 + $0x120] sm:$0xff]
  %v4265 = vld [vmem:[%s63 + $0x128] sm:$0xff]
  %v4266 = vld [vmem:[%s63 + $0x130] sm:$0xff]
  %v4267 = vld [vmem:[%s63 + $0x138] sm:$0xff]
  %v4268 = vld [vmem:[%s63 + $0x140] sm:$0xff]
  %v4269 = vld [vmem:[%s63 + $0x148] sm:$0xff]
  %v4270 = vld [vmem:[%s63 + $0x150] sm:$0xff]
  %v4271 = vld [vmem:[%s63 + $0x158] sm:$0xff]
  %v4272 = vld [vmem:[%s63 + $0x160] sm:$0xff]
  %v4273 = vld [vmem:[%s63 + $0x168] sm:$0xff]
  %v4274 = vld [vmem:[%s63 + $0x170] sm:$0xff]
  %v4275 = vld [vmem:[%s63 + $0x178] sm:$0xff]
  %v4276 = vld [vmem:[%s63 + $0x180] sm:$0xff]
  %v4277 = vld [vmem:[%s63 + $0x188] sm:$0xff]
  %v4278 = vld [vmem:[%s63 + $0x190] sm:$0xff]
  %v4279 = vld [vmem:[%s63 + $0x198] sm:$0xff]
  %v4280 = vld [vmem:[%s63 + $0x1a0] sm:$0xff]
  %v4281 = vld [vmem:[%s63 + $0x1a8] sm:$0xff]
  %v4282 = vld [vmem:[%s63 + $0x1b0] sm:$0xff]
  %v4283 = vld [vmem:[%s63 + $0x1b8] sm:$0xff]
  %v4284 = vld [vmem:[%s63 + $0x1c0] sm:$0xff]
  %v4285 = vld [vmem:[%s63 + $0x1c8] sm:$0xff]
  %v4286 = vld [vmem:[%s63 + $0x1d0] sm:$0xff]
  %v4287 = vld [vmem:[%s63 + $0x1d8] sm:$0xff]
  %v4288 = vld [vmem:[%s63 + $0x1e0] sm:$0xff]
  %v4289 = vld [vmem:[%s63 + $0x1e8] sm:$0xff]
  %v4290 = vld [vmem:[%s63 + $0x1f0] sm:$0xff]
  %v4291 = vld [vmem:[%s63 + $0x1f8] sm:$0xff]
  %v4292 = vld [vmem:[%s65] sm:$0x3]
  %v4294 = vlaneseq
  %v4295 = vshrl.u32 %v4294, 7
  %v4296 = vsub.s32 0, %v4295
  %v4297 = vrot.slane %v4292, %v4296
  %v4298 = vlaneseq
  %v4299 = vshrl.u32 %v4298, 7
  %v4300 = vsub.s32 1, %v4299
  %v4301 = vrot.slane %v4292, %v4300
  %v4306 = vrot.slane %v4226, 2
  %v4307 = vrot.slane %v4227, 2
  %4310 = vmatprep.subr.mxu0 %v4229
  %4311 = vmatpush1.msra.mxu0 %v4228
  %4312 = vmatprep.subr.mxu0 %v4231
  %4313 = vmatpush1.msra.mxu0 %v4230
  %4314 = vmatprep.subr.mxu0 %v4233
  %4315 = vmatpush1.msra.mxu0 %v4232
  %4316 = vmatprep.subr.mxu0 %v4235
  %4317 = vmatpush1.msra.mxu0 %v4234
  %4318 = vmatprep.subr.mxu0 %v4237
  %4319 = vmatpush1.msra.mxu0 %v4236
  %4320 = vmatprep.subr.mxu0 %v4239
  %4321 = vmatpush1.msra.mxu0 %v4238
  %4322 = vmatprep.subr.mxu0 %v4241
  %4323 = vmatpush1.msra.mxu0 %v4240
  %4324 = vmatprep.subr.mxu0 %v4243
  %4325 = vmatpush1.msra.mxu0 %v4242
  %4326 = vmatprep.subr.mxu0 %v4245
  %4327 = vmatpush1.msra.mxu0 %v4244
  %4328 = vmatprep.subr.mxu0 %v4247
  %4329 = vmatpush1.msra.mxu0 %v4246
  %4330 = vmatprep.subr.mxu0 %v4249
  %4331 = vmatpush1.msra.mxu0 %v4248
  %4332 = vmatprep.subr.mxu0 %v4251
  %4333 = vmatpush1.msra.mxu0 %v4250
  %4334 = vmatprep.subr.mxu0 %v4253
  %4335 = vmatpush1.msra.mxu0 %v4252
  %4336 = vmatprep.subr.mxu0 %v4255
  %4337 = vmatpush1.msra.mxu0 %v4254
  %4338 = vmatprep.subr.mxu0 %v4257
  %4339 = vmatpush1.msra.mxu0 %v4256
  %4340 = vmatprep.subr.mxu0 %v4259
  %4341 = vmatpush1.msra.mxu0 %v4258
  %4342 = vmatprep.subr.mxu0 %v4261
  %4343 = vmatpush1.msra.mxu0 %v4260
  %4344 = vmatprep.subr.mxu0 %v4263
  %4345 = vmatpush1.msra.mxu0 %v4262
  %4346 = vmatprep.subr.mxu0 %v4265
  %4347 = vmatpush1.msra.mxu0 %v4264
  %4348 = vmatprep.subr.mxu0 %v4267
  %4349 = vmatpush1.msra.mxu0 %v4266
  %4350 = vmatprep.subr.mxu0 %v4269
  %4351 = vmatpush1.msra.mxu0 %v4268
  %4352 = vmatprep.subr.mxu0 %v4271
  %4353 = vmatpush1.msra.mxu0 %v4270
  %4354 = vmatprep.subr.mxu0 %v4273
  %4355 = vmatpush1.msra.mxu0 %v4272
  %4356 = vmatprep.subr.mxu0 %v4275
  %4357 = vmatpush1.msra.mxu0 %v4274
  %4358 = vmatprep.subr.mxu0 %v4277
  %4359 = vmatpush1.msra.mxu0 %v4276
  %4360 = vmatprep.subr.mxu0 %v4279
  %4361 = vmatpush1.msra.mxu0 %v4278
  %4362 = vmatprep.subr.mxu0 %v4281
  %4363 = vmatpush1.msra.mxu0 %v4280
  %4364 = vmatprep.subr.mxu0 %v4283
  %4365 = vmatpush1.msra.mxu0 %v4282
  %4366 = vmatprep.subr.mxu0 %v4285
  %4367 = vmatpush1.msra.mxu0 %v4284
  %4368 = vmatprep.subr.mxu0 %v4287
  %4369 = vmatpush1.msra.mxu0 %v4286
  %4370 = vmatprep.subr.mxu0 %v4289
  %4371 = vmatpush1.msra.mxu0 %v4288
  %4372 = vmatprep.subr.mxu0 %v4291
  %4373 = vmatpush1.msra.mxu0 %v4290
  %4374 = vmatprep.mubr.f32.mxu0 %v4307
  %4375 = vmatmul.mubr.f32.gmra.mrb[0].mxu0 %v4306
  %v4376 = vpop.f32.mrb[0].mxu0
  %v4377 = vadd.f32 %v4297, %v4376
  %v4378 = vpop.f32.mrb[0].mxu0
  %v4379 = vadd.f32 %v4301, %v4378
  %4380 = vdwg.mxu0
  %v4383 = vrot.slane %v4377, 6
  %v4384 = vrot.slane %v4379, 6
  %v4387 = vsel %vm170, %v4222, %v4383
  %v4388 = vsel %vm170, %v4224, %v4384
  %v4391 = vcombine.low %v4387, %v4388
  %4393 = vst [vmem:[%s67] sm:$0xff] %v4391
  // Predicated region
  $region134: #{uni_model_finetune_forward.1} parent=0 // pred_check
    _
  $region135: #{uni_model_finetune_forward.1} parent=0 // pred_check_branch
    %4395 = sbr.rel (0) target = $region137
  $region136: #{uni_model_finetune_forward.1} parent=0 // pred_region
    _
  $region137: #{uni_model_finetune_forward.1} parent=0 // pred_fallthru
    _
  // Predicated region
  $region138: #{uni_model_finetune_forward.1} parent=0 // pred_check
    _
  $region139: #{uni_model_finetune_forward.1} parent=0 // pred_check_branch
    %4397 = sbr.rel (0) target = $region141
  $region140: #{uni_model_finetune_forward.1} parent=0 // pred_region
    _
  $region141: #{uni_model_finetune_forward.1} parent=0 // pred_fallthru
    _

</llo_original>
